<compile_context>
chip_gen: v7x
topology: tpu7x:2x2x1
jax: 0.10.0
libtpu: 0.0.40
codegen_flags: <defaults>
</compile_context>

<pallas_src>
import numpy as np
import jax
import jax.numpy as jnp
from jax.experimental import pallas as pl
from jax.experimental.pallas import tpu as pltpu


_VGG_MEAN = np.array([0.485, 0.456, 0.406], dtype=np.float32)
_VGG_STD = np.array([0.229, 0.224, 0.225], dtype=np.float32)

# (Cin, Cout, maxpool_before_this_conv, emit_slice_output_after_this_conv)
# Mirrors torchvision vgg19.features[0:30] grouped into slice1..slice5.
_VGG19_CONVS = [
    (3,   64,  False, True),   # slice1 -> h_relu1
    (64,  64,  False, False),
    (64,  128, True,  True),   # slice2 -> h_relu2
    (128, 128, False, False),
    (128, 256, True,  True),   # slice3 -> h_relu3
    (256, 256, False, False),
    (256, 256, False, False),
    (256, 256, False, False),
    (256, 512, True,  True),   # slice4 -> h_relu4
    (512, 512, False, False),
    (512, 512, False, False),
    (512, 512, False, False),
    (512, 512, True,  True),   # slice5 -> h_relu5
]


def _round_up(x, m):
    return ((x + m - 1) // m) * m


# ----------------------------------------------------------------------------
# Fused 3x3 conv + bias + ReLU kernel
# ----------------------------------------------------------------------------
def _make_conv_kernel(H, W, pad0):
    HW = H * W

    def kernel(x_ref, w_ref, b_ref, o_ref, xp_ref):
        # x_ref : (HW, Cin)      flattened NHWC activation of one batch element
        # w_ref : (9, Cin, TCo)  conv taps, tap index k = 3*di + dj
        # b_ref : (1, TCo)
        # o_ref : (HW, TCo)
        # xp_ref: (NPAD, Cin)    VMEM scratch: zero rows + flattened image rows
        xp_ref[...] = jnp.zeros_like(xp_ref)
        xp_ref[pl.ds(pad0, HW), :] = x_ref[...]      # data rows at [pad0, pad0+HW)

        # 0/1 masks that zero the horizontally wrapped rows of the left-column
        # (dj==0) and right-column (dj==2) taps.  Built in-kernel from an iota so
        # no array constants are captured.
        cols = jax.lax.broadcasted_iota(jnp.int32, (HW, 1), 0) % W
        mask_l = (cols != 0).astype(jnp.float32)
        mask_r = (cols != (W - 1)).astype(jnp.float32)

        tco = o_ref.shape[-1]
        acc = jnp.zeros((HW, tco), dtype=jnp.float32)
        for di in range(3):
            for dj in range(3):
                # scratch row for output pixel r and tap (di, dj) is
                # pad0 + r + (di-1)*W + (dj-1): a single unit-stride slice.
                start = pad0 + (di - 1) * W + (dj - 1)
                win = xp_ref[pl.ds(start, HW), :]
                if dj == 0:
                    win = win * mask_l
                elif dj == 2:
                    win = win * mask_r
                acc = acc + jnp.dot(win, w_ref[3 * di + dj],
                                    preferred_element_type=jnp.float32)

        o_ref[...] = jnp.maximum(acc + b_ref[...], 0.0).astype(o_ref.dtype)

    return kernel


def conv3x3_bias_relu(x_flat, w, b, H, W, *, cout_tile=256):
    """3x3 'same' conv + bias + ReLU on a flattened NHWC activation.

    x_flat: (B, H*W, Cin) f32;  w: (9, Cin, Cout) f32;  b: (1, Cout) f32.
    Returns (B, H*W, Cout) f32.
    """
    B, HW, Cin = x_flat.shape
    assert HW == H * W
    _, _, Cout = w.shape
    tco = min(cout_tile, Cout)
    assert Cout % tco == 0
    n_co = Cout // tco

    pad0 = _round_up(W + 1, 8)              # sublane-aligned start of the data rows
    npad = _round_up(pad0 + HW + W + 1, 8)  # rows touched by the farthest tap

    kernel = _make_conv_kernel(H, W, pad0)

    flops = 2 * B * HW * 9 * Cin * Cout
    bytes_accessed = 4 * (B * HW * Cin + B * 9 * Cin * Cout + B * HW * Cout + Cout)

    return pl.pallas_call(
        kernel,
        out_shape=jax.ShapeDtypeStruct((B, HW, Cout), jnp.float32),
        grid_spec=pltpu.PrefetchScalarGridSpec(
            num_scalar_prefetch=0,
            grid=(B, n_co),
            in_specs=[
                pl.BlockSpec((None, HW, Cin), lambda bi, ci: (bi, 0, 0)),
                pl.BlockSpec((9, Cin, tco), lambda bi, ci: (0, 0, ci)),
                pl.BlockSpec((1, tco), lambda bi, ci: (0, ci)),
            ],
            out_specs=pl.BlockSpec((None, HW, tco), lambda bi, ci: (bi, 0, ci)),
            scratch_shapes=[pltpu.VMEM((npad, Cin), jnp.float32)],
        ),
        compiler_params=pltpu.CompilerParams(
            dimension_semantics=("parallel", "parallel")),
        cost_estimate=pl.CostEstimate(flops=flops, transcendentals=0,
                                      bytes_accessed=bytes_accessed),
    )(x_flat, w, b)


# ----------------------------------------------------------------------------
# 2x2 / stride-2 max pool kernel
# ----------------------------------------------------------------------------
def _maxpool_kernel(x_ref, o_ref):
    # x_ref: (Ho, 2, Wo, 2, C);  o_ref: (Ho, Wo, 1, C)
    a = jnp.maximum(x_ref[:, 0, :, :, :], x_ref[:, 1, :, :, :])   # pool the H pair
    o_ref[...] = jnp.maximum(a[:, :, 0:1, :], a[:, :, 1:2, :])    # pool the W pair


def maxpool2x2(x_flat, H, W, C):
    """2x2 stride-2 max pool on a flattened NHWC activation (B, H*W, C)."""
    B = x_flat.shape[0]
    assert H % 2 == 0 and W % 2 == 0
    Ho, Wo = H // 2, W // 2
    xv = x_flat.reshape(B, Ho, 2, Wo, 2, C)     # free row-major re-view in XLA
    out = pl.pallas_call(
        _maxpool_kernel,
        out_shape=jax.ShapeDtypeStruct((B, Ho, Wo, 1, C), jnp.float32),
        grid_spec=pltpu.PrefetchScalarGridSpec(
            num_scalar_prefetch=0,
            grid=(B,),
            in_specs=[pl.BlockSpec((None, Ho, 2, Wo, 2, C),
                                   lambda b: (b, 0, 0, 0, 0, 0))],
            out_specs=pl.BlockSpec((None, Ho, Wo, 1, C),
                                   lambda b: (b, 0, 0, 0, 0)),
        ),
        compiler_params=pltpu.CompilerParams(dimension_semantics=("parallel",)),
    )(xv)
    return out.reshape(B, Ho * Wo, C)


# ----------------------------------------------------------------------------
# The Vgg19 forward pass
# ----------------------------------------------------------------------------
class Vgg19Pallas:
    """JAX/Pallas equivalent of the Vgg19 perceptual-feature forward pass.

    TODO(synk): torchvision's *pretrained* VGG19 weights cannot be downloaded here,
    so layers use deterministic He-initialized weights; structure, normalization and
    the five returned relu feature maps match the PyTorch module exactly.
    """

    def __init__(self, key=None):
        if key is None:
            key = jax.random.PRNGKey(0)
        self.params = []
        for (cin, cout, _, _) in _VGG19_CONVS:
            key, kw, kb = jax.random.split(key, 3)
            w = jax.random.normal(kw, (9, cin, cout), dtype=jnp.float32) * float(
                np.sqrt(2.0 / (9 * cin)))
            bias = jax.random.normal(kb, (1, cout), dtype=jnp.float32) * 0.01
            self.params.append((w, bias))

    def __call__(self, x):
        # x: (B, 3, H, W) NCHW float32, same convention as the PyTorch module.
        B, C, H, W = x.shape
        assert C == 3
        h = jnp.transpose(x, (0, 2, 3, 1)).reshape(B, H * W, C)
        # ImageNet per-channel normalization: a tiny (B, H*W, 3) elementwise op,
        # done here so the conv kernel captures no array constants.
        h = (h - jnp.asarray(_VGG_MEAN).reshape(1, 1, 3)) * \
            jnp.asarray(1.0 / _VGG_STD).reshape(1, 1, 3)

        cur_h, cur_w = H, W
        outs = []
        for (w, bias), (cin, cout, pool, is_out) in zip(self.params, _VGG19_CONVS):
            if pool:
                h = maxpool2x2(h, cur_h, cur_w, cin)
                cur_h //= 2
                cur_w //= 2
            h = conv3x3_bias_relu(h, w, bias, cur_h, cur_w)
            if is_out:
                outs.append(
                    jnp.transpose(h.reshape(B, cur_h, cur_w, cout), (0, 3, 1, 2)))
        return outs  # [h_relu1, h_relu2, h_relu3, h_relu4, h_relu5], NCHW


# ----------------------------------------------------------------------------
# Pure-JAX reference (XLA conv / reduce_window) for correctness checking
# ----------------------------------------------------------------------------
def _reference_forward(x, params):
    mean = jnp.asarray(_VGG_MEAN).reshape(1, 3, 1, 1)
    std = jnp.asarray(_VGG_STD).reshape(1, 3, 1, 1)
    h = jnp.transpose((x - mean) / std, (0, 2, 3, 1))   # NHWC
    outs = []
    for (w, bias), (cin, cout, pool, is_out) in zip(params, _VGG19_CONVS):
        if pool:
            h = jax.lax.reduce_window(h, -jnp.inf, jax.lax.max,
                                      (1, 2, 2, 1), (1, 2, 2, 1), "VALID")
        h = jax.lax.conv_general_dilated(
            h, w.reshape(3, 3, cin, cout), window_strides=(1, 1),
            padding=((1, 1), (1, 1)),
            dimension_numbers=("NHWC", "HWIO", "NHWC"))
        h = jnp.maximum(h + bias.reshape(1, 1, 1, cout), 0.0)
        if is_out:
            outs.append(jnp.transpose(h, (0, 3, 1, 2)))
    return outs


if __name__ == "__main__":
    key = jax.random.PRNGKey(0)
    kx, kp = jax.random.split(key)
    B, C, H, W = 2, 3, 16, 16
    x = jax.random.uniform(kx, (B, C, H, W), dtype=jnp.float32)

    model = Vgg19Pallas(kp)
    feats = model(x)
    feats = [jax.block_until_ready(f) for f in feats]

    expected_shapes = [(B, 64, 16, 16), (B, 128, 8, 8), (B, 256, 4, 4),
                       (B, 512, 2, 2), (B, 512, 1, 1)]
    for f, s in zip(feats, expected_shapes):
        assert f.shape == s, (f.shape, s)
        assert bool(jnp.all(jnp.isfinite(f)))

    # Cross-check the Pallas pipeline against the plain-JAX reference.
    refs = [jax.block_until_ready(r) for r in _reference_forward(x, model.params)]
    for i, (a, r) in enumerate(zip(feats, refs)):
        a = np.asarray(a)
        r = np.asarray(r)
        scale = float(np.max(np.abs(r))) + 1e-6
        err = float(np.max(np.abs(a - r)))
        assert err <= 5e-2 * scale + 1e-3, (i, err, scale)

    print("KERNEL_OK")
</pallas_src>

<mosaic_0001>
module attributes {stable_mosaic.version = 11 : i64} {
  func.func @kernel(%arg0: i32, %arg1: i32, %arg2: memref<1x256x3xf32, #tpu.memory_space<vmem>>, %arg3: memref<9x3x64xf32, #tpu.memory_space<vmem>>, %arg4: memref<1x64xf32, #tpu.memory_space<vmem>>, %arg5: memref<1x256x64xf32, #tpu.memory_space<vmem>>, %arg6: memref<304x3xf32, #tpu.memory_space<vmem>>) attributes {dimension_semantics = [#tpu.dimension_semantics<parallel>, #tpu.dimension_semantics<parallel>], iteration_bounds = array<i64: 2, 1>, scalar_prefetch = 0 : i64, scratch_operands = 1 : i64, tpu.core_type = #tpu.core_type<tc>, window_params = [{transform_indices = @transform_0, window_bounds = array<i64: 1, 256, 3>}, {transform_indices = @transform_1, window_bounds = array<i64: 9, 3, 64>}, {transform_indices = @transform_2, window_bounds = array<i64: 1, 64>}, {transform_indices = @transform_3, window_bounds = array<i64: 1, 256, 64>}]} {
    %cst = arith.constant 0.000000e+00 : f32
    %0 = vector.broadcast %cst : f32 to vector<304x3xf32>
    %c0 = arith.constant 0 : index
    %c0_0 = arith.constant 0 : index
    %1 = vector.load %arg6[%c0, %c0_0] : memref<304x3xf32, #tpu.memory_space<vmem>>, vector<304x3xf32>
    tpu.vector_store %arg6[%c0, %c0_0], %0 {strides = array<i32>} : memref<304x3xf32, #tpu.memory_space<vmem>>, vector<304x3xf32>,
    %c0_1 = arith.constant 0 : index
    %c0_2 = arith.constant 0 : index
    %c0_3 = arith.constant 0 : index
    %2 = vector.load %arg2[%c0_1, %c0_2, %c0_3] : memref<1x256x3xf32, #tpu.memory_space<vmem>>, vector<1x256x3xf32>
    %3 = vector.shape_cast %2 : vector<1x256x3xf32> to vector<256x3xf32>
    %c24 = arith.constant 24 : index
    %c0_4 = arith.constant 0 : index
    %4 = vector.load %arg6[%c24, %c0_4] : memref<304x3xf32, #tpu.memory_space<vmem>>, vector<256x3xf32>
    tpu.vector_store %arg6[%c24, %c0_4], %3 {strides = array<i32>} : memref<304x3xf32, #tpu.memory_space<vmem>>, vector<256x3xf32>,
    %5 = tpu.iota {dimensions = array<i32: 0>} : vector<256x1xi32>
    %c16_i32 = arith.constant 16 : i32
    %c0_i32 = arith.constant 0 : i32
    %6 = arith.cmpi eq, %c16_i32, %c0_i32 : i32
    %c1_i32 = arith.constant 1 : i32
    %7 = arith.select %6, %c1_i32, %c16_i32 : i32
    %8 = vector.broadcast %7 : i32 to vector<256x1xi32>
    %9 = arith.remsi %5, %8 : vector<256x1xi32>
    %c0_i32_5 = arith.constant 0 : i32
    %10 = vector.broadcast %c0_i32_5 : i32 to vector<256x1xi32>
    %11 = arith.cmpi ne, %9, %10 : vector<256x1xi32>
    %c0_i32_6 = arith.constant 0 : i32
    %12 = vector.broadcast %c0_i32_6 : i32 to vector<256x1xi32>
    %13 = arith.cmpi slt, %9, %12 : vector<256x1xi32>
    %c0_i32_7 = arith.constant 0 : i32
    %14 = arith.cmpi slt, %7, %c0_i32_7 : i32
    %15 = vector.broadcast %14 : i1 to vector<256x1xi1>
    %16 = vector.broadcast %15 : vector<256x1xi1> to vector<256x1xi1>
    %17 = arith.xori %13, %16 : vector<256x1xi1>
    %18 = arith.andi %17, %11 : vector<256x1xi1>
    %19 = vector.broadcast %7 : i32 to vector<256x1xi32>
    %20 = arith.addi %9, %19 : vector<256x1xi32>
    %21 = arith.select %18, %20, %9 : vector<256x1xi1>, vector<256x1xi32>
    %c0_i32_8 = arith.constant 0 : i32
    %22 = vector.broadcast %c0_i32_8 : i32 to vector<256x1xi32>
    %23 = arith.cmpi ne, %21, %22 : vector<256x1xi32>
    %24 = arith.extui %23 : vector<256x1xi1> to vector<256x1xi32>
    %25 = arith.sitofp %24 : vector<256x1xi32> to vector<256x1xf32>
    %c15_i32 = arith.constant 15 : i32
    %26 = vector.broadcast %c15_i32 : i32 to vector<256x1xi32>
    %27 = arith.cmpi ne, %21, %26 : vector<256x1xi32>
    %28 = arith.extui %27 : vector<256x1xi1> to vector<256x1xi32>
    %29 = arith.sitofp %28 : vector<256x1xi32> to vector<256x1xf32>
    %cst_9 = arith.constant 0.000000e+00 : f32
    %30 = vector.broadcast %cst_9 : f32 to vector<256x64xf32>
    %c7 = arith.constant 7 : index
    %c0_10 = arith.constant 0 : index
    %31 = vector.load %arg6[%c7, %c0_10] : memref<304x3xf32, #tpu.memory_space<vmem>>, vector<256x3xf32>
    %32 = vector.broadcast %25 : vector<256x1xf32> to vector<256x3xf32>
    %33 = arith.mulf %31, %32 : vector<256x3xf32>
    %c0_11 = arith.constant 0 : index
    %c0_12 = arith.constant 0 : index
    %c0_13 = arith.constant 0 : index
    %34 = vector.load %arg3[%c0_11, %c0_12, %c0_13] : memref<9x3x64xf32, #tpu.memory_space<vmem>>, vector<1x3x64xf32>
    %35 = vector.shape_cast %34 : vector<1x3x64xf32> to vector<3x64xf32>
    %cst_14 = arith.constant dense<0.000000e+00> : vector<256x64xf32>
    %36 = tpu.matmul %33, %35, %cst_14 {dimension_numbers = #tpu.dot_dimension_numbers<[1], [0], [0], [1], [0, 0, 1, 1], [], []>} : vector<256x3xf32>, vector<3x64xf32>, vector<256x64xf32> -> vector<256x64xf32>
    %37 = arith.addf %30, %36 : vector<256x64xf32>
    %c8 = arith.constant 8 : index
    %c0_15 = arith.constant 0 : index
    %38 = vector.load %arg6[%c8, %c0_15] : memref<304x3xf32, #tpu.memory_space<vmem>>, vector<256x3xf32>
    %c1 = arith.constant 1 : index
    %c0_16 = arith.constant 0 : index
    %c0_17 = arith.constant 0 : index
    %39 = vector.load %arg3[%c1, %c0_16, %c0_17] : memref<9x3x64xf32, #tpu.memory_space<vmem>>, vector<1x3x64xf32>
    %40 = vector.shape_cast %39 : vector<1x3x64xf32> to vector<3x64xf32>
    %cst_18 = arith.constant dense<0.000000e+00> : vector<256x64xf32>
    %41 = tpu.matmul %38, %40, %cst_18 {dimension_numbers = #tpu.dot_dimension_numbers<[1], [0], [0], [1], [0, 0, 1, 1], [], []>} : vector<256x3xf32>, vector<3x64xf32>, vector<256x64xf32> -> vector<256x64xf32>
    %42 = arith.addf %37, %41 : vector<256x64xf32>
    %c9 = arith.constant 9 : index
    %c0_19 = arith.constant 0 : index
    %43 = vector.load %arg6[%c9, %c0_19] : memref<304x3xf32, #tpu.memory_space<vmem>>, vector<256x3xf32>
    %44 = vector.broadcast %29 : vector<256x1xf32> to vector<256x3xf32>
    %45 = arith.mulf %43, %44 : vector<256x3xf32>
    %c2 = arith.constant 2 : index
    %c0_20 = arith.constant 0 : index
    %c0_21 = arith.constant 0 : index
    %46 = vector.load %arg3[%c2, %c0_20, %c0_21] : memref<9x3x64xf32, #tpu.memory_space<vmem>>, vector<1x3x64xf32>
    %47 = vector.shape_cast %46 : vector<1x3x64xf32> to vector<3x64xf32>
    %cst_22 = arith.constant dense<0.000000e+00> : vector<256x64xf32>
    %48 = tpu.matmul %45, %47, %cst_22 {dimension_numbers = #tpu.dot_dimension_numbers<[1], [0], [0], [1], [0, 0, 1, 1], [], []>} : vector<256x3xf32>, vector<3x64xf32>, vector<256x64xf32> -> vector<256x64xf32>
    %49 = arith.addf %42, %48 : vector<256x64xf32>
    %c23 = arith.constant 23 : index
    %c0_23 = arith.constant 0 : index
    %50 = vector.load %arg6[%c23, %c0_23] : memref<304x3xf32, #tpu.memory_space<vmem>>, vector<256x3xf32>
    %51 = vector.broadcast %25 : vector<256x1xf32> to vector<256x3xf32>
    %52 = arith.mulf %50, %51 : vector<256x3xf32>
    %c3 = arith.constant 3 : index
    %c0_24 = arith.constant 0 : index
    %c0_25 = arith.constant 0 : index
    %53 = vector.load %arg3[%c3, %c0_24, %c0_25] : memref<9x3x64xf32, #tpu.memory_space<vmem>>, vector<1x3x64xf32>
    %54 = vector.shape_cast %53 : vector<1x3x64xf32> to vector<3x64xf32>
    %cst_26 = arith.constant dense<0.000000e+00> : vector<256x64xf32>
    %55 = tpu.matmul %52, %54, %cst_26 {dimension_numbers = #tpu.dot_dimension_numbers<[1], [0], [0], [1], [0, 0, 1, 1], [], []>} : vector<256x3xf32>, vector<3x64xf32>, vector<256x64xf32> -> vector<256x64xf32>
    %56 = arith.addf %49, %55 : vector<256x64xf32>
    %c24_27 = arith.constant 24 : index
    %c0_28 = arith.constant 0 : index
    %57 = vector.load %arg6[%c24_27, %c0_28] : memref<304x3xf32, #tpu.memory_space<vmem>>, vector<256x3xf32>
    %c4 = arith.constant 4 : index
    %c0_29 = arith.constant 0 : index
    %c0_30 = arith.constant 0 : index
    %58 = vector.load %arg3[%c4, %c0_29, %c0_30] : memref<9x3x64xf32, #tpu.memory_space<vmem>>, vector<1x3x64xf32>
    %59 = vector.shape_cast %58 : vector<1x3x64xf32> to vector<3x64xf32>
    %cst_31 = arith.constant dense<0.000000e+00> : vector<256x64xf32>
    %60 = tpu.matmul %57, %59, %cst_31 {dimension_numbers = #tpu.dot_dimension_numbers<[1], [0], [0], [1], [0, 0, 1, 1], [], []>} : vector<256x3xf32>, vector<3x64xf32>, vector<256x64xf32> -> vector<256x64xf32>
    %61 = arith.addf %56, %60 : vector<256x64xf32>
    %c25 = arith.constant 25 : index
    %c0_32 = arith.constant 0 : index
    %62 = vector.load %arg6[%c25, %c0_32] : memref<304x3xf32, #tpu.memory_space<vmem>>, vector<256x3xf32>
    %63 = vector.broadcast %29 : vector<256x1xf32> to vector<256x3xf32>
    %64 = arith.mulf %62, %63 : vector<256x3xf32>
    %c5 = arith.constant 5 : index
    %c0_33 = arith.constant 0 : index
    %c0_34 = arith.constant 0 : index
    %65 = vector.load %arg3[%c5, %c0_33, %c0_34] : memref<9x3x64xf32, #tpu.memory_space<vmem>>, vector<1x3x64xf32>
    %66 = vector.shape_cast %65 : vector<1x3x64xf32> to vector<3x64xf32>
    %cst_35 = arith.constant dense<0.000000e+00> : vector<256x64xf32>
    %67 = tpu.matmul %64, %66, %cst_35 {dimension_numbers = #tpu.dot_dimension_numbers<[1], [0], [0], [1], [0, 0, 1, 1], [], []>} : vector<256x3xf32>, vector<3x64xf32>, vector<256x64xf32> -> vector<256x64xf32>
    %68 = arith.addf %61, %67 : vector<256x64xf32>
    %c39 = arith.constant 39 : index
    %c0_36 = arith.constant 0 : index
    %69 = vector.load %arg6[%c39, %c0_36] : memref<304x3xf32, #tpu.memory_space<vmem>>, vector<256x3xf32>
    %70 = vector.broadcast %25 : vector<256x1xf32> to vector<256x3xf32>
    %71 = arith.mulf %69, %70 : vector<256x3xf32>
    %c6 = arith.constant 6 : index
    %c0_37 = arith.constant 0 : index
    %c0_38 = arith.constant 0 : index
    %72 = vector.load %arg3[%c6, %c0_37, %c0_38] : memref<9x3x64xf32, #tpu.memory_space<vmem>>, vector<1x3x64xf32>
    %73 = vector.shape_cast %72 : vector<1x3x64xf32> to vector<3x64xf32>
    %cst_39 = arith.constant dense<0.000000e+00> : vector<256x64xf32>
    %74 = tpu.matmul %71, %73, %cst_39 {dimension_numbers = #tpu.dot_dimension_numbers<[1], [0], [0], [1], [0, 0, 1, 1], [], []>} : vector<256x3xf32>, vector<3x64xf32>, vector<256x64xf32> -> vector<256x64xf32>
    %75 = arith.addf %68, %74 : vector<256x64xf32>
    %c40 = arith.constant 40 : index
    %c0_40 = arith.constant 0 : index
    %76 = vector.load %arg6[%c40, %c0_40] : memref<304x3xf32, #tpu.memory_space<vmem>>, vector<256x3xf32>
    %c7_41 = arith.constant 7 : index
    %c0_42 = arith.constant 0 : index
    %c0_43 = arith.constant 0 : index
    %77 = vector.load %arg3[%c7_41, %c0_42, %c0_43] : memref<9x3x64xf32, #tpu.memory_space<vmem>>, vector<1x3x64xf32>
    %78 = vector.shape_cast %77 : vector<1x3x64xf32> to vector<3x64xf32>
    %cst_44 = arith.constant dense<0.000000e+00> : vector<256x64xf32>
    %79 = tpu.matmul %76, %78, %cst_44 {dimension_numbers = #tpu.dot_dimension_numbers<[1], [0], [0], [1], [0, 0, 1, 1], [], []>} : vector<256x3xf32>, vector<3x64xf32>, vector<256x64xf32> -> vector<256x64xf32>
    %80 = arith.addf %75, %79 : vector<256x64xf32>
    %c41 = arith.constant 41 : index
    %c0_45 = arith.constant 0 : index
    %81 = vector.load %arg6[%c41, %c0_45] : memref<304x3xf32, #tpu.memory_space<vmem>>, vector<256x3xf32>
    %82 = vector.broadcast %29 : vector<256x1xf32> to vector<256x3xf32>
    %83 = arith.mulf %81, %82 : vector<256x3xf32>
    %c8_46 = arith.constant 8 : index
    %c0_47 = arith.constant 0 : index
    %c0_48 = arith.constant 0 : index
    %84 = vector.load %arg3[%c8_46, %c0_47, %c0_48] : memref<9x3x64xf32, #tpu.memory_space<vmem>>, vector<1x3x64xf32>
    %85 = vector.shape_cast %84 : vector<1x3x64xf32> to vector<3x64xf32>
    %cst_49 = arith.constant dense<0.000000e+00> : vector<256x64xf32>
    %86 = tpu.matmul %83, %85, %cst_49 {dimension_numbers = #tpu.dot_dimension_numbers<[1], [0], [0], [1], [0, 0, 1, 1], [], []>} : vector<256x3xf32>, vector<3x64xf32>, vector<256x64xf32> -> vector<256x64xf32>
    %87 = arith.addf %80, %86 : vector<256x64xf32>
    %c0_50 = arith.constant 0 : index
    %c0_51 = arith.constant 0 : index
    %88 = vector.load %arg4[%c0_50, %c0_51] : memref<1x64xf32, #tpu.memory_space<vmem>>, vector<1x64xf32>
    %89 = vector.broadcast %88 : vector<1x64xf32> to vector<256x64xf32>
    %90 = arith.addf %87, %89 : vector<256x64xf32>
    %cst_52 = arith.constant 0.000000e+00 : f32
    %91 = vector.broadcast %cst_52 : f32 to vector<256x64xf32>
    %92 = arith.maximumf %90, %91 : vector<256x64xf32>
    %c0_53 = arith.constant 0 : index
    %c0_54 = arith.constant 0 : index
    %c0_55 = arith.constant 0 : index
    %93 = vector.load %arg5[%c0_53, %c0_54, %c0_55] : memref<1x256x64xf32, #tpu.memory_space<vmem>>, vector<1x256x64xf32>
    %94 = vector.shape_cast %93 : vector<1x256x64xf32> to vector<256x64xf32>
    %95 = vector.shape_cast %92 : vector<256x64xf32> to vector<1x256x64xf32>
    tpu.vector_store %arg5[%c0_53, %c0_54, %c0_55], %95 {strides = array<i32>} : memref<1x256x64xf32, #tpu.memory_space<vmem>>, vector<1x256x64xf32>,
    return
  }
  func.func @transform_0(%arg0: i32, %arg1: i32) -> (i32, i32, i32) {
    %c0_i32 = arith.constant 0 : i32
    %c0_i32_0 = arith.constant 0 : i32
    %c0_i32_1 = arith.constant 0 : i32
    return %arg0, %c0_i32, %c0_i32_0 : i32, i32, i32
  }
  func.func @transform_1(%arg0: i32, %arg1: i32) -> (i32, i32, i32) {
    %c0_i32 = arith.constant 0 : i32
    %c0_i32_0 = arith.constant 0 : i32
    %c0_i32_1 = arith.constant 0 : i32
    return %c0_i32, %c0_i32_0, %arg1 : i32, i32, i32
  }
  func.func @transform_2(%arg0: i32, %arg1: i32) -> (i32, i32) {
    %c0_i32 = arith.constant 0 : i32
    %c0_i32_0 = arith.constant 0 : i32
    return %c0_i32, %arg1 : i32, i32
  }
  func.func @transform_3(%arg0: i32, %arg1: i32) -> (i32, i32, i32) {
    %c0_i32 = arith.constant 0 : i32
    %c0_i32_0 = arith.constant 0 : i32
    return %arg0, %c0_i32, %arg1 : i32, i32, i32
  }
}

</mosaic_0001>

<llo_original>
// kernel: tpu_custom_call.1
$region0: #{tpu_custom_call.1}
  #allocation0 [shape = 'u32[]', space=smem, size = 0x4, offset = 0x4, fixed_abs, tag = 'smem constant byte address 0x4 - core index']
  #allocation1 [shape = 'u32[144,128]{1,0:T(1,128)}', space=vmem, size = 0x12000, scoped, tag = 'internal scratch']
  #allocation2 [shape = 'f32[304,3]{1,0:T(8,128)}', space=vmem, size = 0x26000, scoped, tag = 'scratch operand']
  %s0 = inlined_call_operand.vmem [shape: f32[2,256,3], index: 0, kind: input, shape index: {}]
  %s1 = inlined_call_operand.vmem [shape: f32[9,3,64], index: 1, kind: input, shape index: {}]
  %s2 = inlined_call_operand.vmem [shape: f32[1,64], index: 2, kind: input, shape index: {}]
  %s3 = inlined_call_operand.vmem [shape: f32[2,256,64], index: 3, kind: output, shape index: {}]
  %s4 = sld [smem:[#allocation0]]
  $region45: #{tpu_custom_call.1} parent=0
    _
  %s6 = ssub.s32 1, %s4
  %s7 = scalar_select 0, %s6, %s4
  loop: start=0, step=1, limit=4
  $region2: #{tpu_custom_call.1} parent=0 // loop_pre_header
    _
  $region3: #{tpu_custom_call.1} parent=0 // loop_header
    %s9 = sphi 0, %s13
    %p10 = scmp.ge.s32.totalorder %s9, 4
    %s16 = sphi 0, %s28
    %s17 = sphi 0, %s24
    %s18 = sphi 0, %s16
    %s19 = sphi 0, %s17
    %s20 = sphi 0, %s18
    %s21 = sphi 0, %s19
    %s31 = sphi 0, %s33
    %s34 = sphi 0, %s31
    %s35 = sphi 0, %s34
    %s51 = sphi 0, %s35
    %s57 = sphi 0, %s59
    %s60 = sphi 0, %s57
    %s61 = sphi 0, %s60
    %s77 = sphi 0, %s61
    %s83 = sphi 0, %s85
    %s86 = sphi 0, %s83
    %s87 = sphi 0, %s86
    %s103 = sphi 0, %s87
    %s111 = sphi 0, %s113
    %s114 = sphi 0, %s111
    %s115 = sphi 0, %s114
    %s131 = sphi 0, %s115
  $region4: #{tpu_custom_call.1} parent=0 // loop_header_branch
    %12 = sbr.rel (%p10) target = $region8
  $region5: #{tpu_custom_call.1} parent=0 // loop_body
    %s14 = ssub.s32 %s9, 1
    %s15 = ssub.s32 %s9, 2
    %s22 = sadd.s32 1, %s17
    %p23 = scmp.ge.s32.totalorder %s22, 1
    %s24 = scalar_select %p23, 0, %s22
    %s25 = sadd.s32 1, %s16
    %s26 = scalar_select %p23, %s25, %s16
    %p27 = scmp.ge.s32.totalorder %s26, 2
    %s28 = scalar_select %p27, 0, %s26
    %s29 = ssub.s32 %s16, %s28
    %p30 = scmp.eq.s32.totalorder %s29, 0
    %s32 = sadd.s32 %s31, 1
    %s33 = scalar_select %p30, %s31, %s32
    %p36 = pneg %p30
    %p37 = scmp.eq.s32.totalorder %s9, 1
    %p38 = por %p36, %p37
    %p39 = scmp.ne.s32.totalorder %s31, %s34
    %p40 = scmp.eq.s32.totalorder %s9, 0
    %p41 = por %p39, %p40
    %p42 = scmp.ne.s32.totalorder %s31, %s34
    %p43 = scmp.eq.s32.totalorder %s14, 1
    %p44 = por %p42, %p43
    %p45 = scmp.ne.s32.totalorder %s34, %s35
    %p46 = scmp.eq.s32.totalorder %s14, 0
    %p47 = por %p45, %p46
    %p48 = scmp.ne.s32.totalorder %s34, %s35
    %p49 = scmp.eq.s32.totalorder %s15, 1
    %p50 = por %p48, %p49
    %p52 = scmp.ne.s32.totalorder %s35, %s51
    %p53 = scmp.eq.s32.totalorder %s15, 0
    %p54 = por %p52, %p53
    %s55 = ssub.s32 %s17, %s24
    %p56 = scmp.eq.s32.totalorder %s55, 0
    %s58 = sadd.s32 %s57, 1
    %s59 = scalar_select %p56, %s57, %s58
    %p62 = pneg %p56
    %p63 = scmp.eq.s32.totalorder %s9, 1
    %p64 = por %p62, %p63
    %p65 = scmp.ne.s32.totalorder %s57, %s60
    %p66 = scmp.eq.s32.totalorder %s9, 0
    %p67 = por %p65, %p66
    %p68 = scmp.ne.s32.totalorder %s57, %s60
    %p69 = scmp.eq.s32.totalorder %s14, 1
    %p70 = por %p68, %p69
    %p71 = scmp.ne.s32.totalorder %s60, %s61
    %p72 = scmp.eq.s32.totalorder %s14, 0
    %p73 = por %p71, %p72
    %p74 = scmp.ne.s32.totalorder %s60, %s61
    %p75 = scmp.eq.s32.totalorder %s15, 1
    %p76 = por %p74, %p75
    %p78 = scmp.ne.s32.totalorder %s61, %s77
    %p79 = scmp.eq.s32.totalorder %s15, 0
    %p80 = por %p78, %p79
    %s81 = ssub.s32 %s17, %s24
    %p82 = scmp.eq.s32.totalorder %s81, 0
    %s84 = sadd.s32 %s83, 1
    %s85 = scalar_select %p82, %s83, %s84
    %p88 = pneg %p82
    %p89 = scmp.eq.s32.totalorder %s9, 1
    %p90 = por %p88, %p89
    %p91 = scmp.ne.s32.totalorder %s83, %s86
    %p92 = scmp.eq.s32.totalorder %s9, 0
    %p93 = por %p91, %p92
    %p94 = scmp.ne.s32.totalorder %s83, %s86
    %p95 = scmp.eq.s32.totalorder %s14, 1
    %p96 = por %p94, %p95
    %p97 = scmp.ne.s32.totalorder %s86, %s87
    %p98 = scmp.eq.s32.totalorder %s14, 0
    %p99 = por %p97, %p98
    %p100 = scmp.ne.s32.totalorder %s86, %s87
    %p101 = scmp.eq.s32.totalorder %s15, 1
    %p102 = por %p100, %p101
    %p104 = scmp.ne.s32.totalorder %s87, %s103
    %p105 = scmp.eq.s32.totalorder %s15, 0
    %p106 = por %p104, %p105
    %s107 = ssub.s32 %s16, %s28
    %s108 = ssub.s32 %s17, %s24
    %s109 = sor.u32 %s107, %s108
    %p110 = scmp.eq.s32.totalorder %s109, 0
    %s112 = sadd.s32 %s111, 1
    %s113 = scalar_select %p110, %s111, %s112
    %p116 = pneg %p110
    %p117 = scmp.eq.s32.totalorder %s9, 1
    %p118 = por %p116, %p117
    %p119 = scmp.ne.s32.totalorder %s111, %s114
    %p120 = scmp.eq.s32.totalorder %s9, 0
    %p121 = por %p119, %p120
    %p122 = scmp.ne.s32.totalorder %s111, %s114
    %p123 = scmp.eq.s32.totalorder %s14, 1
    %p124 = por %p122, %p123
    %p125 = scmp.ne.s32.totalorder %s114, %s115
    %p126 = scmp.eq.s32.totalorder %s14, 0
    %p127 = por %p125, %p126
    %p128 = scmp.ne.s32.totalorder %s114, %s115
    %p129 = scmp.eq.s32.totalorder %s15, 1
    %p130 = por %p128, %p129
    %p132 = scmp.ne.s32.totalorder %s115, %s131
    %p133 = scmp.eq.s32.totalorder %s15, 0
    %p134 = por %p132, %p133
    %p135 = scmp.le.s32.totalorder 1, %s9
    %p136 = scmp.lt.s32.totalorder %s9, 3
    %p137 = pnand %p135, %p136
    %p138 = pneg %p137
    // Predicated region
    $region9: #{tpu_custom_call.1} parent=5 // pred_check
      _
    $region10: #{tpu_custom_call.1} parent=5 // pred_check_branch
      %140 = sbr.rel (%p137) target = $region12
    $region11: #{tpu_custom_call.1} parent=5 // pred_region
      %s141 = ssub.s32 %s9, 1
      // Predicated region
      $region13: #{tpu_custom_call.1} parent=11 // pred_check
        %p142 = pneg %p73
      $region14: #{tpu_custom_call.1} parent=11 // pred_check_branch
        %144 = sbr.rel (%p142) target = $region16
      $region15: #{tpu_custom_call.1} parent=11 // pred_region
        %p145 = scmp.lt.s32.totalorder %s19, 0
        %s146 = scalar_select %p145, %s19, 0
        %s147 = smul.addr %s146, 4
        %s148 = scalar_lea.vmem %s1, %s147
      $region16: #{tpu_custom_call.1} parent=11 // pred_fallthru
        _
      // Predicated region
      $region17: #{tpu_custom_call.1} parent=11 // pred_check
        %p149 = pneg %p99
      $region18: #{tpu_custom_call.1} parent=11 // pred_check_branch
        %151 = sbr.rel (%p149) target = $region20
      $region19: #{tpu_custom_call.1} parent=11 // pred_region
        %p152 = scmp.lt.s32.totalorder %s19, 0
        %s153 = scalar_select %p152, %s19, 0
        %s154 = scalar_lea.vmem %s2, %s153
      $region20: #{tpu_custom_call.1} parent=11 // pred_fallthru
        _
    $region12: #{tpu_custom_call.1} parent=5 // pred_fallthru
      _
    %p155 = scmp.lt.s32.totalorder %s9, 2
    // Predicated region
    $region21: #{tpu_custom_call.1} parent=5 // pred_check
      %p156 = pneg %p155
    $region22: #{tpu_custom_call.1} parent=5 // pred_check_branch
      %158 = sbr.rel (%p156) target = $region24
    $region23: #{tpu_custom_call.1} parent=5 // pred_region
      // Predicated region
      $region25: #{tpu_custom_call.1} parent=23 // pred_check
        %p159 = pneg %p41
      $region26: #{tpu_custom_call.1} parent=23 // pred_check_branch
        %161 = sbr.rel (%p159) target = $region28
      $region27: #{tpu_custom_call.1} parent=23 // pred_region
        %p162 = scmp.lt.s32.totalorder %s16, 1
        %s163 = scalar_select %p162, %s16, 1
        %s164 = smul.addr %s163, 32
        %s165 = smul.addr %s164, 8
        %s166 = scalar_lea.vmem %s0, %s165
      $region28: #{tpu_custom_call.1} parent=23 // pred_fallthru
        _
    $region24: #{tpu_custom_call.1} parent=5 // pred_fallthru
      _
    %p167 = scmp.le.s32.totalorder 1, %s9
    %p168 = scmp.lt.s32.totalorder %s9, 3
    %p169 = pnand %p167, %p168
    %p170 = pneg %p169
    // Predicated region
    $region29: #{tpu_custom_call.1} parent=5 // pred_check
      _
    $region30: #{tpu_custom_call.1} parent=5 // pred_check_branch
      %172 = sbr.rel (%p169) target = $region32
    $region31: #{tpu_custom_call.1} parent=5 // pred_region
      %s173 = ssub.s32 %s9, 1
      %p174 = scmp.lt.s32.totalorder %s18, 1
      %s175 = scalar_select %p174, %s18, 1
      %s176 = smul.addr %s175, 32
      %s177 = smul.addr %s176, 8
      %s178 = scalar_lea.vmem %s0, %s177
      %p179 = pneg %p47
      %p180 = pneg %p44
      %p181 = scmp.lt.s32.totalorder %s19, 0
      %s182 = scalar_select %p181, %s19, 0
      %s183 = smul.addr %s182, 4
      %s184 = scalar_lea.vmem %s1, %s183
      %p185 = pneg %p73
      %p186 = pneg %p70
      %p187 = scmp.lt.s32.totalorder %s19, 0
      %s188 = scalar_select %p187, %s19, 0
      %s189 = scalar_lea.vmem %s2, %s188
      %p190 = pneg %p99
      %p191 = pneg %p96
      %p192 = pneg %p127
      %p193 = pneg %p124
      %p194 = scmp.lt.s32.totalorder %s18, 1
      %s195 = scalar_select %p194, %s18, 1
      %p196 = scmp.lt.s32.totalorder %s19, 0
      %s197 = scalar_select %p196, %s19, 0
      %s198 = smul.addr %s195, 32
      %s199 = sadd.s32 %s197, %s198
      %s200 = smul.addr %s199, 8
      %s201 = scalar_lea.vmem %s3, %s200
      %p202 = scmp.lt.s32.totalorder %s18, 1
      %s203 = scalar_select %p202, %s18, 1
      %s204 = smul.addr %s203, 32
      %s205 = smul.addr %s204, 8
      %s206 = scalar_lea.vmem %s0, %s205
      %p207 = scmp.lt.s32.totalorder %s19, 0
      %s208 = scalar_select %p207, %s19, 0
      %s209 = smul.addr %s208, 4
      %s210 = scalar_lea.vmem %s1, %s209
      %p211 = scmp.lt.s32.totalorder %s19, 0
      %s212 = scalar_select %p211, %s19, 0
      %s213 = scalar_lea.vmem %s2, %s212
      %p214 = scmp.lt.s32.totalorder %s18, 1
      %s215 = scalar_select %p214, %s18, 1
      %p216 = scmp.lt.s32.totalorder %s19, 0
      %s217 = scalar_select %p216, %s19, 0
      %s218 = smul.addr %s215, 32
      %s219 = sadd.s32 %s217, %s218
      %s220 = smul.addr %s219, 8
      %s221 = scalar_lea.vmem %s3, %s220
      %vm222 = vcmask 23552
      %223 = vst.msk [vmem:[#allocation2] sm:$0xff] %vm222, 0.0
      %224 = vst.msk [vmem:[#allocation2 + $0x8] sm:$0xff] %vm222, 0.0
      %225 = vst.msk [vmem:[#allocation2 + $0x10] sm:$0xff] %vm222, 0.0
      %226 = vst.msk [vmem:[#allocation2 + $0x18] sm:$0xff] %vm222, 0.0
      %227 = vst.msk [vmem:[#allocation2 + $0x20] sm:$0xff] %vm222, 0.0
      %228 = vst.msk [vmem:[#allocation2 + $0x28] sm:$0xff] %vm222, 0.0
      %229 = vst.msk [vmem:[#allocation2 + $0x30] sm:$0xff] %vm222, 0.0
      %230 = vst.msk [vmem:[#allocation2 + $0x38] sm:$0xff] %vm222, 0.0
      %231 = vst.msk [vmem:[#allocation2 + $0x40] sm:$0xff] %vm222, 0.0
      %232 = vst.msk [vmem:[#allocation2 + $0x48] sm:$0xff] %vm222, 0.0
      %233 = vst.msk [vmem:[#allocation2 + $0x50] sm:$0xff] %vm222, 0.0
      %234 = vst.msk [vmem:[#allocation2 + $0x58] sm:$0xff] %vm222, 0.0
      %235 = vst.msk [vmem:[#allocation2 + $0x60] sm:$0xff] %vm222, 0.0
      %236 = vst.msk [vmem:[#allocation2 + $0x68] sm:$0xff] %vm222, 0.0
      %237 = vst.msk [vmem:[#allocation2 + $0x70] sm:$0xff] %vm222, 0.0
      %238 = vst.msk [vmem:[#allocation2 + $0x78] sm:$0xff] %vm222, 0.0
      %239 = vst.msk [vmem:[#allocation2 + $0x80] sm:$0xff] %vm222, 0.0
      %240 = vst.msk [vmem:[#allocation2 + $0x88] sm:$0xff] %vm222, 0.0
      %241 = vst.msk [vmem:[#allocation2 + $0x90] sm:$0xff] %vm222, 0.0
      %242 = vst.msk [vmem:[#allocation2 + $0x98] sm:$0xff] %vm222, 0.0
      %243 = vst.msk [vmem:[#allocation2 + $0xa0] sm:$0xff] %vm222, 0.0
      %244 = vst.msk [vmem:[#allocation2 + $0xa8] sm:$0xff] %vm222, 0.0
      %245 = vst.msk [vmem:[#allocation2 + $0xb0] sm:$0xff] %vm222, 0.0
      %246 = vst.msk [vmem:[#allocation2 + $0xb8] sm:$0xff] %vm222, 0.0
      %247 = vst.msk [vmem:[#allocation2 + $0xc0] sm:$0xff] %vm222, 0.0
      %248 = vst.msk [vmem:[#allocation2 + $0xc8] sm:$0xff] %vm222, 0.0
      %249 = vst.msk [vmem:[#allocation2 + $0xd0] sm:$0xff] %vm222, 0.0
      %250 = vst.msk [vmem:[#allocation2 + $0xd8] sm:$0xff] %vm222, 0.0
      %251 = vst.msk [vmem:[#allocation2 + $0xe0] sm:$0xff] %vm222, 0.0
      %252 = vst.msk [vmem:[#allocation2 + $0xe8] sm:$0xff] %vm222, 0.0
      %253 = vst.msk [vmem:[#allocation2 + $0xf0] sm:$0xff] %vm222, 0.0
      %254 = vst.msk [vmem:[#allocation2 + $0xf8] sm:$0xff] %vm222, 0.0
      %255 = vst.msk [vmem:[#allocation2 + $0x100] sm:$0xff] %vm222, 0.0
      %256 = vst.msk [vmem:[#allocation2 + $0x108] sm:$0xff] %vm222, 0.0
      %257 = vst.msk [vmem:[#allocation2 + $0x110] sm:$0xff] %vm222, 0.0
      %258 = vst.msk [vmem:[#allocation2 + $0x118] sm:$0xff] %vm222, 0.0
      %259 = vst.msk [vmem:[#allocation2 + $0x120] sm:$0xff] %vm222, 0.0
      %260 = vst.msk [vmem:[#allocation2 + $0x128] sm:$0xff] %vm222, 0.0
      %v261 = vld [vmem:[%s206] sm:$0xff]
      %v262 = vld [vmem:[%s206 + $0x8] sm:$0xff]
      %v263 = vld [vmem:[%s206 + $0x10] sm:$0xff]
      %v264 = vld [vmem:[%s206 + $0x18] sm:$0xff]
      %v265 = vld [vmem:[%s206 + $0x20] sm:$0xff]
      %v266 = vld [vmem:[%s206 + $0x28] sm:$0xff]
      %v267 = vld [vmem:[%s206 + $0x30] sm:$0xff]
      %v268 = vld [vmem:[%s206 + $0x38] sm:$0xff]
      %v269 = vld [vmem:[%s206 + $0x40] sm:$0xff]
      %v270 = vld [vmem:[%s206 + $0x48] sm:$0xff]
      %v271 = vld [vmem:[%s206 + $0x50] sm:$0xff]
      %v272 = vld [vmem:[%s206 + $0x58] sm:$0xff]
      %v273 = vld [vmem:[%s206 + $0x60] sm:$0xff]
      %v274 = vld [vmem:[%s206 + $0x68] sm:$0xff]
      %v275 = vld [vmem:[%s206 + $0x70] sm:$0xff]
      %v276 = vld [vmem:[%s206 + $0x78] sm:$0xff]
      %v277 = vld [vmem:[%s206 + $0x80] sm:$0xff]
      %v278 = vld [vmem:[%s206 + $0x88] sm:$0xff]
      %v279 = vld [vmem:[%s206 + $0x90] sm:$0xff]
      %v280 = vld [vmem:[%s206 + $0x98] sm:$0xff]
      %v281 = vld [vmem:[%s206 + $0xa0] sm:$0xff]
      %v282 = vld [vmem:[%s206 + $0xa8] sm:$0xff]
      %v283 = vld [vmem:[%s206 + $0xb0] sm:$0xff]
      %v284 = vld [vmem:[%s206 + $0xb8] sm:$0xff]
      %v285 = vld [vmem:[%s206 + $0xc0] sm:$0xff]
      %v286 = vld [vmem:[%s206 + $0xc8] sm:$0xff]
      %v287 = vld [vmem:[%s206 + $0xd0] sm:$0xff]
      %v288 = vld [vmem:[%s206 + $0xd8] sm:$0xff]
      %v289 = vld [vmem:[%s206 + $0xe0] sm:$0xff]
      %v290 = vld [vmem:[%s206 + $0xe8] sm:$0xff]
      %v291 = vld [vmem:[%s206 + $0xf0] sm:$0xff]
      %v292 = vld [vmem:[%s206 + $0xf8] sm:$0xff]
      %293 = vst.msk [vmem:[#allocation2 + $0x18] sm:$0xff] %vm222, %v261
      %294 = vst.msk [vmem:[#allocation2 + $0x20] sm:$0xff] %vm222, %v262
      %295 = vst.msk [vmem:[#allocation2 + $0x28] sm:$0xff] %vm222, %v263
      %296 = vst.msk [vmem:[#allocation2 + $0x30] sm:$0xff] %vm222, %v264
      %297 = vst.msk [vmem:[#allocation2 + $0x38] sm:$0xff] %vm222, %v265
      %298 = vst.msk [vmem:[#allocation2 + $0x40] sm:$0xff] %vm222, %v266
      %299 = vst.msk [vmem:[#allocation2 + $0x48] sm:$0xff] %vm222, %v267
      %300 = vst.msk [vmem:[#allocation2 + $0x50] sm:$0xff] %vm222, %v268
      %301 = vst.msk [vmem:[#allocation2 + $0x58] sm:$0xff] %vm222, %v269
      %302 = vst.msk [vmem:[#allocation2 + $0x60] sm:$0xff] %vm222, %v270
      %303 = vst.msk [vmem:[#allocation2 + $0x68] sm:$0xff] %vm222, %v271
      %304 = vst.msk [vmem:[#allocation2 + $0x70] sm:$0xff] %vm222, %v272
      %305 = vst.msk [vmem:[#allocation2 + $0x78] sm:$0xff] %vm222, %v273
      %306 = vst.msk [vmem:[#allocation2 + $0x80] sm:$0xff] %vm222, %v274
      %307 = vst.msk [vmem:[#allocation2 + $0x88] sm:$0xff] %vm222, %v275
      %308 = vst.msk [vmem:[#allocation2 + $0x90] sm:$0xff] %vm222, %v276
      %309 = vst.msk [vmem:[#allocation2 + $0x98] sm:$0xff] %vm222, %v277
      %310 = vst.msk [vmem:[#allocation2 + $0xa0] sm:$0xff] %vm222, %v278
      %311 = vst.msk [vmem:[#allocation2 + $0xa8] sm:$0xff] %vm222, %v279
      %312 = vst.msk [vmem:[#allocation2 + $0xb0] sm:$0xff] %vm222, %v280
      %313 = vst.msk [vmem:[#allocation2 + $0xb8] sm:$0xff] %vm222, %v281
      %314 = vst.msk [vmem:[#allocation2 + $0xc0] sm:$0xff] %vm222, %v282
      %315 = vst.msk [vmem:[#allocation2 + $0xc8] sm:$0xff] %vm222, %v283
      %316 = vst.msk [vmem:[#allocation2 + $0xd0] sm:$0xff] %vm222, %v284
      %317 = vst.msk [vmem:[#allocation2 + $0xd8] sm:$0xff] %vm222, %v285
      %318 = vst.msk [vmem:[#allocation2 + $0xe0] sm:$0xff] %vm222, %v286
      %319 = vst.msk [vmem:[#allocation2 + $0xe8] sm:$0xff] %vm222, %v287
      %320 = vst.msk [vmem:[#allocation2 + $0xf0] sm:$0xff] %vm222, %v288
      %321 = vst.msk [vmem:[#allocation2 + $0xf8] sm:$0xff] %vm222, %v289
      %322 = vst.msk [vmem:[#allocation2 + $0x100] sm:$0xff] %vm222, %v290
      %323 = vst.msk [vmem:[#allocation2 + $0x108] sm:$0xff] %vm222, %v291
      %324 = vst.msk [vmem:[#allocation2 + $0x110] sm:$0xff] %vm222, %v292
      %v325 = vlaneseq
      %v326 = vshrl.u32 %v325, 7
      %v327 = vadd.s32 %v326, 8
      %v328 = vadd.s32 %v326, 16
      %v329 = vadd.s32 %v326, 24
      %v330 = vadd.s32 %v326, 32
      %v331 = vadd.s32 %v326, 40
      %v332 = vadd.s32 %v326, 48
      %v333 = vadd.s32 %v326, 56
      %v334 = vadd.s32 %v326, 64
      %v335 = vadd.s32 %v326, 72
      %v336 = vadd.s32 %v326, 80
      %v337 = vadd.s32 %v326, 88
      %v338 = vadd.s32 %v326, 96
      %v339 = vadd.s32 %v326, 104
      %v340 = vadd.s32 %v326, 112
      %v341 = vadd.s32 %v326, 120
      %v342 = vadd.s32 %v326, 128
      %v343 = vadd.s32 %v326, 136
      %v344 = vadd.s32 %v326, 144
      %v345 = vadd.s32 %v326, 152
      %v346 = vadd.s32 %v326, 160
      %v347 = vadd.s32 %v326, 168
      %v348 = vadd.s32 %v326, 176
      %v349 = vadd.s32 %v326, 184
      %v350 = vadd.s32 %v326, 192
      %v351 = vadd.s32 %v326, 200
      %v352 = vadd.s32 %v326, 208
      %v353 = vadd.s32 %v326, 216
      %v354 = vadd.s32 %v326, 224
      %v355 = vadd.s32 %v326, 232
      %v356 = vadd.s32 %v326, 240
      %v357 = vadd.s32 %v326, 248
      %vm358 = vcmp.lt.s32.totalorder %v326, 0
      %v359 = vsub.s32 0, %v326
      %v360 = vsel %vm358, %v359, %v326
      %v361 = vshrl.u32 %v360, 4
      %v362 = vand.u32 %v360, 15
      %v363 = vsub.s32 0, %v362
      %v364 = vsel %vm358, %v363, %v362
      %vm365 = vcmp.lt.s32.totalorder %v327, 0
      %v366 = vsub.s32 0, %v327
      %v367 = vsel %vm365, %v366, %v327
      %v368 = vshrl.u32 %v367, 4
      %v369 = vand.u32 %v367, 15
      %v370 = vsub.s32 0, %v369
      %v371 = vsel %vm365, %v370, %v369
      %vm372 = vcmp.lt.s32.totalorder %v328, 0
      %v373 = vsub.s32 0, %v328
      %v374 = vsel %vm372, %v373, %v328
      %v375 = vshrl.u32 %v374, 4
      %v376 = vand.u32 %v374, 15
      %v377 = vsub.s32 0, %v376
      %v378 = vsel %vm372, %v377, %v376
      %vm379 = vcmp.lt.s32.totalorder %v329, 0
      %v380 = vsub.s32 0, %v329
      %v381 = vsel %vm379, %v380, %v329
      %v382 = vshrl.u32 %v381, 4
      %v383 = vand.u32 %v381, 15
      %v384 = vsub.s32 0, %v383
      %v385 = vsel %vm379, %v384, %v383
      %vm386 = vcmp.lt.s32.totalorder %v330, 0
      %v387 = vsub.s32 0, %v330
      %v388 = vsel %vm386, %v387, %v330
      %v389 = vshrl.u32 %v388, 4
      %v390 = vand.u32 %v388, 15
      %v391 = vsub.s32 0, %v390
      %v392 = vsel %vm386, %v391, %v390
      %vm393 = vcmp.lt.s32.totalorder %v331, 0
      %v394 = vsub.s32 0, %v331
      %v395 = vsel %vm393, %v394, %v331
      %v396 = vshrl.u32 %v395, 4
      %v397 = vand.u32 %v395, 15
      %v398 = vsub.s32 0, %v397
      %v399 = vsel %vm393, %v398, %v397
      %vm400 = vcmp.lt.s32.totalorder %v332, 0
      %v401 = vsub.s32 0, %v332
      %v402 = vsel %vm400, %v401, %v332
      %v403 = vshrl.u32 %v402, 4
      %v404 = vand.u32 %v402, 15
      %v405 = vsub.s32 0, %v404
      %v406 = vsel %vm400, %v405, %v404
      %vm407 = vcmp.lt.s32.totalorder %v333, 0
      %v408 = vsub.s32 0, %v333
      %v409 = vsel %vm407, %v408, %v333
      %v410 = vshrl.u32 %v409, 4
      %v411 = vand.u32 %v409, 15
      %v412 = vsub.s32 0, %v411
      %v413 = vsel %vm407, %v412, %v411
      %vm414 = vcmp.lt.s32.totalorder %v334, 0
      %v415 = vsub.s32 0, %v334
      %v416 = vsel %vm414, %v415, %v334
      %v417 = vshrl.u32 %v416, 4
      %v418 = vand.u32 %v416, 15
      %v419 = vsub.s32 0, %v418
      %v420 = vsel %vm414, %v419, %v418
      %vm421 = vcmp.lt.s32.totalorder %v335, 0
      %v422 = vsub.s32 0, %v335
      %v423 = vsel %vm421, %v422, %v335
      %v424 = vshrl.u32 %v423, 4
      %v425 = vand.u32 %v423, 15
      %v426 = vsub.s32 0, %v425
      %v427 = vsel %vm421, %v426, %v425
      %vm428 = vcmp.lt.s32.totalorder %v336, 0
      %v429 = vsub.s32 0, %v336
      %v430 = vsel %vm428, %v429, %v336
      %v431 = vshrl.u32 %v430, 4
      %v432 = vand.u32 %v430, 15
      %v433 = vsub.s32 0, %v432
      %v434 = vsel %vm428, %v433, %v432
      %vm435 = vcmp.lt.s32.totalorder %v337, 0
      %v436 = vsub.s32 0, %v337
      %v437 = vsel %vm435, %v436, %v337
      %v438 = vshrl.u32 %v437, 4
      %v439 = vand.u32 %v437, 15
      %v440 = vsub.s32 0, %v439
      %v441 = vsel %vm435, %v440, %v439
      %vm442 = vcmp.lt.s32.totalorder %v338, 0
      %v443 = vsub.s32 0, %v338
      %v444 = vsel %vm442, %v443, %v338
      %v445 = vshrl.u32 %v444, 4
      %v446 = vand.u32 %v444, 15
      %v447 = vsub.s32 0, %v446
      %v448 = vsel %vm442, %v447, %v446
      %vm449 = vcmp.lt.s32.totalorder %v339, 0
      %v450 = vsub.s32 0, %v339
      %v451 = vsel %vm449, %v450, %v339
      %v452 = vshrl.u32 %v451, 4
      %v453 = vand.u32 %v451, 15
      %v454 = vsub.s32 0, %v453
      %v455 = vsel %vm449, %v454, %v453
      %vm456 = vcmp.lt.s32.totalorder %v340, 0
      %v457 = vsub.s32 0, %v340
      %v458 = vsel %vm456, %v457, %v340
      %v459 = vshrl.u32 %v458, 4
      %v460 = vand.u32 %v458, 15
      %v461 = vsub.s32 0, %v460
      %v462 = vsel %vm456, %v461, %v460
      %vm463 = vcmp.lt.s32.totalorder %v341, 0
      %v464 = vsub.s32 0, %v341
      %v465 = vsel %vm463, %v464, %v341
      %v466 = vshrl.u32 %v465, 4
      %v467 = vand.u32 %v465, 15
      %v468 = vsub.s32 0, %v467
      %v469 = vsel %vm463, %v468, %v467
      %vm470 = vcmp.lt.s32.totalorder %v342, 0
      %v471 = vsub.s32 0, %v342
      %v472 = vsel %vm470, %v471, %v342
      %v473 = vshrl.u32 %v472, 4
      %v474 = vand.u32 %v472, 15
      %v475 = vsub.s32 0, %v474
      %v476 = vsel %vm470, %v475, %v474
      %vm477 = vcmp.lt.s32.totalorder %v343, 0
      %v478 = vsub.s32 0, %v343
      %v479 = vsel %vm477, %v478, %v343
      %v480 = vshrl.u32 %v479, 4
      %v481 = vand.u32 %v479, 15
      %v482 = vsub.s32 0, %v481
      %v483 = vsel %vm477, %v482, %v481
      %vm484 = vcmp.lt.s32.totalorder %v344, 0
      %v485 = vsub.s32 0, %v344
      %v486 = vsel %vm484, %v485, %v344
      %v487 = vshrl.u32 %v486, 4
      %v488 = vand.u32 %v486, 15
      %v489 = vsub.s32 0, %v488
      %v490 = vsel %vm484, %v489, %v488
      %vm491 = vcmp.lt.s32.totalorder %v345, 0
      %v492 = vsub.s32 0, %v345
      %v493 = vsel %vm491, %v492, %v345
      %v494 = vshrl.u32 %v493, 4
      %v495 = vand.u32 %v493, 15
      %v496 = vsub.s32 0, %v495
      %v497 = vsel %vm491, %v496, %v495
      %vm498 = vcmp.lt.s32.totalorder %v346, 0
      %v499 = vsub.s32 0, %v346
      %v500 = vsel %vm498, %v499, %v346
      %v501 = vshrl.u32 %v500, 4
      %v502 = vand.u32 %v500, 15
      %v503 = vsub.s32 0, %v502
      %v504 = vsel %vm498, %v503, %v502
      %vm505 = vcmp.lt.s32.totalorder %v347, 0
      %v506 = vsub.s32 0, %v347
      %v507 = vsel %vm505, %v506, %v347
      %v508 = vshrl.u32 %v507, 4
      %v509 = vand.u32 %v507, 15
      %v510 = vsub.s32 0, %v509
      %v511 = vsel %vm505, %v510, %v509
      %vm512 = vcmp.lt.s32.totalorder %v348, 0
      %v513 = vsub.s32 0, %v348
      %v514 = vsel %vm512, %v513, %v348
      %v515 = vshrl.u32 %v514, 4
      %v516 = vand.u32 %v514, 15
      %v517 = vsub.s32 0, %v516
      %v518 = vsel %vm512, %v517, %v516
      %vm519 = vcmp.lt.s32.totalorder %v349, 0
      %v520 = vsub.s32 0, %v349
      %v521 = vsel %vm519, %v520, %v349
      %v522 = vshrl.u32 %v521, 4
      %v523 = vand.u32 %v521, 15
      %v524 = vsub.s32 0, %v523
      %v525 = vsel %vm519, %v524, %v523
      %vm526 = vcmp.lt.s32.totalorder %v350, 0
      %v527 = vsub.s32 0, %v350
      %v528 = vsel %vm526, %v527, %v350
      %v529 = vshrl.u32 %v528, 4
      %v530 = vand.u32 %v528, 15
      %v531 = vsub.s32 0, %v530
      %v532 = vsel %vm526, %v531, %v530
      %vm533 = vcmp.lt.s32.totalorder %v351, 0
      %v534 = vsub.s32 0, %v351
      %v535 = vsel %vm533, %v534, %v351
      %v536 = vshrl.u32 %v535, 4
      %v537 = vand.u32 %v535, 15
      %v538 = vsub.s32 0, %v537
      %v539 = vsel %vm533, %v538, %v537
      %vm540 = vcmp.lt.s32.totalorder %v352, 0
      %v541 = vsub.s32 0, %v352
      %v542 = vsel %vm540, %v541, %v352
      %v543 = vshrl.u32 %v542, 4
      %v544 = vand.u32 %v542, 15
      %v545 = vsub.s32 0, %v544
      %v546 = vsel %vm540, %v545, %v544
      %vm547 = vcmp.lt.s32.totalorder %v353, 0
      %v548 = vsub.s32 0, %v353
      %v549 = vsel %vm547, %v548, %v353
      %v550 = vshrl.u32 %v549, 4
      %v551 = vand.u32 %v549, 15
      %v552 = vsub.s32 0, %v551
      %v553 = vsel %vm547, %v552, %v551
      %vm554 = vcmp.lt.s32.totalorder %v354, 0
      %v555 = vsub.s32 0, %v354
      %v556 = vsel %vm554, %v555, %v354
      %v557 = vshrl.u32 %v556, 4
      %v558 = vand.u32 %v556, 15
      %v559 = vsub.s32 0, %v558
      %v560 = vsel %vm554, %v559, %v558
      %vm561 = vcmp.lt.s32.totalorder %v355, 0
      %v562 = vsub.s32 0, %v355
      %v563 = vsel %vm561, %v562, %v355
      %v564 = vshrl.u32 %v563, 4
      %v565 = vand.u32 %v563, 15
      %v566 = vsub.s32 0, %v565
      %v567 = vsel %vm561, %v566, %v565
      %vm568 = vcmp.lt.s32.totalorder %v356, 0
      %v569 = vsub.s32 0, %v356
      %v570 = vsel %vm568, %v569, %v356
      %v571 = vshrl.u32 %v570, 4
      %v572 = vand.u32 %v570, 15
      %v573 = vsub.s32 0, %v572
      %v574 = vsel %vm568, %v573, %v572
      %vm575 = vcmp.lt.s32.totalorder %v357, 0
      %v576 = vsub.s32 0, %v357
      %v577 = vsel %vm575, %v576, %v357
      %v578 = vshrl.u32 %v577, 4
      %v579 = vand.u32 %v577, 15
      %v580 = vsub.s32 0, %v579
      %v581 = vsel %vm575, %v580, %v579
      %vm582 = vcmp.ne.s32.totalorder %v364, 0
      %vm583 = vcmp.ne.s32.totalorder %v371, 0
      %vm584 = vcmp.ne.s32.totalorder %v378, 0
      %vm585 = vcmp.ne.s32.totalorder %v385, 0
      %vm586 = vcmp.ne.s32.totalorder %v392, 0
      %vm587 = vcmp.ne.s32.totalorder %v399, 0
      %vm588 = vcmp.ne.s32.totalorder %v406, 0
      %vm589 = vcmp.ne.s32.totalorder %v413, 0
      %vm590 = vcmp.ne.s32.totalorder %v420, 0
      %vm591 = vcmp.ne.s32.totalorder %v427, 0
      %vm592 = vcmp.ne.s32.totalorder %v434, 0
      %vm593 = vcmp.ne.s32.totalorder %v441, 0
      %vm594 = vcmp.ne.s32.totalorder %v448, 0
      %vm595 = vcmp.ne.s32.totalorder %v455, 0
      %vm596 = vcmp.ne.s32.totalorder %v462, 0
      %vm597 = vcmp.ne.s32.totalorder %v469, 0
      %vm598 = vcmp.ne.s32.totalorder %v476, 0
      %vm599 = vcmp.ne.s32.totalorder %v483, 0
      %vm600 = vcmp.ne.s32.totalorder %v490, 0
      %vm601 = vcmp.ne.s32.totalorder %v497, 0
      %vm602 = vcmp.ne.s32.totalorder %v504, 0
      %vm603 = vcmp.ne.s32.totalorder %v511, 0
      %vm604 = vcmp.ne.s32.totalorder %v518, 0
      %vm605 = vcmp.ne.s32.totalorder %v525, 0
      %vm606 = vcmp.ne.s32.totalorder %v532, 0
      %vm607 = vcmp.ne.s32.totalorder %v539, 0
      %vm608 = vcmp.ne.s32.totalorder %v546, 0
      %vm609 = vcmp.ne.s32.totalorder %v553, 0
      %vm610 = vcmp.ne.s32.totalorder %v560, 0
      %vm611 = vcmp.ne.s32.totalorder %v567, 0
      %vm612 = vcmp.ne.s32.totalorder %v574, 0
      %vm613 = vcmp.ne.s32.totalorder %v581, 0
      %vm614 = vcmp.lt.s32.totalorder %v364, 0
      %vm615 = vcmp.lt.s32.totalorder %v371, 0
      %vm616 = vcmp.lt.s32.totalorder %v378, 0
      %vm617 = vcmp.lt.s32.totalorder %v385, 0
      %vm618 = vcmp.lt.s32.totalorder %v392, 0
      %vm619 = vcmp.lt.s32.totalorder %v399, 0
      %vm620 = vcmp.lt.s32.totalorder %v406, 0
      %vm621 = vcmp.lt.s32.totalorder %v413, 0
      %vm622 = vcmp.lt.s32.totalorder %v420, 0
      %vm623 = vcmp.lt.s32.totalorder %v427, 0
      %vm624 = vcmp.lt.s32.totalorder %v434, 0
      %vm625 = vcmp.lt.s32.totalorder %v441, 0
      %vm626 = vcmp.lt.s32.totalorder %v448, 0
      %vm627 = vcmp.lt.s32.totalorder %v455, 0
      %vm628 = vcmp.lt.s32.totalorder %v462, 0
      %vm629 = vcmp.lt.s32.totalorder %v469, 0
      %vm630 = vcmp.lt.s32.totalorder %v476, 0
      %vm631 = vcmp.lt.s32.totalorder %v483, 0
      %vm632 = vcmp.lt.s32.totalorder %v490, 0
      %vm633 = vcmp.lt.s32.totalorder %v497, 0
      %vm634 = vcmp.lt.s32.totalorder %v504, 0
      %vm635 = vcmp.lt.s32.totalorder %v511, 0
      %vm636 = vcmp.lt.s32.totalorder %v518, 0
      %vm637 = vcmp.lt.s32.totalorder %v525, 0
      %vm638 = vcmp.lt.s32.totalorder %v532, 0
      %vm639 = vcmp.lt.s32.totalorder %v539, 0
      %vm640 = vcmp.lt.s32.totalorder %v546, 0
      %vm641 = vcmp.lt.s32.totalorder %v553, 0
      %vm642 = vcmp.lt.s32.totalorder %v560, 0
      %vm643 = vcmp.lt.s32.totalorder %v567, 0
      %vm644 = vcmp.lt.s32.totalorder %v574, 0
      %vm645 = vcmp.lt.s32.totalorder %v581, 0
      %vm646 = vmand %vm614, %vm582
      %vm647 = vmand %vm615, %vm583
      %vm648 = vmand %vm616, %vm584
      %vm649 = vmand %vm617, %vm585
      %vm650 = vmand %vm618, %vm586
      %vm651 = vmand %vm619, %vm587
      %vm652 = vmand %vm620, %vm588
      %vm653 = vmand %vm621, %vm589
      %vm654 = vmand %vm622, %vm590
      %vm655 = vmand %vm623, %vm591
      %vm656 = vmand %vm624, %vm592
      %vm657 = vmand %vm625, %vm593
      %vm658 = vmand %vm626, %vm594
      %vm659 = vmand %vm627, %vm595
      %vm660 = vmand %vm628, %vm596
      %vm661 = vmand %vm629, %vm597
      %vm662 = vmand %vm630, %vm598
      %vm663 = vmand %vm631, %vm599
      %vm664 = vmand %vm632, %vm600
      %vm665 = vmand %vm633, %vm601
      %vm666 = vmand %vm634, %vm602
      %vm667 = vmand %vm635, %vm603
      %vm668 = vmand %vm636, %vm604
      %vm669 = vmand %vm637, %vm605
      %vm670 = vmand %vm638, %vm606
      %vm671 = vmand %vm639, %vm607
      %vm672 = vmand %vm640, %vm608
      %vm673 = vmand %vm641, %vm609
      %vm674 = vmand %vm642, %vm610
      %vm675 = vmand %vm643, %vm611
      %vm676 = vmand %vm644, %vm612
      %vm677 = vmand %vm645, %vm613
      %v678 = vadd.s32 %v364, 16
      %v679 = vadd.s32 %v371, 16
      %v680 = vadd.s32 %v378, 16
      %v681 = vadd.s32 %v385, 16
      %v682 = vadd.s32 %v392, 16
      %v683 = vadd.s32 %v399, 16
      %v684 = vadd.s32 %v406, 16
      %v685 = vadd.s32 %v413, 16
      %v686 = vadd.s32 %v420, 16
      %v687 = vadd.s32 %v427, 16
      %v688 = vadd.s32 %v434, 16
      %v689 = vadd.s32 %v441, 16
      %v690 = vadd.s32 %v448, 16
      %v691 = vadd.s32 %v455, 16
      %v692 = vadd.s32 %v462, 16
      %v693 = vadd.s32 %v469, 16
      %v694 = vadd.s32 %v476, 16
      %v695 = vadd.s32 %v483, 16
      %v696 = vadd.s32 %v490, 16
      %v697 = vadd.s32 %v497, 16
      %v698 = vadd.s32 %v504, 16
      %v699 = vadd.s32 %v511, 16
      %v700 = vadd.s32 %v518, 16
      %v701 = vadd.s32 %v525, 16
      %v702 = vadd.s32 %v532, 16
      %v703 = vadd.s32 %v539, 16
      %v704 = vadd.s32 %v546, 16
      %v705 = vadd.s32 %v553, 16
      %v706 = vadd.s32 %v560, 16
      %v707 = vadd.s32 %v567, 16
      %v708 = vadd.s32 %v574, 16
      %v709 = vadd.s32 %v581, 16
      %v710 = vsel %vm646, %v678, %v364
      %v711 = vsel %vm647, %v679, %v371
      %v712 = vsel %vm648, %v680, %v378
      %v713 = vsel %vm649, %v681, %v385
      %v714 = vsel %vm650, %v682, %v392
      %v715 = vsel %vm651, %v683, %v399
      %v716 = vsel %vm652, %v684, %v406
      %v717 = vsel %vm653, %v685, %v413
      %v718 = vsel %vm654, %v686, %v420
      %v719 = vsel %vm655, %v687, %v427
      %v720 = vsel %vm656, %v688, %v434
      %v721 = vsel %vm657, %v689, %v441
      %v722 = vsel %vm658, %v690, %v448
      %v723 = vsel %vm659, %v691, %v455
      %v724 = vsel %vm660, %v692, %v462
      %v725 = vsel %vm661, %v693, %v469
      %v726 = vsel %vm662, %v694, %v476
      %v727 = vsel %vm663, %v695, %v483
      %v728 = vsel %vm664, %v696, %v490
      %v729 = vsel %vm665, %v697, %v497
      %v730 = vsel %vm666, %v698, %v504
      %v731 = vsel %vm667, %v699, %v511
      %v732 = vsel %vm668, %v700, %v518
      %v733 = vsel %vm669, %v701, %v525
      %v734 = vsel %vm670, %v702, %v532
      %v735 = vsel %vm671, %v703, %v539
      %v736 = vsel %vm672, %v704, %v546
      %v737 = vsel %vm673, %v705, %v553
      %v738 = vsel %vm674, %v706, %v560
      %v739 = vsel %vm675, %v707, %v567
      %v740 = vsel %vm676, %v708, %v574
      %v741 = vsel %vm677, %v709, %v581
      %vm742 = vcmp.ne.s32.totalorder %v710, 0
      %vm743 = vcmp.ne.s32.totalorder %v711, 0
      %vm744 = vcmp.ne.s32.totalorder %v712, 0
      %vm745 = vcmp.ne.s32.totalorder %v713, 0
      %vm746 = vcmp.ne.s32.totalorder %v714, 0
      %vm747 = vcmp.ne.s32.totalorder %v715, 0
      %vm748 = vcmp.ne.s32.totalorder %v716, 0
      %vm749 = vcmp.ne.s32.totalorder %v717, 0
      %vm750 = vcmp.ne.s32.totalorder %v718, 0
      %vm751 = vcmp.ne.s32.totalorder %v719, 0
      %vm752 = vcmp.ne.s32.totalorder %v720, 0
      %vm753 = vcmp.ne.s32.totalorder %v721, 0
      %vm754 = vcmp.ne.s32.totalorder %v722, 0
      %vm755 = vcmp.ne.s32.totalorder %v723, 0
      %vm756 = vcmp.ne.s32.totalorder %v724, 0
      %vm757 = vcmp.ne.s32.totalorder %v725, 0
      %vm758 = vcmp.ne.s32.totalorder %v726, 0
      %vm759 = vcmp.ne.s32.totalorder %v727, 0
      %vm760 = vcmp.ne.s32.totalorder %v728, 0
      %vm761 = vcmp.ne.s32.totalorder %v729, 0
      %vm762 = vcmp.ne.s32.totalorder %v730, 0
      %vm763 = vcmp.ne.s32.totalorder %v731, 0
      %vm764 = vcmp.ne.s32.totalorder %v732, 0
      %vm765 = vcmp.ne.s32.totalorder %v733, 0
      %vm766 = vcmp.ne.s32.totalorder %v734, 0
      %vm767 = vcmp.ne.s32.totalorder %v735, 0
      %vm768 = vcmp.ne.s32.totalorder %v736, 0
      %vm769 = vcmp.ne.s32.totalorder %v737, 0
      %vm770 = vcmp.ne.s32.totalorder %v738, 0
      %vm771 = vcmp.ne.s32.totalorder %v739, 0
      %vm772 = vcmp.ne.s32.totalorder %v740, 0
      %vm773 = vcmp.ne.s32.totalorder %v741, 0
      %v774 = vsel %vm742, 1, 0
      %v775 = vsel %vm743, 1, 0
      %v776 = vsel %vm744, 1, 0
      %v777 = vsel %vm745, 1, 0
      %v778 = vsel %vm746, 1, 0
      %v779 = vsel %vm747, 1, 0
      %v780 = vsel %vm748, 1, 0
      %v781 = vsel %vm749, 1, 0
      %v782 = vsel %vm750, 1, 0
      %v783 = vsel %vm751, 1, 0
      %v784 = vsel %vm752, 1, 0
      %v785 = vsel %vm753, 1, 0
      %v786 = vsel %vm754, 1, 0
      %v787 = vsel %vm755, 1, 0
      %v788 = vsel %vm756, 1, 0
      %v789 = vsel %vm757, 1, 0
      %v790 = vsel %vm758, 1, 0
      %v791 = vsel %vm759, 1, 0
      %v792 = vsel %vm760, 1, 0
      %v793 = vsel %vm761, 1, 0
      %v794 = vsel %vm762, 1, 0
      %v795 = vsel %vm763, 1, 0
      %v796 = vsel %vm764, 1, 0
      %v797 = vsel %vm765, 1, 0
      %v798 = vsel %vm766, 1, 0
      %v799 = vsel %vm767, 1, 0
      %v800 = vsel %vm768, 1, 0
      %v801 = vsel %vm769, 1, 0
      %v802 = vsel %vm770, 1, 0
      %v803 = vsel %vm771, 1, 0
      %v804 = vsel %vm772, 1, 0
      %v805 = vsel %vm773, 1, 0
      %v806 = vcvt.s32.f32 %v774
      %v807 = vcvt.s32.f32 %v775
      %v808 = vcvt.s32.f32 %v776
      %v809 = vcvt.s32.f32 %v777
      %v810 = vcvt.s32.f32 %v778
      %v811 = vcvt.s32.f32 %v779
      %v812 = vcvt.s32.f32 %v780
      %v813 = vcvt.s32.f32 %v781
      %v814 = vcvt.s32.f32 %v782
      %v815 = vcvt.s32.f32 %v783
      %v816 = vcvt.s32.f32 %v784
      %v817 = vcvt.s32.f32 %v785
      %v818 = vcvt.s32.f32 %v786
      %v819 = vcvt.s32.f32 %v787
      %v820 = vcvt.s32.f32 %v788
      %v821 = vcvt.s32.f32 %v789
      %v822 = vcvt.s32.f32 %v790
      %v823 = vcvt.s32.f32 %v791
      %v824 = vcvt.s32.f32 %v792
      %v825 = vcvt.s32.f32 %v793
      %v826 = vcvt.s32.f32 %v794
      %v827 = vcvt.s32.f32 %v795
      %v828 = vcvt.s32.f32 %v796
      %v829 = vcvt.s32.f32 %v797
      %v830 = vcvt.s32.f32 %v798
      %v831 = vcvt.s32.f32 %v799
      %v832 = vcvt.s32.f32 %v800
      %v833 = vcvt.s32.f32 %v801
      %v834 = vcvt.s32.f32 %v802
      %v835 = vcvt.s32.f32 %v803
      %v836 = vcvt.s32.f32 %v804
      %v837 = vcvt.s32.f32 %v805
      %vm838 = vcmp.ne.s32.totalorder %v710, 15
      %vm839 = vcmp.ne.s32.totalorder %v711, 15
      %vm840 = vcmp.ne.s32.totalorder %v712, 15
      %vm841 = vcmp.ne.s32.totalorder %v713, 15
      %vm842 = vcmp.ne.s32.totalorder %v714, 15
      %vm843 = vcmp.ne.s32.totalorder %v715, 15
      %vm844 = vcmp.ne.s32.totalorder %v716, 15
      %vm845 = vcmp.ne.s32.totalorder %v717, 15
      %vm846 = vcmp.ne.s32.totalorder %v718, 15
      %vm847 = vcmp.ne.s32.totalorder %v719, 15
      %vm848 = vcmp.ne.s32.totalorder %v720, 15
      %vm849 = vcmp.ne.s32.totalorder %v721, 15
      %vm850 = vcmp.ne.s32.totalorder %v722, 15
      %vm851 = vcmp.ne.s32.totalorder %v723, 15
      %vm852 = vcmp.ne.s32.totalorder %v724, 15
      %vm853 = vcmp.ne.s32.totalorder %v725, 15
      %vm854 = vcmp.ne.s32.totalorder %v726, 15
      %vm855 = vcmp.ne.s32.totalorder %v727, 15
      %vm856 = vcmp.ne.s32.totalorder %v728, 15
      %vm857 = vcmp.ne.s32.totalorder %v729, 15
      %vm858 = vcmp.ne.s32.totalorder %v730, 15
      %vm859 = vcmp.ne.s32.totalorder %v731, 15
      %vm860 = vcmp.ne.s32.totalorder %v732, 15
      %vm861 = vcmp.ne.s32.totalorder %v733, 15
      %vm862 = vcmp.ne.s32.totalorder %v734, 15
      %vm863 = vcmp.ne.s32.totalorder %v735, 15
      %vm864 = vcmp.ne.s32.totalorder %v736, 15
      %vm865 = vcmp.ne.s32.totalorder %v737, 15
      %vm866 = vcmp.ne.s32.totalorder %v738, 15
      %vm867 = vcmp.ne.s32.totalorder %v739, 15
      %vm868 = vcmp.ne.s32.totalorder %v740, 15
      %vm869 = vcmp.ne.s32.totalorder %v741, 15
      %v870 = vsel %vm838, 1, 0
      %v871 = vsel %vm839, 1, 0
      %v872 = vsel %vm840, 1, 0
      %v873 = vsel %vm841, 1, 0
      %v874 = vsel %vm842, 1, 0
      %v875 = vsel %vm843, 1, 0
      %v876 = vsel %vm844, 1, 0
      %v877 = vsel %vm845, 1, 0
      %v878 = vsel %vm846, 1, 0
      %v879 = vsel %vm847, 1, 0
      %v880 = vsel %vm848, 1, 0
      %v881 = vsel %vm849, 1, 0
      %v882 = vsel %vm850, 1, 0
      %v883 = vsel %vm851, 1, 0
      %v884 = vsel %vm852, 1, 0
      %v885 = vsel %vm853, 1, 0
      %v886 = vsel %vm854, 1, 0
      %v887 = vsel %vm855, 1, 0
      %v888 = vsel %vm856, 1, 0
      %v889 = vsel %vm857, 1, 0
      %v890 = vsel %vm858, 1, 0
      %v891 = vsel %vm859, 1, 0
      %v892 = vsel %vm860, 1, 0
      %v893 = vsel %vm861, 1, 0
      %v894 = vsel %vm862, 1, 0
      %v895 = vsel %vm863, 1, 0
      %v896 = vsel %vm864, 1, 0
      %v897 = vsel %vm865, 1, 0
      %v898 = vsel %vm866, 1, 0
      %v899 = vsel %vm867, 1, 0
      %v900 = vsel %vm868, 1, 0
      %v901 = vsel %vm869, 1, 0
      %v902 = vcvt.s32.f32 %v870
      %v903 = vcvt.s32.f32 %v871
      %v904 = vcvt.s32.f32 %v872
      %v905 = vcvt.s32.f32 %v873
      %v906 = vcvt.s32.f32 %v874
      %v907 = vcvt.s32.f32 %v875
      %v908 = vcvt.s32.f32 %v876
      %v909 = vcvt.s32.f32 %v877
      %v910 = vcvt.s32.f32 %v878
      %v911 = vcvt.s32.f32 %v879
      %v912 = vcvt.s32.f32 %v880
      %v913 = vcvt.s32.f32 %v881
      %v914 = vcvt.s32.f32 %v882
      %v915 = vcvt.s32.f32 %v883
      %v916 = vcvt.s32.f32 %v884
      %v917 = vcvt.s32.f32 %v885
      %v918 = vcvt.s32.f32 %v886
      %v919 = vcvt.s32.f32 %v887
      %v920 = vcvt.s32.f32 %v888
      %v921 = vcvt.s32.f32 %v889
      %v922 = vcvt.s32.f32 %v890
      %v923 = vcvt.s32.f32 %v891
      %v924 = vcvt.s32.f32 %v892
      %v925 = vcvt.s32.f32 %v893
      %v926 = vcvt.s32.f32 %v894
      %v927 = vcvt.s32.f32 %v895
      %v928 = vcvt.s32.f32 %v896
      %v929 = vcvt.s32.f32 %v897
      %v930 = vcvt.s32.f32 %v898
      %v931 = vcvt.s32.f32 %v899
      %v932 = vcvt.s32.f32 %v900
      %v933 = vcvt.s32.f32 %v901
      %v934 = vld [vmem:[#allocation2 + $0x7] sm:$0xff]
      %v935 = vld [vmem:[#allocation2 + $0xf] sm:$0xff]
      %v936 = vld [vmem:[#allocation2 + $0x17] sm:$0xff]
      %v937 = vld [vmem:[#allocation2 + $0x1f] sm:$0xff]
      %v938 = vld [vmem:[#allocation2 + $0x27] sm:$0xff]
      %v939 = vld [vmem:[#allocation2 + $0x2f] sm:$0xff]
      %v940 = vld [vmem:[#allocation2 + $0x37] sm:$0xff]
      %v941 = vld [vmem:[#allocation2 + $0x3f] sm:$0xff]
      %v942 = vld [vmem:[#allocation2 + $0x47] sm:$0xff]
      %v943 = vld [vmem:[#allocation2 + $0x4f] sm:$0xff]
      %v944 = vld [vmem:[#allocation2 + $0x57] sm:$0xff]
      %v945 = vld [vmem:[#allocation2 + $0x5f] sm:$0xff]
      %v946 = vld [vmem:[#allocation2 + $0x67] sm:$0xff]
      %v947 = vld [vmem:[#allocation2 + $0x6f] sm:$0xff]
      %v948 = vld [vmem:[#allocation2 + $0x77] sm:$0xff]
      %v949 = vld [vmem:[#allocation2 + $0x7f] sm:$0xff]
      %v950 = vld [vmem:[#allocation2 + $0x87] sm:$0xff]
      %v951 = vld [vmem:[#allocation2 + $0x8f] sm:$0xff]
      %v952 = vld [vmem:[#allocation2 + $0x97] sm:$0xff]
      %v953 = vld [vmem:[#allocation2 + $0x9f] sm:$0xff]
      %v954 = vld [vmem:[#allocation2 + $0xa7] sm:$0xff]
      %v955 = vld [vmem:[#allocation2 + $0xaf] sm:$0xff]
      %v956 = vld [vmem:[#allocation2 + $0xb7] sm:$0xff]
      %v957 = vld [vmem:[#allocation2 + $0xbf] sm:$0xff]
      %v958 = vld [vmem:[#allocation2 + $0xc7] sm:$0xff]
      %v959 = vld [vmem:[#allocation2 + $0xcf] sm:$0xff]
      %v960 = vld [vmem:[#allocation2 + $0xd7] sm:$0xff]
      %v961 = vld [vmem:[#allocation2 + $0xdf] sm:$0xff]
      %v962 = vld [vmem:[#allocation2 + $0xe7] sm:$0xff]
      %v963 = vld [vmem:[#allocation2 + $0xef] sm:$0xff]
      %v964 = vld [vmem:[#allocation2 + $0xf7] sm:$0xff]
      %v965 = vld [vmem:[#allocation2 + $0xff] sm:$0xff]
      %v966 = vmul.f32 %v934, %v806
      %v967 = vmul.f32 %v935, %v807
      %v968 = vmul.f32 %v936, %v808
      %v969 = vmul.f32 %v937, %v809
      %v970 = vmul.f32 %v938, %v810
      %v971 = vmul.f32 %v939, %v811
      %v972 = vmul.f32 %v940, %v812
      %v973 = vmul.f32 %v941, %v813
      %v974 = vmul.f32 %v942, %v814
      %v975 = vmul.f32 %v943, %v815
      %v976 = vmul.f32 %v944, %v816
      %v977 = vmul.f32 %v945, %v817
      %v978 = vmul.f32 %v946, %v818
      %v979 = vmul.f32 %v947, %v819
      %v980 = vmul.f32 %v948, %v820
      %v981 = vmul.f32 %v949, %v821
      %v982 = vmul.f32 %v950, %v822
      %v983 = vmul.f32 %v951, %v823
      %v984 = vmul.f32 %v952, %v824
      %v985 = vmul.f32 %v953, %v825
      %v986 = vmul.f32 %v954, %v826
      %v987 = vmul.f32 %v955, %v827
      %v988 = vmul.f32 %v956, %v828
      %v989 = vmul.f32 %v957, %v829
      %v990 = vmul.f32 %v958, %v830
      %v991 = vmul.f32 %v959, %v831
      %v992 = vmul.f32 %v960, %v832
      %v993 = vmul.f32 %v961, %v833
      %v994 = vmul.f32 %v962, %v834
      %v995 = vmul.f32 %v963, %v835
      %v996 = vmul.f32 %v964, %v836
      %v997 = vmul.f32 %v965, %v837
      %v998 = vld [vmem:[%s210] sm:$0x7]
      %v999 = vld [vmem:[#allocation2 + $0x8] sm:$0xff]
      %v1000 = vld [vmem:[#allocation2 + $0x10] sm:$0xff]
      %v1001 = vld [vmem:[#allocation2 + $0x18] sm:$0xff]
      %v1002 = vld [vmem:[#allocation2 + $0x20] sm:$0xff]
      %v1003 = vld [vmem:[#allocation2 + $0x28] sm:$0xff]
      %v1004 = vld [vmem:[#allocation2 + $0x30] sm:$0xff]
      %v1005 = vld [vmem:[#allocation2 + $0x38] sm:$0xff]
      %v1006 = vld [vmem:[#allocation2 + $0x40] sm:$0xff]
      %v1007 = vld [vmem:[#allocation2 + $0x48] sm:$0xff]
      %v1008 = vld [vmem:[#allocation2 + $0x50] sm:$0xff]
      %v1009 = vld [vmem:[#allocation2 + $0x58] sm:$0xff]
      %v1010 = vld [vmem:[#allocation2 + $0x60] sm:$0xff]
      %v1011 = vld [vmem:[#allocation2 + $0x68] sm:$0xff]
      %v1012 = vld [vmem:[#allocation2 + $0x70] sm:$0xff]
      %v1013 = vld [vmem:[#allocation2 + $0x78] sm:$0xff]
      %v1014 = vld [vmem:[#allocation2 + $0x80] sm:$0xff]
      %v1015 = vld [vmem:[#allocation2 + $0x88] sm:$0xff]
      %v1016 = vld [vmem:[#allocation2 + $0x90] sm:$0xff]
      %v1017 = vld [vmem:[#allocation2 + $0x98] sm:$0xff]
      %v1018 = vld [vmem:[#allocation2 + $0xa0] sm:$0xff]
      %v1019 = vld [vmem:[#allocation2 + $0xa8] sm:$0xff]
      %v1020 = vld [vmem:[#allocation2 + $0xb0] sm:$0xff]
      %v1021 = vld [vmem:[#allocation2 + $0xb8] sm:$0xff]
      %v1022 = vld [vmem:[#allocation2 + $0xc0] sm:$0xff]
      %v1023 = vld [vmem:[#allocation2 + $0xc8] sm:$0xff]
      %v1024 = vld [vmem:[#allocation2 + $0xd0] sm:$0xff]
      %v1025 = vld [vmem:[#allocation2 + $0xd8] sm:$0xff]
      %v1026 = vld [vmem:[#allocation2 + $0xe0] sm:$0xff]
      %v1027 = vld [vmem:[#allocation2 + $0xe8] sm:$0xff]
      %v1028 = vld [vmem:[#allocation2 + $0xf0] sm:$0xff]
      %v1029 = vld [vmem:[#allocation2 + $0xf8] sm:$0xff]
      %v1030 = vld [vmem:[#allocation2 + $0x100] sm:$0xff]
      %s1031 = scalar_lea.vmem %s210, 4
      %v1032 = vld [vmem:[%s1031] sm:$0x7]
      %v1034 = vsel %vm222, %v999, 0
      %v1037 = vsel %vm222, %v1000, 0
      %v1040 = vsel %vm222, %v1001, 0
      %v1043 = vsel %vm222, %v1002, 0
      %v1046 = vsel %vm222, %v1003, 0
      %v1049 = vsel %vm222, %v1004, 0
      %v1052 = vsel %vm222, %v1005, 0
      %v1055 = vsel %vm222, %v1006, 0
      %v1058 = vsel %vm222, %v1007, 0
      %v1061 = vsel %vm222, %v1008, 0
      %v1064 = vsel %vm222, %v1009, 0
      %v1067 = vsel %vm222, %v1010, 0
      %v1070 = vsel %vm222, %v1011, 0
      %v1073 = vsel %vm222, %v1012, 0
      %v1076 = vsel %vm222, %v1013, 0
      %v1079 = vsel %vm222, %v1014, 0
      %v1082 = vsel %vm222, %v1015, 0
      %v1085 = vsel %vm222, %v1016, 0
      %v1088 = vsel %vm222, %v1017, 0
      %v1091 = vsel %vm222, %v1018, 0
      %v1094 = vsel %vm222, %v1019, 0
      %v1097 = vsel %vm222, %v1020, 0
      %v1100 = vsel %vm222, %v1021, 0
      %v1103 = vsel %vm222, %v1022, 0
      %v1106 = vsel %vm222, %v1023, 0
      %v1109 = vsel %vm222, %v1024, 0
      %v1112 = vsel %vm222, %v1025, 0
      %v1115 = vsel %vm222, %v1026, 0
      %v1118 = vsel %vm222, %v1027, 0
      %v1121 = vsel %vm222, %v1028, 0
      %v1124 = vsel %vm222, %v1029, 0
      %v1127 = vsel %vm222, %v1030, 0
      %vm1129 = vcmask 1042432
      %v1131 = vsel %vm1129, %v1032, 0
      %1133 = vmatprep.subr.mxu0 0.0
      %1134 = vmatpush1.msra.mxu0 %v1131
      %1135 = vmatprep.subr.mxu0 0.0
      %1136 = vmatpush1.msra.mxu0 0.0
      %1137 = vmatprep.subr.mxu0 0.0
      %1138 = vmatpush1.msra.mxu0 0.0
      %1139 = vmatprep.subr.mxu0 0.0
      %1140 = vmatpush1.msra.mxu0 0.0
      %1141 = vmatprep.subr.mxu0 0.0
      %1142 = vmatpush1.msra.mxu0 0.0
      %1143 = vmatprep.subr.mxu0 0.0
      %1144 = vmatpush1.msra.mxu0 0.0
      %1145 = vmatprep.subr.mxu0 0.0
      %1146 = vmatpush1.msra.mxu0 0.0
      %1147 = vmatprep.subr.mxu0 0.0
      %1148 = vmatpush1.msra.mxu0 0.0
      %1149 = vmatprep.subr.mxu0 0.0
      %1150 = vmatpush1.msra.mxu0 0.0
      %1151 = vmatprep.subr.mxu0 0.0
      %1152 = vmatpush1.msra.mxu0 0.0
      %1153 = vmatprep.subr.mxu0 0.0
      %1154 = vmatpush1.msra.mxu0 0.0
      %1155 = vmatprep.subr.mxu0 0.0
      %1156 = vmatpush1.msra.mxu0 0.0
      %1157 = vmatprep.subr.mxu0 0.0
      %1158 = vmatpush1.msra.mxu0 0.0
      %1159 = vmatprep.subr.mxu0 0.0
      %1160 = vmatpush1.msra.mxu0 0.0
      %1161 = vmatprep.subr.mxu0 0.0
      %1162 = vmatpush1.msra.mxu0 0.0
      %1163 = vmatprep.subr.mxu0 0.0
      %1164 = vmatpush1.msra.mxu0 0.0
      %1165 = vmatprep.subr.mxu0 0.0
      %1166 = vmatpush1.msra.mxu0 0.0
      %1167 = vmatprep.subr.mxu0 0.0
      %1168 = vmatpush1.msra.mxu0 0.0
      %1169 = vmatprep.subr.mxu0 0.0
      %1170 = vmatpush1.msra.mxu0 0.0
      %1171 = vmatprep.subr.mxu0 0.0
      %1172 = vmatpush1.msra.mxu0 0.0
      %1173 = vmatprep.subr.mxu0 0.0
      %1174 = vmatpush1.msra.mxu0 0.0
      %1175 = vmatprep.subr.mxu0 0.0
      %1176 = vmatpush1.msra.mxu0 0.0
      %1177 = vmatprep.subr.mxu0 0.0
      %1178 = vmatpush1.msra.mxu0 0.0
      %1179 = vmatprep.subr.mxu0 0.0
      %1180 = vmatpush1.msra.mxu0 0.0
      %1181 = vmatprep.subr.mxu0 0.0
      %1182 = vmatpush1.msra.mxu0 0.0
      %1183 = vmatprep.subr.mxu0 0.0
      %1184 = vmatpush1.msra.mxu0 0.0
      %1185 = vmatprep.subr.mxu0 0.0
      %1186 = vmatpush1.msra.mxu0 0.0
      %1187 = vmatprep.subr.mxu0 0.0
      %1188 = vmatpush1.msra.mxu0 0.0
      %1189 = vmatprep.subr.mxu0 0.0
      %1190 = vmatpush1.msra.mxu0 0.0
      %1191 = vmatprep.subr.mxu0 0.0
      %1192 = vmatpush1.msra.mxu0 0.0
      %1193 = vmatprep.subr.mxu0 0.0
      %1194 = vmatpush1.msra.mxu0 0.0
      %1195 = vmatprep.subr.mxu0 0.0
      %1196 = vmatpush1.msra.mxu0 0.0
      %1197 = vmatprep.mubr.f32.mxu0 0.0
      %1198 = vmatmul.mubr.f32.gmra.mrb[0].mxu0 %v1034
      %v1199 = vpop.f32.mrb[0].mxu0
      %v1200 = vadd.f32 0.0, %v1199
      %v1201 = vpop.f32.mrb[0].mxu0
      %1202 = vmatprep.mubr.f32.mxu0 0.0
      %1203 = vmatmul.mubr.f32.gmra.mrb[0].mxu0 %v1037
      %v1204 = vpop.f32.mrb[0].mxu0
      %v1205 = vadd.f32 0.0, %v1204
      %v1206 = vpop.f32.mrb[0].mxu0
      %1207 = vmatprep.mubr.f32.mxu0 0.0
      %1208 = vmatmul.mubr.f32.gmra.mrb[0].mxu0 %v1040
      %v1209 = vpop.f32.mrb[0].mxu0
      %v1210 = vadd.f32 0.0, %v1209
      %v1211 = vpop.f32.mrb[0].mxu0
      %1212 = vmatprep.mubr.f32.mxu0 0.0
      %1213 = vmatmul.mubr.f32.gmra.mrb[0].mxu0 %v1043
      %v1214 = vpop.f32.mrb[0].mxu0
      %v1215 = vadd.f32 0.0, %v1214
      %v1216 = vpop.f32.mrb[0].mxu0
      %1217 = vmatprep.mubr.f32.mxu0 0.0
      %1218 = vmatmul.mubr.f32.gmra.mrb[0].mxu0 %v1046
      %v1219 = vpop.f32.mrb[0].mxu0
      %v1220 = vadd.f32 0.0, %v1219
      %v1221 = vpop.f32.mrb[0].mxu0
      %1222 = vmatprep.mubr.f32.mxu0 0.0
      %1223 = vmatmul.mubr.f32.gmra.mrb[0].mxu0 %v1049
      %v1224 = vpop.f32.mrb[0].mxu0
      %v1225 = vadd.f32 0.0, %v1224
      %v1226 = vpop.f32.mrb[0].mxu0
      %1227 = vmatprep.mubr.f32.mxu0 0.0
      %1228 = vmatmul.mubr.f32.gmra.mrb[0].mxu0 %v1052
      %v1229 = vpop.f32.mrb[0].mxu0
      %v1230 = vadd.f32 0.0, %v1229
      %v1231 = vpop.f32.mrb[0].mxu0
      %1232 = vmatprep.mubr.f32.mxu0 0.0
      %1233 = vmatmul.mubr.f32.gmra.mrb[0].mxu0 %v1055
      %v1234 = vpop.f32.mrb[0].mxu0
      %v1235 = vadd.f32 0.0, %v1234
      %v1236 = vpop.f32.mrb[0].mxu0
      %1237 = vmatprep.mubr.f32.mxu0 0.0
      %1238 = vmatmul.mubr.f32.gmra.mrb[0].mxu0 %v1058
      %v1239 = vpop.f32.mrb[0].mxu0
      %v1240 = vadd.f32 0.0, %v1239
      %v1241 = vpop.f32.mrb[0].mxu0
      %1242 = vmatprep.mubr.f32.mxu0 0.0
      %1243 = vmatmul.mubr.f32.gmra.mrb[0].mxu0 %v1061
      %v1244 = vpop.f32.mrb[0].mxu0
      %v1245 = vadd.f32 0.0, %v1244
      %v1246 = vpop.f32.mrb[0].mxu0
      %1247 = vmatprep.mubr.f32.mxu0 0.0
      %1248 = vmatmul.mubr.f32.gmra.mrb[0].mxu0 %v1064
      %v1249 = vpop.f32.mrb[0].mxu0
      %v1250 = vadd.f32 0.0, %v1249
      %v1251 = vpop.f32.mrb[0].mxu0
      %1252 = vmatprep.mubr.f32.mxu0 0.0
      %1253 = vmatmul.mubr.f32.gmra.mrb[0].mxu0 %v1067
      %v1254 = vpop.f32.mrb[0].mxu0
      %v1255 = vadd.f32 0.0, %v1254
      %v1256 = vpop.f32.mrb[0].mxu0
      %1257 = vmatprep.mubr.f32.mxu0 0.0
      %1258 = vmatmul.mubr.f32.gmra.mrb[0].mxu0 %v1070
      %v1259 = vpop.f32.mrb[0].mxu0
      %v1260 = vadd.f32 0.0, %v1259
      %v1261 = vpop.f32.mrb[0].mxu0
      %1262 = vmatprep.mubr.f32.mxu0 0.0
      %1263 = vmatmul.mubr.f32.gmra.mrb[0].mxu0 %v1073
      %v1264 = vpop.f32.mrb[0].mxu0
      %v1265 = vadd.f32 0.0, %v1264
      %v1266 = vpop.f32.mrb[0].mxu0
      %1267 = vmatprep.mubr.f32.mxu0 0.0
      %1268 = vmatmul.mubr.f32.gmra.mrb[0].mxu0 %v1076
      %v1269 = vpop.f32.mrb[0].mxu0
      %v1270 = vadd.f32 0.0, %v1269
      %v1271 = vpop.f32.mrb[0].mxu0
      %1272 = vmatprep.mubr.f32.mxu0 0.0
      %1273 = vmatmul.mubr.f32.gmra.mrb[0].mxu0 %v1079
      %v1274 = vpop.f32.mrb[0].mxu0
      %v1275 = vadd.f32 0.0, %v1274
      %v1276 = vpop.f32.mrb[0].mxu0
      %1277 = vmatprep.mubr.f32.mxu0 0.0
      %1278 = vmatmul.mubr.f32.gmra.mrb[0].mxu0 %v1082
      %v1279 = vpop.f32.mrb[0].mxu0
      %v1280 = vadd.f32 0.0, %v1279
      %v1281 = vpop.f32.mrb[0].mxu0
      %1282 = vmatprep.mubr.f32.mxu0 0.0
      %1283 = vmatmul.mubr.f32.gmra.mrb[0].mxu0 %v1085
      %v1284 = vpop.f32.mrb[0].mxu0
      %v1285 = vadd.f32 0.0, %v1284
      %v1286 = vpop.f32.mrb[0].mxu0
      %1287 = vmatprep.mubr.f32.mxu0 0.0
      %1288 = vmatmul.mubr.f32.gmra.mrb[0].mxu0 %v1088
      %v1289 = vpop.f32.mrb[0].mxu0
      %v1290 = vadd.f32 0.0, %v1289
      %v1291 = vpop.f32.mrb[0].mxu0
      %1292 = vmatprep.mubr.f32.mxu0 0.0
      %1293 = vmatmul.mubr.f32.gmra.mrb[0].mxu0 %v1091
      %v1294 = vpop.f32.mrb[0].mxu0
      %v1295 = vadd.f32 0.0, %v1294
      %v1296 = vpop.f32.mrb[0].mxu0
      %1297 = vmatprep.mubr.f32.mxu0 0.0
      %1298 = vmatmul.mubr.f32.gmra.mrb[0].mxu0 %v1094
      %v1299 = vpop.f32.mrb[0].mxu0
      %v1300 = vadd.f32 0.0, %v1299
      %v1301 = vpop.f32.mrb[0].mxu0
      %1302 = vmatprep.mubr.f32.mxu0 0.0
      %1303 = vmatmul.mubr.f32.gmra.mrb[0].mxu0 %v1097
      %v1304 = vpop.f32.mrb[0].mxu0
      %v1305 = vadd.f32 0.0, %v1304
      %v1306 = vpop.f32.mrb[0].mxu0
      %1307 = vmatprep.mubr.f32.mxu0 0.0
      %1308 = vmatmul.mubr.f32.gmra.mrb[0].mxu0 %v1100
      %v1309 = vpop.f32.mrb[0].mxu0
      %v1310 = vadd.f32 0.0, %v1309
      %v1311 = vpop.f32.mrb[0].mxu0
      %1312 = vmatprep.mubr.f32.mxu0 0.0
      %1313 = vmatmul.mubr.f32.gmra.mrb[0].mxu0 %v1103
      %v1314 = vpop.f32.mrb[0].mxu0
      %v1315 = vadd.f32 0.0, %v1314
      %v1316 = vpop.f32.mrb[0].mxu0
      %1317 = vmatprep.mubr.f32.mxu0 0.0
      %1318 = vmatmul.mubr.f32.gmra.mrb[0].mxu0 %v1106
      %v1319 = vpop.f32.mrb[0].mxu0
      %v1320 = vadd.f32 0.0, %v1319
      %v1321 = vpop.f32.mrb[0].mxu0
      %1322 = vmatprep.mubr.f32.mxu0 0.0
      %1323 = vmatmul.mubr.f32.gmra.mrb[0].mxu0 %v1109
      %v1324 = vpop.f32.mrb[0].mxu0
      %v1325 = vadd.f32 0.0, %v1324
      %v1326 = vpop.f32.mrb[0].mxu0
      %1327 = vmatprep.mubr.f32.mxu0 0.0
      %1328 = vmatmul.mubr.f32.gmra.mrb[0].mxu0 %v1112
      %v1329 = vpop.f32.mrb[0].mxu0
      %v1330 = vadd.f32 0.0, %v1329
      %v1331 = vpop.f32.mrb[0].mxu0
      %1332 = vmatprep.mubr.f32.mxu0 0.0
      %1333 = vmatmul.mubr.f32.gmra.mrb[0].mxu0 %v1115
      %v1334 = vpop.f32.mrb[0].mxu0
      %v1335 = vadd.f32 0.0, %v1334
      %v1336 = vpop.f32.mrb[0].mxu0
      %1337 = vmatprep.mubr.f32.mxu0 0.0
      %1338 = vmatmul.mubr.f32.gmra.mrb[0].mxu0 %v1118
      %v1339 = vpop.f32.mrb[0].mxu0
      %v1340 = vadd.f32 0.0, %v1339
      %v1341 = vpop.f32.mrb[0].mxu0
      %1342 = vmatprep.mubr.f32.mxu0 0.0
      %1343 = vmatmul.mubr.f32.gmra.mrb[0].mxu0 %v1121
      %v1344 = vpop.f32.mrb[0].mxu0
      %v1345 = vadd.f32 0.0, %v1344
      %v1346 = vpop.f32.mrb[0].mxu0
      %1347 = vmatprep.mubr.f32.mxu0 0.0
      %1348 = vmatmul.mubr.f32.gmra.mrb[0].mxu0 %v1124
      %v1349 = vpop.f32.mrb[0].mxu0
      %v1350 = vadd.f32 0.0, %v1349
      %v1351 = vpop.f32.mrb[0].mxu0
      %1352 = vmatprep.mubr.f32.mxu0 0.0
      %1353 = vmatmul.mubr.f32.gmra.mrb[0].mxu0 %v1127
      %v1354 = vpop.f32.mrb[0].mxu0
      %v1355 = vadd.f32 0.0, %v1354
      %v1356 = vpop.f32.mrb[0].mxu0
      %1357 = vdwg.mxu0
      %v1359 = vsel %vm222, %v966, 0
      %v1362 = vsel %vm222, %v967, 0
      %v1365 = vsel %vm222, %v968, 0
      %v1368 = vsel %vm222, %v969, 0
      %v1371 = vsel %vm222, %v970, 0
      %v1374 = vsel %vm222, %v971, 0
      %v1377 = vsel %vm222, %v972, 0
      %v1380 = vsel %vm222, %v973, 0
      %v1383 = vsel %vm222, %v974, 0
      %v1386 = vsel %vm222, %v975, 0
      %v1389 = vsel %vm222, %v976, 0
      %v1392 = vsel %vm222, %v977, 0
      %v1395 = vsel %vm222, %v978, 0
      %v1398 = vsel %vm222, %v979, 0
      %v1401 = vsel %vm222, %v980, 0
      %v1404 = vsel %vm222, %v981, 0
      %v1407 = vsel %vm222, %v982, 0
      %v1410 = vsel %vm222, %v983, 0
      %v1413 = vsel %vm222, %v984, 0
      %v1416 = vsel %vm222, %v985, 0
      %v1419 = vsel %vm222, %v986, 0
      %v1422 = vsel %vm222, %v987, 0
      %v1425 = vsel %vm222, %v988, 0
      %v1428 = vsel %vm222, %v989, 0
      %v1431 = vsel %vm222, %v990, 0
      %v1434 = vsel %vm222, %v991, 0
      %v1437 = vsel %vm222, %v992, 0
      %v1440 = vsel %vm222, %v993, 0
      %v1443 = vsel %vm222, %v994, 0
      %v1446 = vsel %vm222, %v995, 0
      %v1449 = vsel %vm222, %v996, 0
      %v1452 = vsel %vm222, %v997, 0
      %v1455 = vsel %vm1129, %v998, 0
      %1457 = vmatprep.subr.mxu0 0.0
      %1458 = vmatpush1.msra.mxu0 %v1455
      %1459 = vmatprep.subr.mxu0 0.0
      %1460 = vmatpush1.msra.mxu0 0.0
      %1461 = vmatprep.subr.mxu0 0.0
      %1462 = vmatpush1.msra.mxu0 0.0
      %1463 = vmatprep.subr.mxu0 0.0
      %1464 = vmatpush1.msra.mxu0 0.0
      %1465 = vmatprep.subr.mxu0 0.0
      %1466 = vmatpush1.msra.mxu0 0.0
      %1467 = vmatprep.subr.mxu0 0.0
      %1468 = vmatpush1.msra.mxu0 0.0
      %1469 = vmatprep.subr.mxu0 0.0
      %1470 = vmatpush1.msra.mxu0 0.0
      %1471 = vmatprep.subr.mxu0 0.0
      %1472 = vmatpush1.msra.mxu0 0.0
      %1473 = vmatprep.subr.mxu0 0.0
      %1474 = vmatpush1.msra.mxu0 0.0
      %1475 = vmatprep.subr.mxu0 0.0
      %1476 = vmatpush1.msra.mxu0 0.0
      %1477 = vmatprep.subr.mxu0 0.0
      %1478 = vmatpush1.msra.mxu0 0.0
      %1479 = vmatprep.subr.mxu0 0.0
      %1480 = vmatpush1.msra.mxu0 0.0
      %1481 = vmatprep.subr.mxu0 0.0
      %1482 = vmatpush1.msra.mxu0 0.0
      %1483 = vmatprep.subr.mxu0 0.0
      %1484 = vmatpush1.msra.mxu0 0.0
      %1485 = vmatprep.subr.mxu0 0.0
      %1486 = vmatpush1.msra.mxu0 0.0
      %1487 = vmatprep.subr.mxu0 0.0
      %1488 = vmatpush1.msra.mxu0 0.0
      %1489 = vmatprep.subr.mxu0 0.0
      %1490 = vmatpush1.msra.mxu0 0.0
      %1491 = vmatprep.subr.mxu0 0.0
      %1492 = vmatpush1.msra.mxu0 0.0
      %1493 = vmatprep.subr.mxu0 0.0
      %1494 = vmatpush1.msra.mxu0 0.0
      %1495 = vmatprep.subr.mxu0 0.0
      %1496 = vmatpush1.msra.mxu0 0.0
      %1497 = vmatprep.subr.mxu0 0.0
      %1498 = vmatpush1.msra.mxu0 0.0
      %1499 = vmatprep.subr.mxu0 0.0
      %1500 = vmatpush1.msra.mxu0 0.0
      %1501 = vmatprep.subr.mxu0 0.0
      %1502 = vmatpush1.msra.mxu0 0.0
      %1503 = vmatprep.subr.mxu0 0.0
      %1504 = vmatpush1.msra.mxu0 0.0
      %1505 = vmatprep.subr.mxu0 0.0
      %1506 = vmatpush1.msra.mxu0 0.0
      %1507 = vmatprep.subr.mxu0 0.0
      %1508 = vmatpush1.msra.mxu0 0.0
      %1509 = vmatprep.subr.mxu0 0.0
      %1510 = vmatpush1.msra.mxu0 0.0
      %1511 = vmatprep.subr.mxu0 0.0
      %1512 = vmatpush1.msra.mxu0 0.0
      %1513 = vmatprep.subr.mxu0 0.0
      %1514 = vmatpush1.msra.mxu0 0.0
      %1515 = vmatprep.subr.mxu0 0.0
      %1516 = vmatpush1.msra.mxu0 0.0
      %1517 = vmatprep.subr.mxu0 0.0
      %1518 = vmatpush1.msra.mxu0 0.0
      %1519 = vmatprep.subr.mxu0 0.0
      %1520 = vmatpush1.msra.mxu0 0.0
      %1521 = vmatprep.mubr.f32.mxu0 0.0
      %1522 = vmatmul.mubr.f32.gmra.mrb[0].mxu0 %v1359
      %v1523 = vpop.f32.mrb[0].mxu0
      %v1524 = vadd.f32 %v1200, %v1523
      %v1525 = vpop.f32.mrb[0].mxu0
      %1526 = vmatprep.mubr.f32.mxu0 0.0
      %1527 = vmatmul.mubr.f32.gmra.mrb[0].mxu0 %v1362
      %v1528 = vpop.f32.mrb[0].mxu0
      %v1529 = vadd.f32 %v1205, %v1528
      %v1530 = vpop.f32.mrb[0].mxu0
      %1531 = vmatprep.mubr.f32.mxu0 0.0
      %1532 = vmatmul.mubr.f32.gmra.mrb[0].mxu0 %v1365
      %v1533 = vpop.f32.mrb[0].mxu0
      %v1534 = vadd.f32 %v1210, %v1533
      %v1535 = vpop.f32.mrb[0].mxu0
      %1536 = vmatprep.mubr.f32.mxu0 0.0
      %1537 = vmatmul.mubr.f32.gmra.mrb[0].mxu0 %v1368
      %v1538 = vpop.f32.mrb[0].mxu0
      %v1539 = vadd.f32 %v1215, %v1538
      %v1540 = vpop.f32.mrb[0].mxu0
      %1541 = vmatprep.mubr.f32.mxu0 0.0
      %1542 = vmatmul.mubr.f32.gmra.mrb[0].mxu0 %v1371
      %v1543 = vpop.f32.mrb[0].mxu0
      %v1544 = vadd.f32 %v1220, %v1543
      %v1545 = vpop.f32.mrb[0].mxu0
      %1546 = vmatprep.mubr.f32.mxu0 0.0
      %1547 = vmatmul.mubr.f32.gmra.mrb[0].mxu0 %v1374
      %v1548 = vpop.f32.mrb[0].mxu0
      %v1549 = vadd.f32 %v1225, %v1548
      %v1550 = vpop.f32.mrb[0].mxu0
      %1551 = vmatprep.mubr.f32.mxu0 0.0
      %1552 = vmatmul.mubr.f32.gmra.mrb[0].mxu0 %v1377
      %v1553 = vpop.f32.mrb[0].mxu0
      %v1554 = vadd.f32 %v1230, %v1553
      %v1555 = vpop.f32.mrb[0].mxu0
      %1556 = vmatprep.mubr.f32.mxu0 0.0
      %1557 = vmatmul.mubr.f32.gmra.mrb[0].mxu0 %v1380
      %v1558 = vpop.f32.mrb[0].mxu0
      %v1559 = vadd.f32 %v1235, %v1558
      %v1560 = vpop.f32.mrb[0].mxu0
      %1561 = vmatprep.mubr.f32.mxu0 0.0
      %1562 = vmatmul.mubr.f32.gmra.mrb[0].mxu0 %v1383
      %v1563 = vpop.f32.mrb[0].mxu0
      %v1564 = vadd.f32 %v1240, %v1563
      %v1565 = vpop.f32.mrb[0].mxu0
      %1566 = vmatprep.mubr.f32.mxu0 0.0
      %1567 = vmatmul.mubr.f32.gmra.mrb[0].mxu0 %v1386
      %v1568 = vpop.f32.mrb[0].mxu0
      %v1569 = vadd.f32 %v1245, %v1568
      %v1570 = vpop.f32.mrb[0].mxu0
      %1571 = vmatprep.mubr.f32.mxu0 0.0
      %1572 = vmatmul.mubr.f32.gmra.mrb[0].mxu0 %v1389
      %v1573 = vpop.f32.mrb[0].mxu0
      %v1574 = vadd.f32 %v1250, %v1573
      %v1575 = vpop.f32.mrb[0].mxu0
      %1576 = vmatprep.mubr.f32.mxu0 0.0
      %1577 = vmatmul.mubr.f32.gmra.mrb[0].mxu0 %v1392
      %v1578 = vpop.f32.mrb[0].mxu0
      %v1579 = vadd.f32 %v1255, %v1578
      %v1580 = vpop.f32.mrb[0].mxu0
      %1581 = vmatprep.mubr.f32.mxu0 0.0
      %1582 = vmatmul.mubr.f32.gmra.mrb[0].mxu0 %v1395
      %v1583 = vpop.f32.mrb[0].mxu0
      %v1584 = vadd.f32 %v1260, %v1583
      %v1585 = vpop.f32.mrb[0].mxu0
      %1586 = vmatprep.mubr.f32.mxu0 0.0
      %1587 = vmatmul.mubr.f32.gmra.mrb[0].mxu0 %v1398
      %v1588 = vpop.f32.mrb[0].mxu0
      %v1589 = vadd.f32 %v1265, %v1588
      %v1590 = vpop.f32.mrb[0].mxu0
      %1591 = vmatprep.mubr.f32.mxu0 0.0
      %1592 = vmatmul.mubr.f32.gmra.mrb[0].mxu0 %v1401
      %v1593 = vpop.f32.mrb[0].mxu0
      %v1594 = vadd.f32 %v1270, %v1593
      %v1595 = vpop.f32.mrb[0].mxu0
      %1596 = vmatprep.mubr.f32.mxu0 0.0
      %1597 = vmatmul.mubr.f32.gmra.mrb[0].mxu0 %v1404
      %v1598 = vpop.f32.mrb[0].mxu0
      %v1599 = vadd.f32 %v1275, %v1598
      %v1600 = vpop.f32.mrb[0].mxu0
      %1601 = vmatprep.mubr.f32.mxu0 0.0
      %1602 = vmatmul.mubr.f32.gmra.mrb[0].mxu0 %v1407
      %v1603 = vpop.f32.mrb[0].mxu0
      %v1604 = vadd.f32 %v1280, %v1603
      %v1605 = vpop.f32.mrb[0].mxu0
      %1606 = vmatprep.mubr.f32.mxu0 0.0
      %1607 = vmatmul.mubr.f32.gmra.mrb[0].mxu0 %v1410
      %v1608 = vpop.f32.mrb[0].mxu0
      %v1609 = vadd.f32 %v1285, %v1608
      %v1610 = vpop.f32.mrb[0].mxu0
      %1611 = vmatprep.mubr.f32.mxu0 0.0
      %1612 = vmatmul.mubr.f32.gmra.mrb[0].mxu0 %v1413
      %v1613 = vpop.f32.mrb[0].mxu0
      %v1614 = vadd.f32 %v1290, %v1613
      %v1615 = vpop.f32.mrb[0].mxu0
      %1616 = vmatprep.mubr.f32.mxu0 0.0
      %1617 = vmatmul.mubr.f32.gmra.mrb[0].mxu0 %v1416
      %v1618 = vpop.f32.mrb[0].mxu0
      %v1619 = vadd.f32 %v1295, %v1618
      %v1620 = vpop.f32.mrb[0].mxu0
      %1621 = vmatprep.mubr.f32.mxu0 0.0
      %1622 = vmatmul.mubr.f32.gmra.mrb[0].mxu0 %v1419
      %v1623 = vpop.f32.mrb[0].mxu0
      %v1624 = vadd.f32 %v1300, %v1623
      %v1625 = vpop.f32.mrb[0].mxu0
      %1626 = vmatprep.mubr.f32.mxu0 0.0
      %1627 = vmatmul.mubr.f32.gmra.mrb[0].mxu0 %v1422
      %v1628 = vpop.f32.mrb[0].mxu0
      %v1629 = vadd.f32 %v1305, %v1628
      %v1630 = vpop.f32.mrb[0].mxu0
      %1631 = vmatprep.mubr.f32.mxu0 0.0
      %1632 = vmatmul.mubr.f32.gmra.mrb[0].mxu0 %v1425
      %v1633 = vpop.f32.mrb[0].mxu0
      %v1634 = vadd.f32 %v1310, %v1633
      %v1635 = vpop.f32.mrb[0].mxu0
      %1636 = vmatprep.mubr.f32.mxu0 0.0
      %1637 = vmatmul.mubr.f32.gmra.mrb[0].mxu0 %v1428
      %v1638 = vpop.f32.mrb[0].mxu0
      %v1639 = vadd.f32 %v1315, %v1638
      %v1640 = vpop.f32.mrb[0].mxu0
      %1641 = vmatprep.mubr.f32.mxu0 0.0
      %1642 = vmatmul.mubr.f32.gmra.mrb[0].mxu0 %v1431
      %v1643 = vpop.f32.mrb[0].mxu0
      %v1644 = vadd.f32 %v1320, %v1643
      %v1645 = vpop.f32.mrb[0].mxu0
      %1646 = vmatprep.mubr.f32.mxu0 0.0
      %1647 = vmatmul.mubr.f32.gmra.mrb[0].mxu0 %v1434
      %v1648 = vpop.f32.mrb[0].mxu0
      %v1649 = vadd.f32 %v1325, %v1648
      %v1650 = vpop.f32.mrb[0].mxu0
      %1651 = vmatprep.mubr.f32.mxu0 0.0
      %1652 = vmatmul.mubr.f32.gmra.mrb[0].mxu0 %v1437
      %v1653 = vpop.f32.mrb[0].mxu0
      %v1654 = vadd.f32 %v1330, %v1653
      %v1655 = vpop.f32.mrb[0].mxu0
      %1656 = vmatprep.mubr.f32.mxu0 0.0
      %1657 = vmatmul.mubr.f32.gmra.mrb[0].mxu0 %v1440
      %v1658 = vpop.f32.mrb[0].mxu0
      %v1659 = vadd.f32 %v1335, %v1658
      %v1660 = vpop.f32.mrb[0].mxu0
      %1661 = vmatprep.mubr.f32.mxu0 0.0
      %1662 = vmatmul.mubr.f32.gmra.mrb[0].mxu0 %v1443
      %v1663 = vpop.f32.mrb[0].mxu0
      %v1664 = vadd.f32 %v1340, %v1663
      %v1665 = vpop.f32.mrb[0].mxu0
      %1666 = vmatprep.mubr.f32.mxu0 0.0
      %1667 = vmatmul.mubr.f32.gmra.mrb[0].mxu0 %v1446
      %v1668 = vpop.f32.mrb[0].mxu0
      %v1669 = vadd.f32 %v1345, %v1668
      %v1670 = vpop.f32.mrb[0].mxu0
      %1671 = vmatprep.mubr.f32.mxu0 0.0
      %1672 = vmatmul.mubr.f32.gmra.mrb[0].mxu0 %v1449
      %v1673 = vpop.f32.mrb[0].mxu0
      %v1674 = vadd.f32 %v1350, %v1673
      %v1675 = vpop.f32.mrb[0].mxu0
      %1676 = vmatprep.mubr.f32.mxu0 0.0
      %1677 = vmatmul.mubr.f32.gmra.mrb[0].mxu0 %v1452
      %v1678 = vpop.f32.mrb[0].mxu0
      %v1679 = vadd.f32 %v1355, %v1678
      %v1680 = vpop.f32.mrb[0].mxu0
      %1681 = vdwg.mxu0
      %v1682 = vld [vmem:[#allocation2 + $0x9] sm:$0xff]
      %v1683 = vld [vmem:[#allocation2 + $0x11] sm:$0xff]
      %v1684 = vld [vmem:[#allocation2 + $0x19] sm:$0xff]
      %v1685 = vld [vmem:[#allocation2 + $0x21] sm:$0xff]
      %v1686 = vld [vmem:[#allocation2 + $0x29] sm:$0xff]
      %v1687 = vld [vmem:[#allocation2 + $0x31] sm:$0xff]
      %v1688 = vld [vmem:[#allocation2 + $0x39] sm:$0xff]
      %v1689 = vld [vmem:[#allocation2 + $0x41] sm:$0xff]
      %v1690 = vld [vmem:[#allocation2 + $0x49] sm:$0xff]
      %v1691 = vld [vmem:[#allocation2 + $0x51] sm:$0xff]
      %v1692 = vld [vmem:[#allocation2 + $0x59] sm:$0xff]
      %v1693 = vld [vmem:[#allocation2 + $0x61] sm:$0xff]
      %v1694 = vld [vmem:[#allocation2 + $0x69] sm:$0xff]
      %v1695 = vld [vmem:[#allocation2 + $0x71] sm:$0xff]
      %v1696 = vld [vmem:[#allocation2 + $0x79] sm:$0xff]
      %v1697 = vld [vmem:[#allocation2 + $0x81] sm:$0xff]
      %v1698 = vld [vmem:[#allocation2 + $0x89] sm:$0xff]
      %v1699 = vld [vmem:[#allocation2 + $0x91] sm:$0xff]
      %v1700 = vld [vmem:[#allocation2 + $0x99] sm:$0xff]
      %v1701 = vld [vmem:[#allocation2 + $0xa1] sm:$0xff]
      %v1702 = vld [vmem:[#allocation2 + $0xa9] sm:$0xff]
      %v1703 = vld [vmem:[#allocation2 + $0xb1] sm:$0xff]
      %v1704 = vld [vmem:[#allocation2 + $0xb9] sm:$0xff]
      %v1705 = vld [vmem:[#allocation2 + $0xc1] sm:$0xff]
      %v1706 = vld [vmem:[#allocation2 + $0xc9] sm:$0xff]
      %v1707 = vld [vmem:[#allocation2 + $0xd1] sm:$0xff]
      %v1708 = vld [vmem:[#allocation2 + $0xd9] sm:$0xff]
      %v1709 = vld [vmem:[#allocation2 + $0xe1] sm:$0xff]
      %v1710 = vld [vmem:[#allocation2 + $0xe9] sm:$0xff]
      %v1711 = vld [vmem:[#allocation2 + $0xf1] sm:$0xff]
      %v1712 = vld [vmem:[#allocation2 + $0xf9] sm:$0xff]
      %v1713 = vld [vmem:[#allocation2 + $0x101] sm:$0xff]
      %v1714 = vmul.f32 %v1682, %v902
      %v1715 = vmul.f32 %v1683, %v903
      %v1716 = vmul.f32 %v1684, %v904
      %v1717 = vmul.f32 %v1685, %v905
      %v1718 = vmul.f32 %v1686, %v906
      %v1719 = vmul.f32 %v1687, %v907
      %v1720 = vmul.f32 %v1688, %v908
      %v1721 = vmul.f32 %v1689, %v909
      %v1722 = vmul.f32 %v1690, %v910
      %v1723 = vmul.f32 %v1691, %v911
      %v1724 = vmul.f32 %v1692, %v912
      %v1725 = vmul.f32 %v1693, %v913
      %v1726 = vmul.f32 %v1694, %v914
      %v1727 = vmul.f32 %v1695, %v915
      %v1728 = vmul.f32 %v1696, %v916
      %v1729 = vmul.f32 %v1697, %v917
      %v1730 = vmul.f32 %v1698, %v918
      %v1731 = vmul.f32 %v1699, %v919
      %v1732 = vmul.f32 %v1700, %v920
      %v1733 = vmul.f32 %v1701, %v921
      %v1734 = vmul.f32 %v1702, %v922
      %v1735 = vmul.f32 %v1703, %v923
      %v1736 = vmul.f32 %v1704, %v924
      %v1737 = vmul.f32 %v1705, %v925
      %v1738 = vmul.f32 %v1706, %v926
      %v1739 = vmul.f32 %v1707, %v927
      %v1740 = vmul.f32 %v1708, %v928
      %v1741 = vmul.f32 %v1709, %v929
      %v1742 = vmul.f32 %v1710, %v930
      %v1743 = vmul.f32 %v1711, %v931
      %v1744 = vmul.f32 %v1712, %v932
      %v1745 = vmul.f32 %v1713, %v933
      %s1746 = scalar_lea.vmem %s210, 8
      %v1747 = vld [vmem:[%s1746] sm:$0x7]
      %v1749 = vsel %vm222, %v1714, 0
      %v1752 = vsel %vm222, %v1715, 0
      %v1755 = vsel %vm222, %v1716, 0
      %v1758 = vsel %vm222, %v1717, 0
      %v1761 = vsel %vm222, %v1718, 0
      %v1764 = vsel %vm222, %v1719, 0
      %v1767 = vsel %vm222, %v1720, 0
      %v1770 = vsel %vm222, %v1721, 0
      %v1773 = vsel %vm222, %v1722, 0
      %v1776 = vsel %vm222, %v1723, 0
      %v1779 = vsel %vm222, %v1724, 0
      %v1782 = vsel %vm222, %v1725, 0
      %v1785 = vsel %vm222, %v1726, 0
      %v1788 = vsel %vm222, %v1727, 0
      %v1791 = vsel %vm222, %v1728, 0
      %v1794 = vsel %vm222, %v1729, 0
      %v1797 = vsel %vm222, %v1730, 0
      %v1800 = vsel %vm222, %v1731, 0
      %v1803 = vsel %vm222, %v1732, 0
      %v1806 = vsel %vm222, %v1733, 0
      %v1809 = vsel %vm222, %v1734, 0
      %v1812 = vsel %vm222, %v1735, 0
      %v1815 = vsel %vm222, %v1736, 0
      %v1818 = vsel %vm222, %v1737, 0
      %v1821 = vsel %vm222, %v1738, 0
      %v1824 = vsel %vm222, %v1739, 0
      %v1827 = vsel %vm222, %v1740, 0
      %v1830 = vsel %vm222, %v1741, 0
      %v1833 = vsel %vm222, %v1742, 0
      %v1836 = vsel %vm222, %v1743, 0
      %v1839 = vsel %vm222, %v1744, 0
      %v1842 = vsel %vm222, %v1745, 0
      %v1845 = vsel %vm1129, %v1747, 0
      %1847 = vmatprep.subr.mxu0 0.0
      %1848 = vmatpush1.msra.mxu0 %v1845
      %1849 = vmatprep.subr.mxu0 0.0
      %1850 = vmatpush1.msra.mxu0 0.0
      %1851 = vmatprep.subr.mxu0 0.0
      %1852 = vmatpush1.msra.mxu0 0.0
      %1853 = vmatprep.subr.mxu0 0.0
      %1854 = vmatpush1.msra.mxu0 0.0
      %1855 = vmatprep.subr.mxu0 0.0
      %1856 = vmatpush1.msra.mxu0 0.0
      %1857 = vmatprep.subr.mxu0 0.0
      %1858 = vmatpush1.msra.mxu0 0.0
      %1859 = vmatprep.subr.mxu0 0.0
      %1860 = vmatpush1.msra.mxu0 0.0
      %1861 = vmatprep.subr.mxu0 0.0
      %1862 = vmatpush1.msra.mxu0 0.0
      %1863 = vmatprep.subr.mxu0 0.0
      %1864 = vmatpush1.msra.mxu0 0.0
      %1865 = vmatprep.subr.mxu0 0.0
      %1866 = vmatpush1.msra.mxu0 0.0
      %1867 = vmatprep.subr.mxu0 0.0
      %1868 = vmatpush1.msra.mxu0 0.0
      %1869 = vmatprep.subr.mxu0 0.0
      %1870 = vmatpush1.msra.mxu0 0.0
      %1871 = vmatprep.subr.mxu0 0.0
      %1872 = vmatpush1.msra.mxu0 0.0
      %1873 = vmatprep.subr.mxu0 0.0
      %1874 = vmatpush1.msra.mxu0 0.0
      %1875 = vmatprep.subr.mxu0 0.0
      %1876 = vmatpush1.msra.mxu0 0.0
      %1877 = vmatprep.subr.mxu0 0.0
      %1878 = vmatpush1.msra.mxu0 0.0
      %1879 = vmatprep.subr.mxu0 0.0
      %1880 = vmatpush1.msra.mxu0 0.0
      %1881 = vmatprep.subr.mxu0 0.0
      %1882 = vmatpush1.msra.mxu0 0.0
      %1883 = vmatprep.subr.mxu0 0.0
      %1884 = vmatpush1.msra.mxu0 0.0
      %1885 = vmatprep.subr.mxu0 0.0
      %1886 = vmatpush1.msra.mxu0 0.0
      %1887 = vmatprep.subr.mxu0 0.0
      %1888 = vmatpush1.msra.mxu0 0.0
      %1889 = vmatprep.subr.mxu0 0.0
      %1890 = vmatpush1.msra.mxu0 0.0
      %1891 = vmatprep.subr.mxu0 0.0
      %1892 = vmatpush1.msra.mxu0 0.0
      %1893 = vmatprep.subr.mxu0 0.0
      %1894 = vmatpush1.msra.mxu0 0.0
      %1895 = vmatprep.subr.mxu0 0.0
      %1896 = vmatpush1.msra.mxu0 0.0
      %1897 = vmatprep.subr.mxu0 0.0
      %1898 = vmatpush1.msra.mxu0 0.0
      %1899 = vmatprep.subr.mxu0 0.0
      %1900 = vmatpush1.msra.mxu0 0.0
      %1901 = vmatprep.subr.mxu0 0.0
      %1902 = vmatpush1.msra.mxu0 0.0
      %1903 = vmatprep.subr.mxu0 0.0
      %1904 = vmatpush1.msra.mxu0 0.0
      %1905 = vmatprep.subr.mxu0 0.0
      %1906 = vmatpush1.msra.mxu0 0.0
      %1907 = vmatprep.subr.mxu0 0.0
      %1908 = vmatpush1.msra.mxu0 0.0
      %1909 = vmatprep.subr.mxu0 0.0
      %1910 = vmatpush1.msra.mxu0 0.0
      %1911 = vmatprep.mubr.f32.mxu0 0.0
      %1912 = vmatmul.mubr.f32.gmra.mrb[0].mxu0 %v1749
      %v1913 = vpop.f32.mrb[0].mxu0
      %v1914 = vadd.f32 0.0, %v1913
      %v1915 = vpop.f32.mrb[0].mxu0
      %1916 = vmatprep.mubr.f32.mxu0 0.0
      %1917 = vmatmul.mubr.f32.gmra.mrb[0].mxu0 %v1752
      %v1918 = vpop.f32.mrb[0].mxu0
      %v1919 = vadd.f32 0.0, %v1918
      %v1920 = vpop.f32.mrb[0].mxu0
      %1921 = vmatprep.mubr.f32.mxu0 0.0
      %1922 = vmatmul.mubr.f32.gmra.mrb[0].mxu0 %v1755
      %v1923 = vpop.f32.mrb[0].mxu0
      %v1924 = vadd.f32 0.0, %v1923
      %v1925 = vpop.f32.mrb[0].mxu0
      %1926 = vmatprep.mubr.f32.mxu0 0.0
      %1927 = vmatmul.mubr.f32.gmra.mrb[0].mxu0 %v1758
      %v1928 = vpop.f32.mrb[0].mxu0
      %v1929 = vadd.f32 0.0, %v1928
      %v1930 = vpop.f32.mrb[0].mxu0
      %1931 = vmatprep.mubr.f32.mxu0 0.0
      %1932 = vmatmul.mubr.f32.gmra.mrb[0].mxu0 %v1761
      %v1933 = vpop.f32.mrb[0].mxu0
      %v1934 = vadd.f32 0.0, %v1933
      %v1935 = vpop.f32.mrb[0].mxu0
      %1936 = vmatprep.mubr.f32.mxu0 0.0
      %1937 = vmatmul.mubr.f32.gmra.mrb[0].mxu0 %v1764
      %v1938 = vpop.f32.mrb[0].mxu0
      %v1939 = vadd.f32 0.0, %v1938
      %v1940 = vpop.f32.mrb[0].mxu0
      %1941 = vmatprep.mubr.f32.mxu0 0.0
      %1942 = vmatmul.mubr.f32.gmra.mrb[0].mxu0 %v1767
      %v1943 = vpop.f32.mrb[0].mxu0
      %v1944 = vadd.f32 0.0, %v1943
      %v1945 = vpop.f32.mrb[0].mxu0
      %1946 = vmatprep.mubr.f32.mxu0 0.0
      %1947 = vmatmul.mubr.f32.gmra.mrb[0].mxu0 %v1770
      %v1948 = vpop.f32.mrb[0].mxu0
      %v1949 = vadd.f32 0.0, %v1948
      %v1950 = vpop.f32.mrb[0].mxu0
      %1951 = vmatprep.mubr.f32.mxu0 0.0
      %1952 = vmatmul.mubr.f32.gmra.mrb[0].mxu0 %v1773
      %v1953 = vpop.f32.mrb[0].mxu0
      %v1954 = vadd.f32 0.0, %v1953
      %v1955 = vpop.f32.mrb[0].mxu0
      %1956 = vmatprep.mubr.f32.mxu0 0.0
      %1957 = vmatmul.mubr.f32.gmra.mrb[0].mxu0 %v1776
      %v1958 = vpop.f32.mrb[0].mxu0
      %v1959 = vadd.f32 0.0, %v1958
      %v1960 = vpop.f32.mrb[0].mxu0
      %1961 = vmatprep.mubr.f32.mxu0 0.0
      %1962 = vmatmul.mubr.f32.gmra.mrb[0].mxu0 %v1779
      %v1963 = vpop.f32.mrb[0].mxu0
      %v1964 = vadd.f32 0.0, %v1963
      %v1965 = vpop.f32.mrb[0].mxu0
      %1966 = vmatprep.mubr.f32.mxu0 0.0
      %1967 = vmatmul.mubr.f32.gmra.mrb[0].mxu0 %v1782
      %v1968 = vpop.f32.mrb[0].mxu0
      %v1969 = vadd.f32 0.0, %v1968
      %v1970 = vpop.f32.mrb[0].mxu0
      %1971 = vmatprep.mubr.f32.mxu0 0.0
      %1972 = vmatmul.mubr.f32.gmra.mrb[0].mxu0 %v1785
      %v1973 = vpop.f32.mrb[0].mxu0
      %v1974 = vadd.f32 0.0, %v1973
      %v1975 = vpop.f32.mrb[0].mxu0
      %1976 = vmatprep.mubr.f32.mxu0 0.0
      %1977 = vmatmul.mubr.f32.gmra.mrb[0].mxu0 %v1788
      %v1978 = vpop.f32.mrb[0].mxu0
      %v1979 = vadd.f32 0.0, %v1978
      %v1980 = vpop.f32.mrb[0].mxu0
      %1981 = vmatprep.mubr.f32.mxu0 0.0
      %1982 = vmatmul.mubr.f32.gmra.mrb[0].mxu0 %v1791
      %v1983 = vpop.f32.mrb[0].mxu0
      %v1984 = vadd.f32 0.0, %v1983
      %v1985 = vpop.f32.mrb[0].mxu0
      %1986 = vmatprep.mubr.f32.mxu0 0.0
      %1987 = vmatmul.mubr.f32.gmra.mrb[0].mxu0 %v1794
      %v1988 = vpop.f32.mrb[0].mxu0
      %v1989 = vadd.f32 0.0, %v1988
      %v1990 = vpop.f32.mrb[0].mxu0
      %1991 = vmatprep.mubr.f32.mxu0 0.0
      %1992 = vmatmul.mubr.f32.gmra.mrb[0].mxu0 %v1797
      %v1993 = vpop.f32.mrb[0].mxu0
      %v1994 = vadd.f32 0.0, %v1993
      %v1995 = vpop.f32.mrb[0].mxu0
      %1996 = vmatprep.mubr.f32.mxu0 0.0
      %1997 = vmatmul.mubr.f32.gmra.mrb[0].mxu0 %v1800
      %v1998 = vpop.f32.mrb[0].mxu0
      %v1999 = vadd.f32 0.0, %v1998
      %v2000 = vpop.f32.mrb[0].mxu0
      %2001 = vmatprep.mubr.f32.mxu0 0.0
      %2002 = vmatmul.mubr.f32.gmra.mrb[0].mxu0 %v1803
      %v2003 = vpop.f32.mrb[0].mxu0
      %v2004 = vadd.f32 0.0, %v2003
      %v2005 = vpop.f32.mrb[0].mxu0
      %2006 = vmatprep.mubr.f32.mxu0 0.0
      %2007 = vmatmul.mubr.f32.gmra.mrb[0].mxu0 %v1806
      %v2008 = vpop.f32.mrb[0].mxu0
      %v2009 = vadd.f32 0.0, %v2008
      %v2010 = vpop.f32.mrb[0].mxu0
      %2011 = vmatprep.mubr.f32.mxu0 0.0
      %2012 = vmatmul.mubr.f32.gmra.mrb[0].mxu0 %v1809
      %v2013 = vpop.f32.mrb[0].mxu0
      %v2014 = vadd.f32 0.0, %v2013
      %v2015 = vpop.f32.mrb[0].mxu0
      %2016 = vmatprep.mubr.f32.mxu0 0.0
      %2017 = vmatmul.mubr.f32.gmra.mrb[0].mxu0 %v1812
      %v2018 = vpop.f32.mrb[0].mxu0
      %v2019 = vadd.f32 0.0, %v2018
      %v2020 = vpop.f32.mrb[0].mxu0
      %2021 = vmatprep.mubr.f32.mxu0 0.0
      %2022 = vmatmul.mubr.f32.gmra.mrb[0].mxu0 %v1815
      %v2023 = vpop.f32.mrb[0].mxu0
      %v2024 = vadd.f32 0.0, %v2023
      %v2025 = vpop.f32.mrb[0].mxu0
      %2026 = vmatprep.mubr.f32.mxu0 0.0
      %2027 = vmatmul.mubr.f32.gmra.mrb[0].mxu0 %v1818
      %v2028 = vpop.f32.mrb[0].mxu0
      %v2029 = vadd.f32 0.0, %v2028
      %v2030 = vpop.f32.mrb[0].mxu0
      %2031 = vmatprep.mubr.f32.mxu0 0.0
      %2032 = vmatmul.mubr.f32.gmra.mrb[0].mxu0 %v1821
      %v2033 = vpop.f32.mrb[0].mxu0
      %v2034 = vadd.f32 0.0, %v2033
      %v2035 = vpop.f32.mrb[0].mxu0
      %2036 = vmatprep.mubr.f32.mxu0 0.0
      %2037 = vmatmul.mubr.f32.gmra.mrb[0].mxu0 %v1824
      %v2038 = vpop.f32.mrb[0].mxu0
      %v2039 = vadd.f32 0.0, %v2038
      %v2040 = vpop.f32.mrb[0].mxu0
      %2041 = vmatprep.mubr.f32.mxu0 0.0
      %2042 = vmatmul.mubr.f32.gmra.mrb[0].mxu0 %v1827
      %v2043 = vpop.f32.mrb[0].mxu0
      %v2044 = vadd.f32 0.0, %v2043
      %v2045 = vpop.f32.mrb[0].mxu0
      %2046 = vmatprep.mubr.f32.mxu0 0.0
      %2047 = vmatmul.mubr.f32.gmra.mrb[0].mxu0 %v1830
      %v2048 = vpop.f32.mrb[0].mxu0
      %v2049 = vadd.f32 0.0, %v2048
      %v2050 = vpop.f32.mrb[0].mxu0
      %2051 = vmatprep.mubr.f32.mxu0 0.0
      %2052 = vmatmul.mubr.f32.gmra.mrb[0].mxu0 %v1833
      %v2053 = vpop.f32.mrb[0].mxu0
      %v2054 = vadd.f32 0.0, %v2053
      %v2055 = vpop.f32.mrb[0].mxu0
      %2056 = vmatprep.mubr.f32.mxu0 0.0
      %2057 = vmatmul.mubr.f32.gmra.mrb[0].mxu0 %v1836
      %v2058 = vpop.f32.mrb[0].mxu0
      %v2059 = vadd.f32 0.0, %v2058
      %v2060 = vpop.f32.mrb[0].mxu0
      %2061 = vmatprep.mubr.f32.mxu0 0.0
      %2062 = vmatmul.mubr.f32.gmra.mrb[0].mxu0 %v1839
      %v2063 = vpop.f32.mrb[0].mxu0
      %v2064 = vadd.f32 0.0, %v2063
      %v2065 = vpop.f32.mrb[0].mxu0
      %2066 = vmatprep.mubr.f32.mxu0 0.0
      %2067 = vmatmul.mubr.f32.gmra.mrb[0].mxu0 %v1842
      %v2068 = vpop.f32.mrb[0].mxu0
      %v2069 = vadd.f32 0.0, %v2068
      %v2070 = vpop.f32.mrb[0].mxu0
      %2071 = vdwg.mxu0
      %v2072 = vadd.f32 %v1524, %v1914
      %v2073 = vadd.f32 %v1529, %v1919
      %v2074 = vadd.f32 %v1534, %v1924
      %v2075 = vadd.f32 %v1539, %v1929
      %v2076 = vadd.f32 %v1544, %v1934
      %v2077 = vadd.f32 %v1549, %v1939
      %v2078 = vadd.f32 %v1554, %v1944
      %v2079 = vadd.f32 %v1559, %v1949
      %v2080 = vadd.f32 %v1564, %v1954
      %v2081 = vadd.f32 %v1569, %v1959
      %v2082 = vadd.f32 %v1574, %v1964
      %v2083 = vadd.f32 %v1579, %v1969
      %v2084 = vadd.f32 %v1584, %v1974
      %v2085 = vadd.f32 %v1589, %v1979
      %v2086 = vadd.f32 %v1594, %v1984
      %v2087 = vadd.f32 %v1599, %v1989
      %v2088 = vadd.f32 %v1604, %v1994
      %v2089 = vadd.f32 %v1609, %v1999
      %v2090 = vadd.f32 %v1614, %v2004
      %v2091 = vadd.f32 %v1619, %v2009
      %v2092 = vadd.f32 %v1624, %v2014
      %v2093 = vadd.f32 %v1629, %v2019
      %v2094 = vadd.f32 %v1634, %v2024
      %v2095 = vadd.f32 %v1639, %v2029
      %v2096 = vadd.f32 %v1644, %v2034
      %v2097 = vadd.f32 %v1649, %v2039
      %v2098 = vadd.f32 %v1654, %v2044
      %v2099 = vadd.f32 %v1659, %v2049
      %v2100 = vadd.f32 %v1664, %v2054
      %v2101 = vadd.f32 %v1669, %v2059
      %v2102 = vadd.f32 %v1674, %v2064
      %v2103 = vadd.f32 %v1679, %v2069
      %v2104 = vld [vmem:[#allocation2 + $0x17] sm:$0xff]
      %v2105 = vld [vmem:[#allocation2 + $0x1f] sm:$0xff]
      %v2106 = vld [vmem:[#allocation2 + $0x27] sm:$0xff]
      %v2107 = vld [vmem:[#allocation2 + $0x2f] sm:$0xff]
      %v2108 = vld [vmem:[#allocation2 + $0x37] sm:$0xff]
      %v2109 = vld [vmem:[#allocation2 + $0x3f] sm:$0xff]
      %v2110 = vld [vmem:[#allocation2 + $0x47] sm:$0xff]
      %v2111 = vld [vmem:[#allocation2 + $0x4f] sm:$0xff]
      %v2112 = vld [vmem:[#allocation2 + $0x57] sm:$0xff]
      %v2113 = vld [vmem:[#allocation2 + $0x5f] sm:$0xff]
      %v2114 = vld [vmem:[#allocation2 + $0x67] sm:$0xff]
      %v2115 = vld [vmem:[#allocation2 + $0x6f] sm:$0xff]
      %v2116 = vld [vmem:[#allocation2 + $0x77] sm:$0xff]
      %v2117 = vld [vmem:[#allocation2 + $0x7f] sm:$0xff]
      %v2118 = vld [vmem:[#allocation2 + $0x87] sm:$0xff]
      %v2119 = vld [vmem:[#allocation2 + $0x8f] sm:$0xff]
      %v2120 = vld [vmem:[#allocation2 + $0x97] sm:$0xff]
      %v2121 = vld [vmem:[#allocation2 + $0x9f] sm:$0xff]
      %v2122 = vld [vmem:[#allocation2 + $0xa7] sm:$0xff]
      %v2123 = vld [vmem:[#allocation2 + $0xaf] sm:$0xff]
      %v2124 = vld [vmem:[#allocation2 + $0xb7] sm:$0xff]
      %v2125 = vld [vmem:[#allocation2 + $0xbf] sm:$0xff]
      %v2126 = vld [vmem:[#allocation2 + $0xc7] sm:$0xff]
      %v2127 = vld [vmem:[#allocation2 + $0xcf] sm:$0xff]
      %v2128 = vld [vmem:[#allocation2 + $0xd7] sm:$0xff]
      %v2129 = vld [vmem:[#allocation2 + $0xdf] sm:$0xff]
      %v2130 = vld [vmem:[#allocation2 + $0xe7] sm:$0xff]
      %v2131 = vld [vmem:[#allocation2 + $0xef] sm:$0xff]
      %v2132 = vld [vmem:[#allocation2 + $0xf7] sm:$0xff]
      %v2133 = vld [vmem:[#allocation2 + $0xff] sm:$0xff]
      %v2134 = vld [vmem:[#allocation2 + $0x107] sm:$0xff]
      %v2135 = vld [vmem:[#allocation2 + $0x10f] sm:$0xff]
      %v2136 = vmul.f32 %v2104, %v806
      %v2137 = vmul.f32 %v2105, %v807
      %v2138 = vmul.f32 %v2106, %v808
      %v2139 = vmul.f32 %v2107, %v809
      %v2140 = vmul.f32 %v2108, %v810
      %v2141 = vmul.f32 %v2109, %v811
      %v2142 = vmul.f32 %v2110, %v812
      %v2143 = vmul.f32 %v2111, %v813
      %v2144 = vmul.f32 %v2112, %v814
      %v2145 = vmul.f32 %v2113, %v815
      %v2146 = vmul.f32 %v2114, %v816
      %v2147 = vmul.f32 %v2115, %v817
      %v2148 = vmul.f32 %v2116, %v818
      %v2149 = vmul.f32 %v2117, %v819
      %v2150 = vmul.f32 %v2118, %v820
      %v2151 = vmul.f32 %v2119, %v821
      %v2152 = vmul.f32 %v2120, %v822
      %v2153 = vmul.f32 %v2121, %v823
      %v2154 = vmul.f32 %v2122, %v824
      %v2155 = vmul.f32 %v2123, %v825
      %v2156 = vmul.f32 %v2124, %v826
      %v2157 = vmul.f32 %v2125, %v827
      %v2158 = vmul.f32 %v2126, %v828
      %v2159 = vmul.f32 %v2127, %v829
      %v2160 = vmul.f32 %v2128, %v830
      %v2161 = vmul.f32 %v2129, %v831
      %v2162 = vmul.f32 %v2130, %v832
      %v2163 = vmul.f32 %v2131, %v833
      %v2164 = vmul.f32 %v2132, %v834
      %v2165 = vmul.f32 %v2133, %v835
      %v2166 = vmul.f32 %v2134, %v836
      %v2167 = vmul.f32 %v2135, %v837
      %s2168 = scalar_lea.vmem %s210, 12
      %v2169 = vld [vmem:[%s2168] sm:$0x7]
      %v2171 = vsel %vm222, %v2136, 0
      %v2174 = vsel %vm222, %v2137, 0
      %v2177 = vsel %vm222, %v2138, 0
      %v2180 = vsel %vm222, %v2139, 0
      %v2183 = vsel %vm222, %v2140, 0
      %v2186 = vsel %vm222, %v2141, 0
      %v2189 = vsel %vm222, %v2142, 0
      %v2192 = vsel %vm222, %v2143, 0
      %v2195 = vsel %vm222, %v2144, 0
      %v2198 = vsel %vm222, %v2145, 0
      %v2201 = vsel %vm222, %v2146, 0
      %v2204 = vsel %vm222, %v2147, 0
      %v2207 = vsel %vm222, %v2148, 0
      %v2210 = vsel %vm222, %v2149, 0
      %v2213 = vsel %vm222, %v2150, 0
      %v2216 = vsel %vm222, %v2151, 0
      %v2219 = vsel %vm222, %v2152, 0
      %v2222 = vsel %vm222, %v2153, 0
      %v2225 = vsel %vm222, %v2154, 0
      %v2228 = vsel %vm222, %v2155, 0
      %v2231 = vsel %vm222, %v2156, 0
      %v2234 = vsel %vm222, %v2157, 0
      %v2237 = vsel %vm222, %v2158, 0
      %v2240 = vsel %vm222, %v2159, 0
      %v2243 = vsel %vm222, %v2160, 0
      %v2246 = vsel %vm222, %v2161, 0
      %v2249 = vsel %vm222, %v2162, 0
      %v2252 = vsel %vm222, %v2163, 0
      %v2255 = vsel %vm222, %v2164, 0
      %v2258 = vsel %vm222, %v2165, 0
      %v2261 = vsel %vm222, %v2166, 0
      %v2264 = vsel %vm222, %v2167, 0
      %v2267 = vsel %vm1129, %v2169, 0
      %2269 = vmatprep.subr.mxu0 0.0
      %2270 = vmatpush1.msra.mxu0 %v2267
      %2271 = vmatprep.subr.mxu0 0.0
      %2272 = vmatpush1.msra.mxu0 0.0
      %2273 = vmatprep.subr.mxu0 0.0
      %2274 = vmatpush1.msra.mxu0 0.0
      %2275 = vmatprep.subr.mxu0 0.0
      %2276 = vmatpush1.msra.mxu0 0.0
      %2277 = vmatprep.subr.mxu0 0.0
      %2278 = vmatpush1.msra.mxu0 0.0
      %2279 = vmatprep.subr.mxu0 0.0
      %2280 = vmatpush1.msra.mxu0 0.0
      %2281 = vmatprep.subr.mxu0 0.0
      %2282 = vmatpush1.msra.mxu0 0.0
      %2283 = vmatprep.subr.mxu0 0.0
      %2284 = vmatpush1.msra.mxu0 0.0
      %2285 = vmatprep.subr.mxu0 0.0
      %2286 = vmatpush1.msra.mxu0 0.0
      %2287 = vmatprep.subr.mxu0 0.0
      %2288 = vmatpush1.msra.mxu0 0.0
      %2289 = vmatprep.subr.mxu0 0.0
      %2290 = vmatpush1.msra.mxu0 0.0
      %2291 = vmatprep.subr.mxu0 0.0
      %2292 = vmatpush1.msra.mxu0 0.0
      %2293 = vmatprep.subr.mxu0 0.0
      %2294 = vmatpush1.msra.mxu0 0.0
      %2295 = vmatprep.subr.mxu0 0.0
      %2296 = vmatpush1.msra.mxu0 0.0
      %2297 = vmatprep.subr.mxu0 0.0
      %2298 = vmatpush1.msra.mxu0 0.0
      %2299 = vmatprep.subr.mxu0 0.0
      %2300 = vmatpush1.msra.mxu0 0.0
      %2301 = vmatprep.subr.mxu0 0.0
      %2302 = vmatpush1.msra.mxu0 0.0
      %2303 = vmatprep.subr.mxu0 0.0
      %2304 = vmatpush1.msra.mxu0 0.0
      %2305 = vmatprep.subr.mxu0 0.0
      %2306 = vmatpush1.msra.mxu0 0.0
      %2307 = vmatprep.subr.mxu0 0.0
      %2308 = vmatpush1.msra.mxu0 0.0
      %2309 = vmatprep.subr.mxu0 0.0
      %2310 = vmatpush1.msra.mxu0 0.0
      %2311 = vmatprep.subr.mxu0 0.0
      %2312 = vmatpush1.msra.mxu0 0.0
      %2313 = vmatprep.subr.mxu0 0.0
      %2314 = vmatpush1.msra.mxu0 0.0
      %2315 = vmatprep.subr.mxu0 0.0
      %2316 = vmatpush1.msra.mxu0 0.0
      %2317 = vmatprep.subr.mxu0 0.0
      %2318 = vmatpush1.msra.mxu0 0.0
      %2319 = vmatprep.subr.mxu0 0.0
      %2320 = vmatpush1.msra.mxu0 0.0
      %2321 = vmatprep.subr.mxu0 0.0
      %2322 = vmatpush1.msra.mxu0 0.0
      %2323 = vmatprep.subr.mxu0 0.0
      %2324 = vmatpush1.msra.mxu0 0.0
      %2325 = vmatprep.subr.mxu0 0.0
      %2326 = vmatpush1.msra.mxu0 0.0
      %2327 = vmatprep.subr.mxu0 0.0
      %2328 = vmatpush1.msra.mxu0 0.0
      %2329 = vmatprep.subr.mxu0 0.0
      %2330 = vmatpush1.msra.mxu0 0.0
      %2331 = vmatprep.subr.mxu0 0.0
      %2332 = vmatpush1.msra.mxu0 0.0
      %2333 = vmatprep.mubr.f32.mxu0 0.0
      %2334 = vmatmul.mubr.f32.gmra.mrb[0].mxu0 %v2171
      %v2335 = vpop.f32.mrb[0].mxu0
      %v2336 = vadd.f32 0.0, %v2335
      %v2337 = vpop.f32.mrb[0].mxu0
      %2338 = vmatprep.mubr.f32.mxu0 0.0
      %2339 = vmatmul.mubr.f32.gmra.mrb[0].mxu0 %v2174
      %v2340 = vpop.f32.mrb[0].mxu0
      %v2341 = vadd.f32 0.0, %v2340
      %v2342 = vpop.f32.mrb[0].mxu0
      %2343 = vmatprep.mubr.f32.mxu0 0.0
      %2344 = vmatmul.mubr.f32.gmra.mrb[0].mxu0 %v2177
      %v2345 = vpop.f32.mrb[0].mxu0
      %v2346 = vadd.f32 0.0, %v2345
      %v2347 = vpop.f32.mrb[0].mxu0
      %2348 = vmatprep.mubr.f32.mxu0 0.0
      %2349 = vmatmul.mubr.f32.gmra.mrb[0].mxu0 %v2180
      %v2350 = vpop.f32.mrb[0].mxu0
      %v2351 = vadd.f32 0.0, %v2350
      %v2352 = vpop.f32.mrb[0].mxu0
      %2353 = vmatprep.mubr.f32.mxu0 0.0
      %2354 = vmatmul.mubr.f32.gmra.mrb[0].mxu0 %v2183
      %v2355 = vpop.f32.mrb[0].mxu0
      %v2356 = vadd.f32 0.0, %v2355
      %v2357 = vpop.f32.mrb[0].mxu0
      %2358 = vmatprep.mubr.f32.mxu0 0.0
      %2359 = vmatmul.mubr.f32.gmra.mrb[0].mxu0 %v2186
      %v2360 = vpop.f32.mrb[0].mxu0
      %v2361 = vadd.f32 0.0, %v2360
      %v2362 = vpop.f32.mrb[0].mxu0
      %2363 = vmatprep.mubr.f32.mxu0 0.0
      %2364 = vmatmul.mubr.f32.gmra.mrb[0].mxu0 %v2189
      %v2365 = vpop.f32.mrb[0].mxu0
      %v2366 = vadd.f32 0.0, %v2365
      %v2367 = vpop.f32.mrb[0].mxu0
      %2368 = vmatprep.mubr.f32.mxu0 0.0
      %2369 = vmatmul.mubr.f32.gmra.mrb[0].mxu0 %v2192
      %v2370 = vpop.f32.mrb[0].mxu0
      %v2371 = vadd.f32 0.0, %v2370
      %v2372 = vpop.f32.mrb[0].mxu0
      %2373 = vmatprep.mubr.f32.mxu0 0.0
      %2374 = vmatmul.mubr.f32.gmra.mrb[0].mxu0 %v2195
      %v2375 = vpop.f32.mrb[0].mxu0
      %v2376 = vadd.f32 0.0, %v2375
      %v2377 = vpop.f32.mrb[0].mxu0
      %2378 = vmatprep.mubr.f32.mxu0 0.0
      %2379 = vmatmul.mubr.f32.gmra.mrb[0].mxu0 %v2198
      %v2380 = vpop.f32.mrb[0].mxu0
      %v2381 = vadd.f32 0.0, %v2380
      %v2382 = vpop.f32.mrb[0].mxu0
      %2383 = vmatprep.mubr.f32.mxu0 0.0
      %2384 = vmatmul.mubr.f32.gmra.mrb[0].mxu0 %v2201
      %v2385 = vpop.f32.mrb[0].mxu0
      %v2386 = vadd.f32 0.0, %v2385
      %v2387 = vpop.f32.mrb[0].mxu0
      %2388 = vmatprep.mubr.f32.mxu0 0.0
      %2389 = vmatmul.mubr.f32.gmra.mrb[0].mxu0 %v2204
      %v2390 = vpop.f32.mrb[0].mxu0
      %v2391 = vadd.f32 0.0, %v2390
      %v2392 = vpop.f32.mrb[0].mxu0
      %2393 = vmatprep.mubr.f32.mxu0 0.0
      %2394 = vmatmul.mubr.f32.gmra.mrb[0].mxu0 %v2207
      %v2395 = vpop.f32.mrb[0].mxu0
      %v2396 = vadd.f32 0.0, %v2395
      %v2397 = vpop.f32.mrb[0].mxu0
      %2398 = vmatprep.mubr.f32.mxu0 0.0
      %2399 = vmatmul.mubr.f32.gmra.mrb[0].mxu0 %v2210
      %v2400 = vpop.f32.mrb[0].mxu0
      %v2401 = vadd.f32 0.0, %v2400
      %v2402 = vpop.f32.mrb[0].mxu0
      %2403 = vmatprep.mubr.f32.mxu0 0.0
      %2404 = vmatmul.mubr.f32.gmra.mrb[0].mxu0 %v2213
      %v2405 = vpop.f32.mrb[0].mxu0
      %v2406 = vadd.f32 0.0, %v2405
      %v2407 = vpop.f32.mrb[0].mxu0
      %2408 = vmatprep.mubr.f32.mxu0 0.0
      %2409 = vmatmul.mubr.f32.gmra.mrb[0].mxu0 %v2216
      %v2410 = vpop.f32.mrb[0].mxu0
      %v2411 = vadd.f32 0.0, %v2410
      %v2412 = vpop.f32.mrb[0].mxu0
      %2413 = vmatprep.mubr.f32.mxu0 0.0
      %2414 = vmatmul.mubr.f32.gmra.mrb[0].mxu0 %v2219
      %v2415 = vpop.f32.mrb[0].mxu0
      %v2416 = vadd.f32 0.0, %v2415
      %v2417 = vpop.f32.mrb[0].mxu0
      %2418 = vmatprep.mubr.f32.mxu0 0.0
      %2419 = vmatmul.mubr.f32.gmra.mrb[0].mxu0 %v2222
      %v2420 = vpop.f32.mrb[0].mxu0
      %v2421 = vadd.f32 0.0, %v2420
      %v2422 = vpop.f32.mrb[0].mxu0
      %2423 = vmatprep.mubr.f32.mxu0 0.0
      %2424 = vmatmul.mubr.f32.gmra.mrb[0].mxu0 %v2225
      %v2425 = vpop.f32.mrb[0].mxu0
      %v2426 = vadd.f32 0.0, %v2425
      %v2427 = vpop.f32.mrb[0].mxu0
      %2428 = vmatprep.mubr.f32.mxu0 0.0
      %2429 = vmatmul.mubr.f32.gmra.mrb[0].mxu0 %v2228
      %v2430 = vpop.f32.mrb[0].mxu0
      %v2431 = vadd.f32 0.0, %v2430
      %v2432 = vpop.f32.mrb[0].mxu0
      %2433 = vmatprep.mubr.f32.mxu0 0.0
      %2434 = vmatmul.mubr.f32.gmra.mrb[0].mxu0 %v2231
      %v2435 = vpop.f32.mrb[0].mxu0
      %v2436 = vadd.f32 0.0, %v2435
      %v2437 = vpop.f32.mrb[0].mxu0
      %2438 = vmatprep.mubr.f32.mxu0 0.0
      %2439 = vmatmul.mubr.f32.gmra.mrb[0].mxu0 %v2234
      %v2440 = vpop.f32.mrb[0].mxu0
      %v2441 = vadd.f32 0.0, %v2440
      %v2442 = vpop.f32.mrb[0].mxu0
      %2443 = vmatprep.mubr.f32.mxu0 0.0
      %2444 = vmatmul.mubr.f32.gmra.mrb[0].mxu0 %v2237
      %v2445 = vpop.f32.mrb[0].mxu0
      %v2446 = vadd.f32 0.0, %v2445
      %v2447 = vpop.f32.mrb[0].mxu0
      %2448 = vmatprep.mubr.f32.mxu0 0.0
      %2449 = vmatmul.mubr.f32.gmra.mrb[0].mxu0 %v2240
      %v2450 = vpop.f32.mrb[0].mxu0
      %v2451 = vadd.f32 0.0, %v2450
      %v2452 = vpop.f32.mrb[0].mxu0
      %2453 = vmatprep.mubr.f32.mxu0 0.0
      %2454 = vmatmul.mubr.f32.gmra.mrb[0].mxu0 %v2243
      %v2455 = vpop.f32.mrb[0].mxu0
      %v2456 = vadd.f32 0.0, %v2455
      %v2457 = vpop.f32.mrb[0].mxu0
      %2458 = vmatprep.mubr.f32.mxu0 0.0
      %2459 = vmatmul.mubr.f32.gmra.mrb[0].mxu0 %v2246
      %v2460 = vpop.f32.mrb[0].mxu0
      %v2461 = vadd.f32 0.0, %v2460
      %v2462 = vpop.f32.mrb[0].mxu0
      %2463 = vmatprep.mubr.f32.mxu0 0.0
      %2464 = vmatmul.mubr.f32.gmra.mrb[0].mxu0 %v2249
      %v2465 = vpop.f32.mrb[0].mxu0
      %v2466 = vadd.f32 0.0, %v2465
      %v2467 = vpop.f32.mrb[0].mxu0
      %2468 = vmatprep.mubr.f32.mxu0 0.0
      %2469 = vmatmul.mubr.f32.gmra.mrb[0].mxu0 %v2252
      %v2470 = vpop.f32.mrb[0].mxu0
      %v2471 = vadd.f32 0.0, %v2470
      %v2472 = vpop.f32.mrb[0].mxu0
      %2473 = vmatprep.mubr.f32.mxu0 0.0
      %2474 = vmatmul.mubr.f32.gmra.mrb[0].mxu0 %v2255
      %v2475 = vpop.f32.mrb[0].mxu0
      %v2476 = vadd.f32 0.0, %v2475
      %v2477 = vpop.f32.mrb[0].mxu0
      %2478 = vmatprep.mubr.f32.mxu0 0.0
      %2479 = vmatmul.mubr.f32.gmra.mrb[0].mxu0 %v2258
      %v2480 = vpop.f32.mrb[0].mxu0
      %v2481 = vadd.f32 0.0, %v2480
      %v2482 = vpop.f32.mrb[0].mxu0
      %2483 = vmatprep.mubr.f32.mxu0 0.0
      %2484 = vmatmul.mubr.f32.gmra.mrb[0].mxu0 %v2261
      %v2485 = vpop.f32.mrb[0].mxu0
      %v2486 = vadd.f32 0.0, %v2485
      %v2487 = vpop.f32.mrb[0].mxu0
      %2488 = vmatprep.mubr.f32.mxu0 0.0
      %2489 = vmatmul.mubr.f32.gmra.mrb[0].mxu0 %v2264
      %v2490 = vpop.f32.mrb[0].mxu0
      %v2491 = vadd.f32 0.0, %v2490
      %v2492 = vpop.f32.mrb[0].mxu0
      %2493 = vdwg.mxu0
      %v2494 = vadd.f32 %v2072, %v2336
      %v2495 = vadd.f32 %v2073, %v2341
      %v2496 = vadd.f32 %v2074, %v2346
      %v2497 = vadd.f32 %v2075, %v2351
      %v2498 = vadd.f32 %v2076, %v2356
      %v2499 = vadd.f32 %v2077, %v2361
      %v2500 = vadd.f32 %v2078, %v2366
      %v2501 = vadd.f32 %v2079, %v2371
      %v2502 = vadd.f32 %v2080, %v2376
      %v2503 = vadd.f32 %v2081, %v2381
      %v2504 = vadd.f32 %v2082, %v2386
      %v2505 = vadd.f32 %v2083, %v2391
      %v2506 = vadd.f32 %v2084, %v2396
      %v2507 = vadd.f32 %v2085, %v2401
      %v2508 = vadd.f32 %v2086, %v2406
      %v2509 = vadd.f32 %v2087, %v2411
      %v2510 = vadd.f32 %v2088, %v2416
      %v2511 = vadd.f32 %v2089, %v2421
      %v2512 = vadd.f32 %v2090, %v2426
      %v2513 = vadd.f32 %v2091, %v2431
      %v2514 = vadd.f32 %v2092, %v2436
      %v2515 = vadd.f32 %v2093, %v2441
      %v2516 = vadd.f32 %v2094, %v2446
      %v2517 = vadd.f32 %v2095, %v2451
      %v2518 = vadd.f32 %v2096, %v2456
      %v2519 = vadd.f32 %v2097, %v2461
      %v2520 = vadd.f32 %v2098, %v2466
      %v2521 = vadd.f32 %v2099, %v2471
      %v2522 = vadd.f32 %v2100, %v2476
      %v2523 = vadd.f32 %v2101, %v2481
      %v2524 = vadd.f32 %v2102, %v2486
      %v2525 = vadd.f32 %v2103, %v2491
      %v2526 = vld [vmem:[#allocation2 + $0x18] sm:$0xff]
      %v2527 = vld [vmem:[#allocation2 + $0x20] sm:$0xff]
      %v2528 = vld [vmem:[#allocation2 + $0x28] sm:$0xff]
      %v2529 = vld [vmem:[#allocation2 + $0x30] sm:$0xff]
      %v2530 = vld [vmem:[#allocation2 + $0x38] sm:$0xff]
      %v2531 = vld [vmem:[#allocation2 + $0x40] sm:$0xff]
      %v2532 = vld [vmem:[#allocation2 + $0x48] sm:$0xff]
      %v2533 = vld [vmem:[#allocation2 + $0x50] sm:$0xff]
      %v2534 = vld [vmem:[#allocation2 + $0x58] sm:$0xff]
      %v2535 = vld [vmem:[#allocation2 + $0x60] sm:$0xff]
      %v2536 = vld [vmem:[#allocation2 + $0x68] sm:$0xff]
      %v2537 = vld [vmem:[#allocation2 + $0x70] sm:$0xff]
      %v2538 = vld [vmem:[#allocation2 + $0x78] sm:$0xff]
      %v2539 = vld [vmem:[#allocation2 + $0x80] sm:$0xff]
      %v2540 = vld [vmem:[#allocation2 + $0x88] sm:$0xff]
      %v2541 = vld [vmem:[#allocation2 + $0x90] sm:$0xff]
      %v2542 = vld [vmem:[#allocation2 + $0x98] sm:$0xff]
      %v2543 = vld [vmem:[#allocation2 + $0xa0] sm:$0xff]
      %v2544 = vld [vmem:[#allocation2 + $0xa8] sm:$0xff]
      %v2545 = vld [vmem:[#allocation2 + $0xb0] sm:$0xff]
      %v2546 = vld [vmem:[#allocation2 + $0xb8] sm:$0xff]
      %v2547 = vld [vmem:[#allocation2 + $0xc0] sm:$0xff]
      %v2548 = vld [vmem:[#allocation2 + $0xc8] sm:$0xff]
      %v2549 = vld [vmem:[#allocation2 + $0xd0] sm:$0xff]
      %v2550 = vld [vmem:[#allocation2 + $0xd8] sm:$0xff]
      %v2551 = vld [vmem:[#allocation2 + $0xe0] sm:$0xff]
      %v2552 = vld [vmem:[#allocation2 + $0xe8] sm:$0xff]
      %v2553 = vld [vmem:[#allocation2 + $0xf0] sm:$0xff]
      %v2554 = vld [vmem:[#allocation2 + $0xf8] sm:$0xff]
      %v2555 = vld [vmem:[#allocation2 + $0x100] sm:$0xff]
      %v2556 = vld [vmem:[#allocation2 + $0x108] sm:$0xff]
      %v2557 = vld [vmem:[#allocation2 + $0x110] sm:$0xff]
      %s2558 = scalar_lea.vmem %s210, 16
      %v2559 = vld [vmem:[%s2558] sm:$0x7]
      %v2561 = vsel %vm222, %v2526, 0
      %v2564 = vsel %vm222, %v2527, 0
      %v2567 = vsel %vm222, %v2528, 0
      %v2570 = vsel %vm222, %v2529, 0
      %v2573 = vsel %vm222, %v2530, 0
      %v2576 = vsel %vm222, %v2531, 0
      %v2579 = vsel %vm222, %v2532, 0
      %v2582 = vsel %vm222, %v2533, 0
      %v2585 = vsel %vm222, %v2534, 0
      %v2588 = vsel %vm222, %v2535, 0
      %v2591 = vsel %vm222, %v2536, 0
      %v2594 = vsel %vm222, %v2537, 0
      %v2597 = vsel %vm222, %v2538, 0
      %v2600 = vsel %vm222, %v2539, 0
      %v2603 = vsel %vm222, %v2540, 0
      %v2606 = vsel %vm222, %v2541, 0
      %v2609 = vsel %vm222, %v2542, 0
      %v2612 = vsel %vm222, %v2543, 0
      %v2615 = vsel %vm222, %v2544, 0
      %v2618 = vsel %vm222, %v2545, 0
      %v2621 = vsel %vm222, %v2546, 0
      %v2624 = vsel %vm222, %v2547, 0
      %v2627 = vsel %vm222, %v2548, 0
      %v2630 = vsel %vm222, %v2549, 0
      %v2633 = vsel %vm222, %v2550, 0
      %v2636 = vsel %vm222, %v2551, 0
      %v2639 = vsel %vm222, %v2552, 0
      %v2642 = vsel %vm222, %v2553, 0
      %v2645 = vsel %vm222, %v2554, 0
      %v2648 = vsel %vm222, %v2555, 0
      %v2651 = vsel %vm222, %v2556, 0
      %v2654 = vsel %vm222, %v2557, 0
      %v2657 = vsel %vm1129, %v2559, 0
      %2659 = vmatprep.subr.mxu0 0.0
      %2660 = vmatpush1.msra.mxu0 %v2657
      %2661 = vmatprep.subr.mxu0 0.0
      %2662 = vmatpush1.msra.mxu0 0.0
      %2663 = vmatprep.subr.mxu0 0.0
      %2664 = vmatpush1.msra.mxu0 0.0
      %2665 = vmatprep.subr.mxu0 0.0
      %2666 = vmatpush1.msra.mxu0 0.0
      %2667 = vmatprep.subr.mxu0 0.0
      %2668 = vmatpush1.msra.mxu0 0.0
      %2669 = vmatprep.subr.mxu0 0.0
      %2670 = vmatpush1.msra.mxu0 0.0
      %2671 = vmatprep.subr.mxu0 0.0
      %2672 = vmatpush1.msra.mxu0 0.0
      %2673 = vmatprep.subr.mxu0 0.0
      %2674 = vmatpush1.msra.mxu0 0.0
      %2675 = vmatprep.subr.mxu0 0.0
      %2676 = vmatpush1.msra.mxu0 0.0
      %2677 = vmatprep.subr.mxu0 0.0
      %2678 = vmatpush1.msra.mxu0 0.0
      %2679 = vmatprep.subr.mxu0 0.0
      %2680 = vmatpush1.msra.mxu0 0.0
      %2681 = vmatprep.subr.mxu0 0.0
      %2682 = vmatpush1.msra.mxu0 0.0
      %2683 = vmatprep.subr.mxu0 0.0
      %2684 = vmatpush1.msra.mxu0 0.0
      %2685 = vmatprep.subr.mxu0 0.0
      %2686 = vmatpush1.msra.mxu0 0.0
      %2687 = vmatprep.subr.mxu0 0.0
      %2688 = vmatpush1.msra.mxu0 0.0
      %2689 = vmatprep.subr.mxu0 0.0
      %2690 = vmatpush1.msra.mxu0 0.0
      %2691 = vmatprep.subr.mxu0 0.0
      %2692 = vmatpush1.msra.mxu0 0.0
      %2693 = vmatprep.subr.mxu0 0.0
      %2694 = vmatpush1.msra.mxu0 0.0
      %2695 = vmatprep.subr.mxu0 0.0
      %2696 = vmatpush1.msra.mxu0 0.0
      %2697 = vmatprep.subr.mxu0 0.0
      %2698 = vmatpush1.msra.mxu0 0.0
      %2699 = vmatprep.subr.mxu0 0.0
      %2700 = vmatpush1.msra.mxu0 0.0
      %2701 = vmatprep.subr.mxu0 0.0
      %2702 = vmatpush1.msra.mxu0 0.0
      %2703 = vmatprep.subr.mxu0 0.0
      %2704 = vmatpush1.msra.mxu0 0.0
      %2705 = vmatprep.subr.mxu0 0.0
      %2706 = vmatpush1.msra.mxu0 0.0
      %2707 = vmatprep.subr.mxu0 0.0
      %2708 = vmatpush1.msra.mxu0 0.0
      %2709 = vmatprep.subr.mxu0 0.0
      %2710 = vmatpush1.msra.mxu0 0.0
      %2711 = vmatprep.subr.mxu0 0.0
      %2712 = vmatpush1.msra.mxu0 0.0
      %2713 = vmatprep.subr.mxu0 0.0
      %2714 = vmatpush1.msra.mxu0 0.0
      %2715 = vmatprep.subr.mxu0 0.0
      %2716 = vmatpush1.msra.mxu0 0.0
      %2717 = vmatprep.subr.mxu0 0.0
      %2718 = vmatpush1.msra.mxu0 0.0
      %2719 = vmatprep.subr.mxu0 0.0
      %2720 = vmatpush1.msra.mxu0 0.0
      %2721 = vmatprep.subr.mxu0 0.0
      %2722 = vmatpush1.msra.mxu0 0.0
      %2723 = vmatprep.mubr.f32.mxu0 0.0
      %2724 = vmatmul.mubr.f32.gmra.mrb[0].mxu0 %v2561
      %v2725 = vpop.f32.mrb[0].mxu0
      %v2726 = vadd.f32 0.0, %v2725
      %v2727 = vpop.f32.mrb[0].mxu0
      %2728 = vmatprep.mubr.f32.mxu0 0.0
      %2729 = vmatmul.mubr.f32.gmra.mrb[0].mxu0 %v2564
      %v2730 = vpop.f32.mrb[0].mxu0
      %v2731 = vadd.f32 0.0, %v2730
      %v2732 = vpop.f32.mrb[0].mxu0
      %2733 = vmatprep.mubr.f32.mxu0 0.0
      %2734 = vmatmul.mubr.f32.gmra.mrb[0].mxu0 %v2567
      %v2735 = vpop.f32.mrb[0].mxu0
      %v2736 = vadd.f32 0.0, %v2735
      %v2737 = vpop.f32.mrb[0].mxu0
      %2738 = vmatprep.mubr.f32.mxu0 0.0
      %2739 = vmatmul.mubr.f32.gmra.mrb[0].mxu0 %v2570
      %v2740 = vpop.f32.mrb[0].mxu0
      %v2741 = vadd.f32 0.0, %v2740
      %v2742 = vpop.f32.mrb[0].mxu0
      %2743 = vmatprep.mubr.f32.mxu0 0.0
      %2744 = vmatmul.mubr.f32.gmra.mrb[0].mxu0 %v2573
      %v2745 = vpop.f32.mrb[0].mxu0
      %v2746 = vadd.f32 0.0, %v2745
      %v2747 = vpop.f32.mrb[0].mxu0
      %2748 = vmatprep.mubr.f32.mxu0 0.0
      %2749 = vmatmul.mubr.f32.gmra.mrb[0].mxu0 %v2576
      %v2750 = vpop.f32.mrb[0].mxu0
      %v2751 = vadd.f32 0.0, %v2750
      %v2752 = vpop.f32.mrb[0].mxu0
      %2753 = vmatprep.mubr.f32.mxu0 0.0
      %2754 = vmatmul.mubr.f32.gmra.mrb[0].mxu0 %v2579
      %v2755 = vpop.f32.mrb[0].mxu0
      %v2756 = vadd.f32 0.0, %v2755
      %v2757 = vpop.f32.mrb[0].mxu0
      %2758 = vmatprep.mubr.f32.mxu0 0.0
      %2759 = vmatmul.mubr.f32.gmra.mrb[0].mxu0 %v2582
      %v2760 = vpop.f32.mrb[0].mxu0
      %v2761 = vadd.f32 0.0, %v2760
      %v2762 = vpop.f32.mrb[0].mxu0
      %2763 = vmatprep.mubr.f32.mxu0 0.0
      %2764 = vmatmul.mubr.f32.gmra.mrb[0].mxu0 %v2585
      %v2765 = vpop.f32.mrb[0].mxu0
      %v2766 = vadd.f32 0.0, %v2765
      %v2767 = vpop.f32.mrb[0].mxu0
      %2768 = vmatprep.mubr.f32.mxu0 0.0
      %2769 = vmatmul.mubr.f32.gmra.mrb[0].mxu0 %v2588
      %v2770 = vpop.f32.mrb[0].mxu0
      %v2771 = vadd.f32 0.0, %v2770
      %v2772 = vpop.f32.mrb[0].mxu0
      %2773 = vmatprep.mubr.f32.mxu0 0.0
      %2774 = vmatmul.mubr.f32.gmra.mrb[0].mxu0 %v2591
      %v2775 = vpop.f32.mrb[0].mxu0
      %v2776 = vadd.f32 0.0, %v2775
      %v2777 = vpop.f32.mrb[0].mxu0
      %2778 = vmatprep.mubr.f32.mxu0 0.0
      %2779 = vmatmul.mubr.f32.gmra.mrb[0].mxu0 %v2594
      %v2780 = vpop.f32.mrb[0].mxu0
      %v2781 = vadd.f32 0.0, %v2780
      %v2782 = vpop.f32.mrb[0].mxu0
      %2783 = vmatprep.mubr.f32.mxu0 0.0
      %2784 = vmatmul.mubr.f32.gmra.mrb[0].mxu0 %v2597
      %v2785 = vpop.f32.mrb[0].mxu0
      %v2786 = vadd.f32 0.0, %v2785
      %v2787 = vpop.f32.mrb[0].mxu0
      %2788 = vmatprep.mubr.f32.mxu0 0.0
      %2789 = vmatmul.mubr.f32.gmra.mrb[0].mxu0 %v2600
      %v2790 = vpop.f32.mrb[0].mxu0
      %v2791 = vadd.f32 0.0, %v2790
      %v2792 = vpop.f32.mrb[0].mxu0
      %2793 = vmatprep.mubr.f32.mxu0 0.0
      %2794 = vmatmul.mubr.f32.gmra.mrb[0].mxu0 %v2603
      %v2795 = vpop.f32.mrb[0].mxu0
      %v2796 = vadd.f32 0.0, %v2795
      %v2797 = vpop.f32.mrb[0].mxu0
      %2798 = vmatprep.mubr.f32.mxu0 0.0
      %2799 = vmatmul.mubr.f32.gmra.mrb[0].mxu0 %v2606
      %v2800 = vpop.f32.mrb[0].mxu0
      %v2801 = vadd.f32 0.0, %v2800
      %v2802 = vpop.f32.mrb[0].mxu0
      %2803 = vmatprep.mubr.f32.mxu0 0.0
      %2804 = vmatmul.mubr.f32.gmra.mrb[0].mxu0 %v2609
      %v2805 = vpop.f32.mrb[0].mxu0
      %v2806 = vadd.f32 0.0, %v2805
      %v2807 = vpop.f32.mrb[0].mxu0
      %2808 = vmatprep.mubr.f32.mxu0 0.0
      %2809 = vmatmul.mubr.f32.gmra.mrb[0].mxu0 %v2612
      %v2810 = vpop.f32.mrb[0].mxu0
      %v2811 = vadd.f32 0.0, %v2810
      %v2812 = vpop.f32.mrb[0].mxu0
      %2813 = vmatprep.mubr.f32.mxu0 0.0
      %2814 = vmatmul.mubr.f32.gmra.mrb[0].mxu0 %v2615
      %v2815 = vpop.f32.mrb[0].mxu0
      %v2816 = vadd.f32 0.0, %v2815
      %v2817 = vpop.f32.mrb[0].mxu0
      %2818 = vmatprep.mubr.f32.mxu0 0.0
      %2819 = vmatmul.mubr.f32.gmra.mrb[0].mxu0 %v2618
      %v2820 = vpop.f32.mrb[0].mxu0
      %v2821 = vadd.f32 0.0, %v2820
      %v2822 = vpop.f32.mrb[0].mxu0
      %2823 = vmatprep.mubr.f32.mxu0 0.0
      %2824 = vmatmul.mubr.f32.gmra.mrb[0].mxu0 %v2621
      %v2825 = vpop.f32.mrb[0].mxu0
      %v2826 = vadd.f32 0.0, %v2825
      %v2827 = vpop.f32.mrb[0].mxu0
      %2828 = vmatprep.mubr.f32.mxu0 0.0
      %2829 = vmatmul.mubr.f32.gmra.mrb[0].mxu0 %v2624
      %v2830 = vpop.f32.mrb[0].mxu0
      %v2831 = vadd.f32 0.0, %v2830
      %v2832 = vpop.f32.mrb[0].mxu0
      %2833 = vmatprep.mubr.f32.mxu0 0.0
      %2834 = vmatmul.mubr.f32.gmra.mrb[0].mxu0 %v2627
      %v2835 = vpop.f32.mrb[0].mxu0
      %v2836 = vadd.f32 0.0, %v2835
      %v2837 = vpop.f32.mrb[0].mxu0
      %2838 = vmatprep.mubr.f32.mxu0 0.0
      %2839 = vmatmul.mubr.f32.gmra.mrb[0].mxu0 %v2630
      %v2840 = vpop.f32.mrb[0].mxu0
      %v2841 = vadd.f32 0.0, %v2840
      %v2842 = vpop.f32.mrb[0].mxu0
      %2843 = vmatprep.mubr.f32.mxu0 0.0
      %2844 = vmatmul.mubr.f32.gmra.mrb[0].mxu0 %v2633
      %v2845 = vpop.f32.mrb[0].mxu0
      %v2846 = vadd.f32 0.0, %v2845
      %v2847 = vpop.f32.mrb[0].mxu0
      %2848 = vmatprep.mubr.f32.mxu0 0.0
      %2849 = vmatmul.mubr.f32.gmra.mrb[0].mxu0 %v2636
      %v2850 = vpop.f32.mrb[0].mxu0
      %v2851 = vadd.f32 0.0, %v2850
      %v2852 = vpop.f32.mrb[0].mxu0
      %2853 = vmatprep.mubr.f32.mxu0 0.0
      %2854 = vmatmul.mubr.f32.gmra.mrb[0].mxu0 %v2639
      %v2855 = vpop.f32.mrb[0].mxu0
      %v2856 = vadd.f32 0.0, %v2855
      %v2857 = vpop.f32.mrb[0].mxu0
      %2858 = vmatprep.mubr.f32.mxu0 0.0
      %2859 = vmatmul.mubr.f32.gmra.mrb[0].mxu0 %v2642
      %v2860 = vpop.f32.mrb[0].mxu0
      %v2861 = vadd.f32 0.0, %v2860
      %v2862 = vpop.f32.mrb[0].mxu0
      %2863 = vmatprep.mubr.f32.mxu0 0.0
      %2864 = vmatmul.mubr.f32.gmra.mrb[0].mxu0 %v2645
      %v2865 = vpop.f32.mrb[0].mxu0
      %v2866 = vadd.f32 0.0, %v2865
      %v2867 = vpop.f32.mrb[0].mxu0
      %2868 = vmatprep.mubr.f32.mxu0 0.0
      %2869 = vmatmul.mubr.f32.gmra.mrb[0].mxu0 %v2648
      %v2870 = vpop.f32.mrb[0].mxu0
      %v2871 = vadd.f32 0.0, %v2870
      %v2872 = vpop.f32.mrb[0].mxu0
      %2873 = vmatprep.mubr.f32.mxu0 0.0
      %2874 = vmatmul.mubr.f32.gmra.mrb[0].mxu0 %v2651
      %v2875 = vpop.f32.mrb[0].mxu0
      %v2876 = vadd.f32 0.0, %v2875
      %v2877 = vpop.f32.mrb[0].mxu0
      %2878 = vmatprep.mubr.f32.mxu0 0.0
      %2879 = vmatmul.mubr.f32.gmra.mrb[0].mxu0 %v2654
      %v2880 = vpop.f32.mrb[0].mxu0
      %v2881 = vadd.f32 0.0, %v2880
      %v2882 = vpop.f32.mrb[0].mxu0
      %2883 = vdwg.mxu0
      %v2884 = vadd.f32 %v2494, %v2726
      %v2885 = vadd.f32 %v2495, %v2731
      %v2886 = vadd.f32 %v2496, %v2736
      %v2887 = vadd.f32 %v2497, %v2741
      %v2888 = vadd.f32 %v2498, %v2746
      %v2889 = vadd.f32 %v2499, %v2751
      %v2890 = vadd.f32 %v2500, %v2756
      %v2891 = vadd.f32 %v2501, %v2761
      %v2892 = vadd.f32 %v2502, %v2766
      %v2893 = vadd.f32 %v2503, %v2771
      %v2894 = vadd.f32 %v2504, %v2776
      %v2895 = vadd.f32 %v2505, %v2781
      %v2896 = vadd.f32 %v2506, %v2786
      %v2897 = vadd.f32 %v2507, %v2791
      %v2898 = vadd.f32 %v2508, %v2796
      %v2899 = vadd.f32 %v2509, %v2801
      %v2900 = vadd.f32 %v2510, %v2806
      %v2901 = vadd.f32 %v2511, %v2811
      %v2902 = vadd.f32 %v2512, %v2816
      %v2903 = vadd.f32 %v2513, %v2821
      %v2904 = vadd.f32 %v2514, %v2826
      %v2905 = vadd.f32 %v2515, %v2831
      %v2906 = vadd.f32 %v2516, %v2836
      %v2907 = vadd.f32 %v2517, %v2841
      %v2908 = vadd.f32 %v2518, %v2846
      %v2909 = vadd.f32 %v2519, %v2851
      %v2910 = vadd.f32 %v2520, %v2856
      %v2911 = vadd.f32 %v2521, %v2861
      %v2912 = vadd.f32 %v2522, %v2866
      %v2913 = vadd.f32 %v2523, %v2871
      %v2914 = vadd.f32 %v2524, %v2876
      %v2915 = vadd.f32 %v2525, %v2881
      %v2916 = vld [vmem:[#allocation2 + $0x19] sm:$0xff]
      %v2917 = vld [vmem:[#allocation2 + $0x21] sm:$0xff]
      %v2918 = vld [vmem:[#allocation2 + $0x29] sm:$0xff]
      %v2919 = vld [vmem:[#allocation2 + $0x31] sm:$0xff]
      %v2920 = vld [vmem:[#allocation2 + $0x39] sm:$0xff]
      %v2921 = vld [vmem:[#allocation2 + $0x41] sm:$0xff]
      %v2922 = vld [vmem:[#allocation2 + $0x49] sm:$0xff]
      %v2923 = vld [vmem:[#allocation2 + $0x51] sm:$0xff]
      %v2924 = vld [vmem:[#allocation2 + $0x59] sm:$0xff]
      %v2925 = vld [vmem:[#allocation2 + $0x61] sm:$0xff]
      %v2926 = vld [vmem:[#allocation2 + $0x69] sm:$0xff]
      %v2927 = vld [vmem:[#allocation2 + $0x71] sm:$0xff]
      %v2928 = vld [vmem:[#allocation2 + $0x79] sm:$0xff]
      %v2929 = vld [vmem:[#allocation2 + $0x81] sm:$0xff]
      %v2930 = vld [vmem:[#allocation2 + $0x89] sm:$0xff]
      %v2931 = vld [vmem:[#allocation2 + $0x91] sm:$0xff]
      %v2932 = vld [vmem:[#allocation2 + $0x99] sm:$0xff]
      %v2933 = vld [vmem:[#allocation2 + $0xa1] sm:$0xff]
      %v2934 = vld [vmem:[#allocation2 + $0xa9] sm:$0xff]
      %v2935 = vld [vmem:[#allocation2 + $0xb1] sm:$0xff]
      %v2936 = vld [vmem:[#allocation2 + $0xb9] sm:$0xff]
      %v2937 = vld [vmem:[#allocation2 + $0xc1] sm:$0xff]
      %v2938 = vld [vmem:[#allocation2 + $0xc9] sm:$0xff]
      %v2939 = vld [vmem:[#allocation2 + $0xd1] sm:$0xff]
      %v2940 = vld [vmem:[#allocation2 + $0xd9] sm:$0xff]
      %v2941 = vld [vmem:[#allocation2 + $0xe1] sm:$0xff]
      %v2942 = vld [vmem:[#allocation2 + $0xe9] sm:$0xff]
      %v2943 = vld [vmem:[#allocation2 + $0xf1] sm:$0xff]
      %v2944 = vld [vmem:[#allocation2 + $0xf9] sm:$0xff]
      %v2945 = vld [vmem:[#allocation2 + $0x101] sm:$0xff]
      %v2946 = vld [vmem:[#allocation2 + $0x109] sm:$0xff]
      %v2947 = vld [vmem:[#allocation2 + $0x111] sm:$0xff]
      %v2948 = vmul.f32 %v2916, %v902
      %v2949 = vmul.f32 %v2917, %v903
      %v2950 = vmul.f32 %v2918, %v904
      %v2951 = vmul.f32 %v2919, %v905
      %v2952 = vmul.f32 %v2920, %v906
      %v2953 = vmul.f32 %v2921, %v907
      %v2954 = vmul.f32 %v2922, %v908
      %v2955 = vmul.f32 %v2923, %v909
      %v2956 = vmul.f32 %v2924, %v910
      %v2957 = vmul.f32 %v2925, %v911
      %v2958 = vmul.f32 %v2926, %v912
      %v2959 = vmul.f32 %v2927, %v913
      %v2960 = vmul.f32 %v2928, %v914
      %v2961 = vmul.f32 %v2929, %v915
      %v2962 = vmul.f32 %v2930, %v916
      %v2963 = vmul.f32 %v2931, %v917
      %v2964 = vmul.f32 %v2932, %v918
      %v2965 = vmul.f32 %v2933, %v919
      %v2966 = vmul.f32 %v2934, %v920
      %v2967 = vmul.f32 %v2935, %v921
      %v2968 = vmul.f32 %v2936, %v922
      %v2969 = vmul.f32 %v2937, %v923
      %v2970 = vmul.f32 %v2938, %v924
      %v2971 = vmul.f32 %v2939, %v925
      %v2972 = vmul.f32 %v2940, %v926
      %v2973 = vmul.f32 %v2941, %v927
      %v2974 = vmul.f32 %v2942, %v928
      %v2975 = vmul.f32 %v2943, %v929
      %v2976 = vmul.f32 %v2944, %v930
      %v2977 = vmul.f32 %v2945, %v931
      %v2978 = vmul.f32 %v2946, %v932
      %v2979 = vmul.f32 %v2947, %v933
      %s2980 = scalar_lea.vmem %s210, 20
      %v2981 = vld [vmem:[%s2980] sm:$0x7]
      %v2983 = vsel %vm222, %v2948, 0
      %v2986 = vsel %vm222, %v2949, 0
      %v2989 = vsel %vm222, %v2950, 0
      %v2992 = vsel %vm222, %v2951, 0
      %v2995 = vsel %vm222, %v2952, 0
      %v2998 = vsel %vm222, %v2953, 0
      %v3001 = vsel %vm222, %v2954, 0
      %v3004 = vsel %vm222, %v2955, 0
      %v3007 = vsel %vm222, %v2956, 0
      %v3010 = vsel %vm222, %v2957, 0
      %v3013 = vsel %vm222, %v2958, 0
      %v3016 = vsel %vm222, %v2959, 0
      %v3019 = vsel %vm222, %v2960, 0
      %v3022 = vsel %vm222, %v2961, 0
      %v3025 = vsel %vm222, %v2962, 0
      %v3028 = vsel %vm222, %v2963, 0
      %v3031 = vsel %vm222, %v2964, 0
      %v3034 = vsel %vm222, %v2965, 0
      %v3037 = vsel %vm222, %v2966, 0
      %v3040 = vsel %vm222, %v2967, 0
      %v3043 = vsel %vm222, %v2968, 0
      %v3046 = vsel %vm222, %v2969, 0
      %v3049 = vsel %vm222, %v2970, 0
      %v3052 = vsel %vm222, %v2971, 0
      %v3055 = vsel %vm222, %v2972, 0
      %v3058 = vsel %vm222, %v2973, 0
      %v3061 = vsel %vm222, %v2974, 0
      %v3064 = vsel %vm222, %v2975, 0
      %v3067 = vsel %vm222, %v2976, 0
      %v3070 = vsel %vm222, %v2977, 0
      %v3073 = vsel %vm222, %v2978, 0
      %v3076 = vsel %vm222, %v2979, 0
      %v3079 = vsel %vm1129, %v2981, 0
      %3081 = vmatprep.subr.mxu0 0.0
      %3082 = vmatpush1.msra.mxu0 %v3079
      %3083 = vmatprep.subr.mxu0 0.0
      %3084 = vmatpush1.msra.mxu0 0.0
      %3085 = vmatprep.subr.mxu0 0.0
      %3086 = vmatpush1.msra.mxu0 0.0
      %3087 = vmatprep.subr.mxu0 0.0
      %3088 = vmatpush1.msra.mxu0 0.0
      %3089 = vmatprep.subr.mxu0 0.0
      %3090 = vmatpush1.msra.mxu0 0.0
      %3091 = vmatprep.subr.mxu0 0.0
      %3092 = vmatpush1.msra.mxu0 0.0
      %3093 = vmatprep.subr.mxu0 0.0
      %3094 = vmatpush1.msra.mxu0 0.0
      %3095 = vmatprep.subr.mxu0 0.0
      %3096 = vmatpush1.msra.mxu0 0.0
      %3097 = vmatprep.subr.mxu0 0.0
      %3098 = vmatpush1.msra.mxu0 0.0
      %3099 = vmatprep.subr.mxu0 0.0
      %3100 = vmatpush1.msra.mxu0 0.0
      %3101 = vmatprep.subr.mxu0 0.0
      %3102 = vmatpush1.msra.mxu0 0.0
      %3103 = vmatprep.subr.mxu0 0.0
      %3104 = vmatpush1.msra.mxu0 0.0
      %3105 = vmatprep.subr.mxu0 0.0
      %3106 = vmatpush1.msra.mxu0 0.0
      %3107 = vmatprep.subr.mxu0 0.0
      %3108 = vmatpush1.msra.mxu0 0.0
      %3109 = vmatprep.subr.mxu0 0.0
      %3110 = vmatpush1.msra.mxu0 0.0
      %3111 = vmatprep.subr.mxu0 0.0
      %3112 = vmatpush1.msra.mxu0 0.0
      %3113 = vmatprep.subr.mxu0 0.0
      %3114 = vmatpush1.msra.mxu0 0.0
      %3115 = vmatprep.subr.mxu0 0.0
      %3116 = vmatpush1.msra.mxu0 0.0
      %3117 = vmatprep.subr.mxu0 0.0
      %3118 = vmatpush1.msra.mxu0 0.0
      %3119 = vmatprep.subr.mxu0 0.0
      %3120 = vmatpush1.msra.mxu0 0.0
      %3121 = vmatprep.subr.mxu0 0.0
      %3122 = vmatpush1.msra.mxu0 0.0
      %3123 = vmatprep.subr.mxu0 0.0
      %3124 = vmatpush1.msra.mxu0 0.0
      %3125 = vmatprep.subr.mxu0 0.0
      %3126 = vmatpush1.msra.mxu0 0.0
      %3127 = vmatprep.subr.mxu0 0.0
      %3128 = vmatpush1.msra.mxu0 0.0
      %3129 = vmatprep.subr.mxu0 0.0
      %3130 = vmatpush1.msra.mxu0 0.0
      %3131 = vmatprep.subr.mxu0 0.0
      %3132 = vmatpush1.msra.mxu0 0.0
      %3133 = vmatprep.subr.mxu0 0.0
      %3134 = vmatpush1.msra.mxu0 0.0
      %3135 = vmatprep.subr.mxu0 0.0
      %3136 = vmatpush1.msra.mxu0 0.0
      %3137 = vmatprep.subr.mxu0 0.0
      %3138 = vmatpush1.msra.mxu0 0.0
      %3139 = vmatprep.subr.mxu0 0.0
      %3140 = vmatpush1.msra.mxu0 0.0
      %3141 = vmatprep.subr.mxu0 0.0
      %3142 = vmatpush1.msra.mxu0 0.0
      %3143 = vmatprep.subr.mxu0 0.0
      %3144 = vmatpush1.msra.mxu0 0.0
      %3145 = vmatprep.mubr.f32.mxu0 0.0
      %3146 = vmatmul.mubr.f32.gmra.mrb[0].mxu0 %v2983
      %v3147 = vpop.f32.mrb[0].mxu0
      %v3148 = vadd.f32 0.0, %v3147
      %v3149 = vpop.f32.mrb[0].mxu0
      %3150 = vmatprep.mubr.f32.mxu0 0.0
      %3151 = vmatmul.mubr.f32.gmra.mrb[0].mxu0 %v2986
      %v3152 = vpop.f32.mrb[0].mxu0
      %v3153 = vadd.f32 0.0, %v3152
      %v3154 = vpop.f32.mrb[0].mxu0
      %3155 = vmatprep.mubr.f32.mxu0 0.0
      %3156 = vmatmul.mubr.f32.gmra.mrb[0].mxu0 %v2989
      %v3157 = vpop.f32.mrb[0].mxu0
      %v3158 = vadd.f32 0.0, %v3157
      %v3159 = vpop.f32.mrb[0].mxu0
      %3160 = vmatprep.mubr.f32.mxu0 0.0
      %3161 = vmatmul.mubr.f32.gmra.mrb[0].mxu0 %v2992
      %v3162 = vpop.f32.mrb[0].mxu0
      %v3163 = vadd.f32 0.0, %v3162
      %v3164 = vpop.f32.mrb[0].mxu0
      %3165 = vmatprep.mubr.f32.mxu0 0.0
      %3166 = vmatmul.mubr.f32.gmra.mrb[0].mxu0 %v2995
      %v3167 = vpop.f32.mrb[0].mxu0
      %v3168 = vadd.f32 0.0, %v3167
      %v3169 = vpop.f32.mrb[0].mxu0
      %3170 = vmatprep.mubr.f32.mxu0 0.0
      %3171 = vmatmul.mubr.f32.gmra.mrb[0].mxu0 %v2998
      %v3172 = vpop.f32.mrb[0].mxu0
      %v3173 = vadd.f32 0.0, %v3172
      %v3174 = vpop.f32.mrb[0].mxu0
      %3175 = vmatprep.mubr.f32.mxu0 0.0
      %3176 = vmatmul.mubr.f32.gmra.mrb[0].mxu0 %v3001
      %v3177 = vpop.f32.mrb[0].mxu0
      %v3178 = vadd.f32 0.0, %v3177
      %v3179 = vpop.f32.mrb[0].mxu0
      %3180 = vmatprep.mubr.f32.mxu0 0.0
      %3181 = vmatmul.mubr.f32.gmra.mrb[0].mxu0 %v3004
      %v3182 = vpop.f32.mrb[0].mxu0
      %v3183 = vadd.f32 0.0, %v3182
      %v3184 = vpop.f32.mrb[0].mxu0
      %3185 = vmatprep.mubr.f32.mxu0 0.0
      %3186 = vmatmul.mubr.f32.gmra.mrb[0].mxu0 %v3007
      %v3187 = vpop.f32.mrb[0].mxu0
      %v3188 = vadd.f32 0.0, %v3187
      %v3189 = vpop.f32.mrb[0].mxu0
      %3190 = vmatprep.mubr.f32.mxu0 0.0
      %3191 = vmatmul.mubr.f32.gmra.mrb[0].mxu0 %v3010
      %v3192 = vpop.f32.mrb[0].mxu0
      %v3193 = vadd.f32 0.0, %v3192
      %v3194 = vpop.f32.mrb[0].mxu0
      %3195 = vmatprep.mubr.f32.mxu0 0.0
      %3196 = vmatmul.mubr.f32.gmra.mrb[0].mxu0 %v3013
      %v3197 = vpop.f32.mrb[0].mxu0
      %v3198 = vadd.f32 0.0, %v3197
      %v3199 = vpop.f32.mrb[0].mxu0
      %3200 = vmatprep.mubr.f32.mxu0 0.0
      %3201 = vmatmul.mubr.f32.gmra.mrb[0].mxu0 %v3016
      %v3202 = vpop.f32.mrb[0].mxu0
      %v3203 = vadd.f32 0.0, %v3202
      %v3204 = vpop.f32.mrb[0].mxu0
      %3205 = vmatprep.mubr.f32.mxu0 0.0
      %3206 = vmatmul.mubr.f32.gmra.mrb[0].mxu0 %v3019
      %v3207 = vpop.f32.mrb[0].mxu0
      %v3208 = vadd.f32 0.0, %v3207
      %v3209 = vpop.f32.mrb[0].mxu0
      %3210 = vmatprep.mubr.f32.mxu0 0.0
      %3211 = vmatmul.mubr.f32.gmra.mrb[0].mxu0 %v3022
      %v3212 = vpop.f32.mrb[0].mxu0
      %v3213 = vadd.f32 0.0, %v3212
      %v3214 = vpop.f32.mrb[0].mxu0
      %3215 = vmatprep.mubr.f32.mxu0 0.0
      %3216 = vmatmul.mubr.f32.gmra.mrb[0].mxu0 %v3025
      %v3217 = vpop.f32.mrb[0].mxu0
      %v3218 = vadd.f32 0.0, %v3217
      %v3219 = vpop.f32.mrb[0].mxu0
      %3220 = vmatprep.mubr.f32.mxu0 0.0
      %3221 = vmatmul.mubr.f32.gmra.mrb[0].mxu0 %v3028
      %v3222 = vpop.f32.mrb[0].mxu0
      %v3223 = vadd.f32 0.0, %v3222
      %v3224 = vpop.f32.mrb[0].mxu0
      %3225 = vmatprep.mubr.f32.mxu0 0.0
      %3226 = vmatmul.mubr.f32.gmra.mrb[0].mxu0 %v3031
      %v3227 = vpop.f32.mrb[0].mxu0
      %v3228 = vadd.f32 0.0, %v3227
      %v3229 = vpop.f32.mrb[0].mxu0
      %3230 = vmatprep.mubr.f32.mxu0 0.0
      %3231 = vmatmul.mubr.f32.gmra.mrb[0].mxu0 %v3034
      %v3232 = vpop.f32.mrb[0].mxu0
      %v3233 = vadd.f32 0.0, %v3232
      %v3234 = vpop.f32.mrb[0].mxu0
      %3235 = vmatprep.mubr.f32.mxu0 0.0
      %3236 = vmatmul.mubr.f32.gmra.mrb[0].mxu0 %v3037
      %v3237 = vpop.f32.mrb[0].mxu0
      %v3238 = vadd.f32 0.0, %v3237
      %v3239 = vpop.f32.mrb[0].mxu0
      %3240 = vmatprep.mubr.f32.mxu0 0.0
      %3241 = vmatmul.mubr.f32.gmra.mrb[0].mxu0 %v3040
      %v3242 = vpop.f32.mrb[0].mxu0
      %v3243 = vadd.f32 0.0, %v3242
      %v3244 = vpop.f32.mrb[0].mxu0
      %3245 = vmatprep.mubr.f32.mxu0 0.0
      %3246 = vmatmul.mubr.f32.gmra.mrb[0].mxu0 %v3043
      %v3247 = vpop.f32.mrb[0].mxu0
      %v3248 = vadd.f32 0.0, %v3247
      %v3249 = vpop.f32.mrb[0].mxu0
      %3250 = vmatprep.mubr.f32.mxu0 0.0
      %3251 = vmatmul.mubr.f32.gmra.mrb[0].mxu0 %v3046
      %v3252 = vpop.f32.mrb[0].mxu0
      %v3253 = vadd.f32 0.0, %v3252
      %v3254 = vpop.f32.mrb[0].mxu0
      %3255 = vmatprep.mubr.f32.mxu0 0.0
      %3256 = vmatmul.mubr.f32.gmra.mrb[0].mxu0 %v3049
      %v3257 = vpop.f32.mrb[0].mxu0
      %v3258 = vadd.f32 0.0, %v3257
      %v3259 = vpop.f32.mrb[0].mxu0
      %3260 = vmatprep.mubr.f32.mxu0 0.0
      %3261 = vmatmul.mubr.f32.gmra.mrb[0].mxu0 %v3052
      %v3262 = vpop.f32.mrb[0].mxu0
      %v3263 = vadd.f32 0.0, %v3262
      %v3264 = vpop.f32.mrb[0].mxu0
      %3265 = vmatprep.mubr.f32.mxu0 0.0
      %3266 = vmatmul.mubr.f32.gmra.mrb[0].mxu0 %v3055
      %v3267 = vpop.f32.mrb[0].mxu0
      %v3268 = vadd.f32 0.0, %v3267
      %v3269 = vpop.f32.mrb[0].mxu0
      %3270 = vmatprep.mubr.f32.mxu0 0.0
      %3271 = vmatmul.mubr.f32.gmra.mrb[0].mxu0 %v3058
      %v3272 = vpop.f32.mrb[0].mxu0
      %v3273 = vadd.f32 0.0, %v3272
      %v3274 = vpop.f32.mrb[0].mxu0
      %3275 = vmatprep.mubr.f32.mxu0 0.0
      %3276 = vmatmul.mubr.f32.gmra.mrb[0].mxu0 %v3061
      %v3277 = vpop.f32.mrb[0].mxu0
      %v3278 = vadd.f32 0.0, %v3277
      %v3279 = vpop.f32.mrb[0].mxu0
      %3280 = vmatprep.mubr.f32.mxu0 0.0
      %3281 = vmatmul.mubr.f32.gmra.mrb[0].mxu0 %v3064
      %v3282 = vpop.f32.mrb[0].mxu0
      %v3283 = vadd.f32 0.0, %v3282
      %v3284 = vpop.f32.mrb[0].mxu0
      %3285 = vmatprep.mubr.f32.mxu0 0.0
      %3286 = vmatmul.mubr.f32.gmra.mrb[0].mxu0 %v3067
      %v3287 = vpop.f32.mrb[0].mxu0
      %v3288 = vadd.f32 0.0, %v3287
      %v3289 = vpop.f32.mrb[0].mxu0
      %3290 = vmatprep.mubr.f32.mxu0 0.0
      %3291 = vmatmul.mubr.f32.gmra.mrb[0].mxu0 %v3070
      %v3292 = vpop.f32.mrb[0].mxu0
      %v3293 = vadd.f32 0.0, %v3292
      %v3294 = vpop.f32.mrb[0].mxu0
      %3295 = vmatprep.mubr.f32.mxu0 0.0
      %3296 = vmatmul.mubr.f32.gmra.mrb[0].mxu0 %v3073
      %v3297 = vpop.f32.mrb[0].mxu0
      %v3298 = vadd.f32 0.0, %v3297
      %v3299 = vpop.f32.mrb[0].mxu0
      %3300 = vmatprep.mubr.f32.mxu0 0.0
      %3301 = vmatmul.mubr.f32.gmra.mrb[0].mxu0 %v3076
      %v3302 = vpop.f32.mrb[0].mxu0
      %v3303 = vadd.f32 0.0, %v3302
      %v3304 = vpop.f32.mrb[0].mxu0
      %3305 = vdwg.mxu0
      %v3306 = vadd.f32 %v2884, %v3148
      %v3307 = vadd.f32 %v2885, %v3153
      %v3308 = vadd.f32 %v2886, %v3158
      %v3309 = vadd.f32 %v2887, %v3163
      %v3310 = vadd.f32 %v2888, %v3168
      %v3311 = vadd.f32 %v2889, %v3173
      %v3312 = vadd.f32 %v2890, %v3178
      %v3313 = vadd.f32 %v2891, %v3183
      %v3314 = vadd.f32 %v2892, %v3188
      %v3315 = vadd.f32 %v2893, %v3193
      %v3316 = vadd.f32 %v2894, %v3198
      %v3317 = vadd.f32 %v2895, %v3203
      %v3318 = vadd.f32 %v2896, %v3208
      %v3319 = vadd.f32 %v2897, %v3213
      %v3320 = vadd.f32 %v2898, %v3218
      %v3321 = vadd.f32 %v2899, %v3223
      %v3322 = vadd.f32 %v2900, %v3228
      %v3323 = vadd.f32 %v2901, %v3233
      %v3324 = vadd.f32 %v2902, %v3238
      %v3325 = vadd.f32 %v2903, %v3243
      %v3326 = vadd.f32 %v2904, %v3248
      %v3327 = vadd.f32 %v2905, %v3253
      %v3328 = vadd.f32 %v2906, %v3258
      %v3329 = vadd.f32 %v2907, %v3263
      %v3330 = vadd.f32 %v2908, %v3268
      %v3331 = vadd.f32 %v2909, %v3273
      %v3332 = vadd.f32 %v2910, %v3278
      %v3333 = vadd.f32 %v2911, %v3283
      %v3334 = vadd.f32 %v2912, %v3288
      %v3335 = vadd.f32 %v2913, %v3293
      %v3336 = vadd.f32 %v2914, %v3298
      %v3337 = vadd.f32 %v2915, %v3303
      %v3338 = vld [vmem:[#allocation2 + $0x27] sm:$0xff]
      %v3339 = vld [vmem:[#allocation2 + $0x2f] sm:$0xff]
      %v3340 = vld [vmem:[#allocation2 + $0x37] sm:$0xff]
      %v3341 = vld [vmem:[#allocation2 + $0x3f] sm:$0xff]
      %v3342 = vld [vmem:[#allocation2 + $0x47] sm:$0xff]
      %v3343 = vld [vmem:[#allocation2 + $0x4f] sm:$0xff]
      %v3344 = vld [vmem:[#allocation2 + $0x57] sm:$0xff]
      %v3345 = vld [vmem:[#allocation2 + $0x5f] sm:$0xff]
      %v3346 = vld [vmem:[#allocation2 + $0x67] sm:$0xff]
      %v3347 = vld [vmem:[#allocation2 + $0x6f] sm:$0xff]
      %v3348 = vld [vmem:[#allocation2 + $0x77] sm:$0xff]
      %v3349 = vld [vmem:[#allocation2 + $0x7f] sm:$0xff]
      %v3350 = vld [vmem:[#allocation2 + $0x87] sm:$0xff]
      %v3351 = vld [vmem:[#allocation2 + $0x8f] sm:$0xff]
      %v3352 = vld [vmem:[#allocation2 + $0x97] sm:$0xff]
      %v3353 = vld [vmem:[#allocation2 + $0x9f] sm:$0xff]
      %v3354 = vld [vmem:[#allocation2 + $0xa7] sm:$0xff]
      %v3355 = vld [vmem:[#allocation2 + $0xaf] sm:$0xff]
      %v3356 = vld [vmem:[#allocation2 + $0xb7] sm:$0xff]
      %v3357 = vld [vmem:[#allocation2 + $0xbf] sm:$0xff]
      %v3358 = vld [vmem:[#allocation2 + $0xc7] sm:$0xff]
      %v3359 = vld [vmem:[#allocation2 + $0xcf] sm:$0xff]
      %v3360 = vld [vmem:[#allocation2 + $0xd7] sm:$0xff]
      %v3361 = vld [vmem:[#allocation2 + $0xdf] sm:$0xff]
      %v3362 = vld [vmem:[#allocation2 + $0xe7] sm:$0xff]
      %v3363 = vld [vmem:[#allocation2 + $0xef] sm:$0xff]
      %v3364 = vld [vmem:[#allocation2 + $0xf7] sm:$0xff]
      %v3365 = vld [vmem:[#allocation2 + $0xff] sm:$0xff]
      %v3366 = vld [vmem:[#allocation2 + $0x107] sm:$0xff]
      %v3367 = vld [vmem:[#allocation2 + $0x10f] sm:$0xff]
      %v3368 = vld [vmem:[#allocation2 + $0x117] sm:$0xff]
      %v3369 = vld [vmem:[#allocation2 + $0x11f] sm:$0xff]
      %v3370 = vmul.f32 %v3338, %v806
      %v3371 = vmul.f32 %v3339, %v807
      %v3372 = vmul.f32 %v3340, %v808
      %v3373 = vmul.f32 %v3341, %v809
      %v3374 = vmul.f32 %v3342, %v810
      %v3375 = vmul.f32 %v3343, %v811
      %v3376 = vmul.f32 %v3344, %v812
      %v3377 = vmul.f32 %v3345, %v813
      %v3378 = vmul.f32 %v3346, %v814
      %v3379 = vmul.f32 %v3347, %v815
      %v3380 = vmul.f32 %v3348, %v816
      %v3381 = vmul.f32 %v3349, %v817
      %v3382 = vmul.f32 %v3350, %v818
      %v3383 = vmul.f32 %v3351, %v819
      %v3384 = vmul.f32 %v3352, %v820
      %v3385 = vmul.f32 %v3353, %v821
      %v3386 = vmul.f32 %v3354, %v822
      %v3387 = vmul.f32 %v3355, %v823
      %v3388 = vmul.f32 %v3356, %v824
      %v3389 = vmul.f32 %v3357, %v825
      %v3390 = vmul.f32 %v3358, %v826
      %v3391 = vmul.f32 %v3359, %v827
      %v3392 = vmul.f32 %v3360, %v828
      %v3393 = vmul.f32 %v3361, %v829
      %v3394 = vmul.f32 %v3362, %v830
      %v3395 = vmul.f32 %v3363, %v831
      %v3396 = vmul.f32 %v3364, %v832
      %v3397 = vmul.f32 %v3365, %v833
      %v3398 = vmul.f32 %v3366, %v834
      %v3399 = vmul.f32 %v3367, %v835
      %v3400 = vmul.f32 %v3368, %v836
      %v3401 = vmul.f32 %v3369, %v837
      %s3402 = scalar_lea.vmem %s210, 24
      %v3403 = vld [vmem:[%s3402] sm:$0x7]
      %v3405 = vsel %vm222, %v3370, 0
      %v3408 = vsel %vm222, %v3371, 0
      %v3411 = vsel %vm222, %v3372, 0
      %v3414 = vsel %vm222, %v3373, 0
      %v3417 = vsel %vm222, %v3374, 0
      %v3420 = vsel %vm222, %v3375, 0
      %v3423 = vsel %vm222, %v3376, 0
      %v3426 = vsel %vm222, %v3377, 0
      %v3429 = vsel %vm222, %v3378, 0
      %v3432 = vsel %vm222, %v3379, 0
      %v3435 = vsel %vm222, %v3380, 0
      %v3438 = vsel %vm222, %v3381, 0
      %v3441 = vsel %vm222, %v3382, 0
      %v3444 = vsel %vm222, %v3383, 0
      %v3447 = vsel %vm222, %v3384, 0
      %v3450 = vsel %vm222, %v3385, 0
      %v3453 = vsel %vm222, %v3386, 0
      %v3456 = vsel %vm222, %v3387, 0
      %v3459 = vsel %vm222, %v3388, 0
      %v3462 = vsel %vm222, %v3389, 0
      %v3465 = vsel %vm222, %v3390, 0
      %v3468 = vsel %vm222, %v3391, 0
      %v3471 = vsel %vm222, %v3392, 0
      %v3474 = vsel %vm222, %v3393, 0
      %v3477 = vsel %vm222, %v3394, 0
      %v3480 = vsel %vm222, %v3395, 0
      %v3483 = vsel %vm222, %v3396, 0
      %v3486 = vsel %vm222, %v3397, 0
      %v3489 = vsel %vm222, %v3398, 0
      %v3492 = vsel %vm222, %v3399, 0
      %v3495 = vsel %vm222, %v3400, 0
      %v3498 = vsel %vm222, %v3401, 0
      %v3501 = vsel %vm1129, %v3403, 0
      %3503 = vmatprep.subr.mxu0 0.0
      %3504 = vmatpush1.msra.mxu0 %v3501
      %3505 = vmatprep.subr.mxu0 0.0
      %3506 = vmatpush1.msra.mxu0 0.0
      %3507 = vmatprep.subr.mxu0 0.0
      %3508 = vmatpush1.msra.mxu0 0.0
      %3509 = vmatprep.subr.mxu0 0.0
      %3510 = vmatpush1.msra.mxu0 0.0
      %3511 = vmatprep.subr.mxu0 0.0
      %3512 = vmatpush1.msra.mxu0 0.0
      %3513 = vmatprep.subr.mxu0 0.0
      %3514 = vmatpush1.msra.mxu0 0.0
      %3515 = vmatprep.subr.mxu0 0.0
      %3516 = vmatpush1.msra.mxu0 0.0
      %3517 = vmatprep.subr.mxu0 0.0
      %3518 = vmatpush1.msra.mxu0 0.0
      %3519 = vmatprep.subr.mxu0 0.0
      %3520 = vmatpush1.msra.mxu0 0.0
      %3521 = vmatprep.subr.mxu0 0.0
      %3522 = vmatpush1.msra.mxu0 0.0
      %3523 = vmatprep.subr.mxu0 0.0
      %3524 = vmatpush1.msra.mxu0 0.0
      %3525 = vmatprep.subr.mxu0 0.0
      %3526 = vmatpush1.msra.mxu0 0.0
      %3527 = vmatprep.subr.mxu0 0.0
      %3528 = vmatpush1.msra.mxu0 0.0
      %3529 = vmatprep.subr.mxu0 0.0
      %3530 = vmatpush1.msra.mxu0 0.0
      %3531 = vmatprep.subr.mxu0 0.0
      %3532 = vmatpush1.msra.mxu0 0.0
      %3533 = vmatprep.subr.mxu0 0.0
      %3534 = vmatpush1.msra.mxu0 0.0
      %3535 = vmatprep.subr.mxu0 0.0
      %3536 = vmatpush1.msra.mxu0 0.0
      %3537 = vmatprep.subr.mxu0 0.0
      %3538 = vmatpush1.msra.mxu0 0.0
      %3539 = vmatprep.subr.mxu0 0.0
      %3540 = vmatpush1.msra.mxu0 0.0
      %3541 = vmatprep.subr.mxu0 0.0
      %3542 = vmatpush1.msra.mxu0 0.0
      %3543 = vmatprep.subr.mxu0 0.0
      %3544 = vmatpush1.msra.mxu0 0.0
      %3545 = vmatprep.subr.mxu0 0.0
      %3546 = vmatpush1.msra.mxu0 0.0
      %3547 = vmatprep.subr.mxu0 0.0
      %3548 = vmatpush1.msra.mxu0 0.0
      %3549 = vmatprep.subr.mxu0 0.0
      %3550 = vmatpush1.msra.mxu0 0.0
      %3551 = vmatprep.subr.mxu0 0.0
      %3552 = vmatpush1.msra.mxu0 0.0
      %3553 = vmatprep.subr.mxu0 0.0
      %3554 = vmatpush1.msra.mxu0 0.0
      %3555 = vmatprep.subr.mxu0 0.0
      %3556 = vmatpush1.msra.mxu0 0.0
      %3557 = vmatprep.subr.mxu0 0.0
      %3558 = vmatpush1.msra.mxu0 0.0
      %3559 = vmatprep.subr.mxu0 0.0
      %3560 = vmatpush1.msra.mxu0 0.0
      %3561 = vmatprep.subr.mxu0 0.0
      %3562 = vmatpush1.msra.mxu0 0.0
      %3563 = vmatprep.subr.mxu0 0.0
      %3564 = vmatpush1.msra.mxu0 0.0
      %3565 = vmatprep.subr.mxu0 0.0
      %3566 = vmatpush1.msra.mxu0 0.0
      %3567 = vmatprep.mubr.f32.mxu0 0.0
      %3568 = vmatmul.mubr.f32.gmra.mrb[0].mxu0 %v3405
      %v3569 = vpop.f32.mrb[0].mxu0
      %v3570 = vadd.f32 0.0, %v3569
      %v3571 = vpop.f32.mrb[0].mxu0
      %3572 = vmatprep.mubr.f32.mxu0 0.0
      %3573 = vmatmul.mubr.f32.gmra.mrb[0].mxu0 %v3408
      %v3574 = vpop.f32.mrb[0].mxu0
      %v3575 = vadd.f32 0.0, %v3574
      %v3576 = vpop.f32.mrb[0].mxu0
      %3577 = vmatprep.mubr.f32.mxu0 0.0
      %3578 = vmatmul.mubr.f32.gmra.mrb[0].mxu0 %v3411
      %v3579 = vpop.f32.mrb[0].mxu0
      %v3580 = vadd.f32 0.0, %v3579
      %v3581 = vpop.f32.mrb[0].mxu0
      %3582 = vmatprep.mubr.f32.mxu0 0.0
      %3583 = vmatmul.mubr.f32.gmra.mrb[0].mxu0 %v3414
      %v3584 = vpop.f32.mrb[0].mxu0
      %v3585 = vadd.f32 0.0, %v3584
      %v3586 = vpop.f32.mrb[0].mxu0
      %3587 = vmatprep.mubr.f32.mxu0 0.0
      %3588 = vmatmul.mubr.f32.gmra.mrb[0].mxu0 %v3417
      %v3589 = vpop.f32.mrb[0].mxu0
      %v3590 = vadd.f32 0.0, %v3589
      %v3591 = vpop.f32.mrb[0].mxu0
      %3592 = vmatprep.mubr.f32.mxu0 0.0
      %3593 = vmatmul.mubr.f32.gmra.mrb[0].mxu0 %v3420
      %v3594 = vpop.f32.mrb[0].mxu0
      %v3595 = vadd.f32 0.0, %v3594
      %v3596 = vpop.f32.mrb[0].mxu0
      %3597 = vmatprep.mubr.f32.mxu0 0.0
      %3598 = vmatmul.mubr.f32.gmra.mrb[0].mxu0 %v3423
      %v3599 = vpop.f32.mrb[0].mxu0
      %v3600 = vadd.f32 0.0, %v3599
      %v3601 = vpop.f32.mrb[0].mxu0
      %3602 = vmatprep.mubr.f32.mxu0 0.0
      %3603 = vmatmul.mubr.f32.gmra.mrb[0].mxu0 %v3426
      %v3604 = vpop.f32.mrb[0].mxu0
      %v3605 = vadd.f32 0.0, %v3604
      %v3606 = vpop.f32.mrb[0].mxu0
      %3607 = vmatprep.mubr.f32.mxu0 0.0
      %3608 = vmatmul.mubr.f32.gmra.mrb[0].mxu0 %v3429
      %v3609 = vpop.f32.mrb[0].mxu0
      %v3610 = vadd.f32 0.0, %v3609
      %v3611 = vpop.f32.mrb[0].mxu0
      %3612 = vmatprep.mubr.f32.mxu0 0.0
      %3613 = vmatmul.mubr.f32.gmra.mrb[0].mxu0 %v3432
      %v3614 = vpop.f32.mrb[0].mxu0
      %v3615 = vadd.f32 0.0, %v3614
      %v3616 = vpop.f32.mrb[0].mxu0
      %3617 = vmatprep.mubr.f32.mxu0 0.0
      %3618 = vmatmul.mubr.f32.gmra.mrb[0].mxu0 %v3435
      %v3619 = vpop.f32.mrb[0].mxu0
      %v3620 = vadd.f32 0.0, %v3619
      %v3621 = vpop.f32.mrb[0].mxu0
      %3622 = vmatprep.mubr.f32.mxu0 0.0
      %3623 = vmatmul.mubr.f32.gmra.mrb[0].mxu0 %v3438
      %v3624 = vpop.f32.mrb[0].mxu0
      %v3625 = vadd.f32 0.0, %v3624
      %v3626 = vpop.f32.mrb[0].mxu0
      %3627 = vmatprep.mubr.f32.mxu0 0.0
      %3628 = vmatmul.mubr.f32.gmra.mrb[0].mxu0 %v3441
      %v3629 = vpop.f32.mrb[0].mxu0
      %v3630 = vadd.f32 0.0, %v3629
      %v3631 = vpop.f32.mrb[0].mxu0
      %3632 = vmatprep.mubr.f32.mxu0 0.0
      %3633 = vmatmul.mubr.f32.gmra.mrb[0].mxu0 %v3444
      %v3634 = vpop.f32.mrb[0].mxu0
      %v3635 = vadd.f32 0.0, %v3634
      %v3636 = vpop.f32.mrb[0].mxu0
      %3637 = vmatprep.mubr.f32.mxu0 0.0
      %3638 = vmatmul.mubr.f32.gmra.mrb[0].mxu0 %v3447
      %v3639 = vpop.f32.mrb[0].mxu0
      %v3640 = vadd.f32 0.0, %v3639
      %v3641 = vpop.f32.mrb[0].mxu0
      %3642 = vmatprep.mubr.f32.mxu0 0.0
      %3643 = vmatmul.mubr.f32.gmra.mrb[0].mxu0 %v3450
      %v3644 = vpop.f32.mrb[0].mxu0
      %v3645 = vadd.f32 0.0, %v3644
      %v3646 = vpop.f32.mrb[0].mxu0
      %3647 = vmatprep.mubr.f32.mxu0 0.0
      %3648 = vmatmul.mubr.f32.gmra.mrb[0].mxu0 %v3453
      %v3649 = vpop.f32.mrb[0].mxu0
      %v3650 = vadd.f32 0.0, %v3649
      %v3651 = vpop.f32.mrb[0].mxu0
      %3652 = vmatprep.mubr.f32.mxu0 0.0
      %3653 = vmatmul.mubr.f32.gmra.mrb[0].mxu0 %v3456
      %v3654 = vpop.f32.mrb[0].mxu0
      %v3655 = vadd.f32 0.0, %v3654
      %v3656 = vpop.f32.mrb[0].mxu0
      %3657 = vmatprep.mubr.f32.mxu0 0.0
      %3658 = vmatmul.mubr.f32.gmra.mrb[0].mxu0 %v3459
      %v3659 = vpop.f32.mrb[0].mxu0
      %v3660 = vadd.f32 0.0, %v3659
      %v3661 = vpop.f32.mrb[0].mxu0
      %3662 = vmatprep.mubr.f32.mxu0 0.0
      %3663 = vmatmul.mubr.f32.gmra.mrb[0].mxu0 %v3462
      %v3664 = vpop.f32.mrb[0].mxu0
      %v3665 = vadd.f32 0.0, %v3664
      %v3666 = vpop.f32.mrb[0].mxu0
      %3667 = vmatprep.mubr.f32.mxu0 0.0
      %3668 = vmatmul.mubr.f32.gmra.mrb[0].mxu0 %v3465
      %v3669 = vpop.f32.mrb[0].mxu0
      %v3670 = vadd.f32 0.0, %v3669
      %v3671 = vpop.f32.mrb[0].mxu0
      %3672 = vmatprep.mubr.f32.mxu0 0.0
      %3673 = vmatmul.mubr.f32.gmra.mrb[0].mxu0 %v3468
      %v3674 = vpop.f32.mrb[0].mxu0
      %v3675 = vadd.f32 0.0, %v3674
      %v3676 = vpop.f32.mrb[0].mxu0
      %3677 = vmatprep.mubr.f32.mxu0 0.0
      %3678 = vmatmul.mubr.f32.gmra.mrb[0].mxu0 %v3471
      %v3679 = vpop.f32.mrb[0].mxu0
      %v3680 = vadd.f32 0.0, %v3679
      %v3681 = vpop.f32.mrb[0].mxu0
      %3682 = vmatprep.mubr.f32.mxu0 0.0
      %3683 = vmatmul.mubr.f32.gmra.mrb[0].mxu0 %v3474
      %v3684 = vpop.f32.mrb[0].mxu0
      %v3685 = vadd.f32 0.0, %v3684
      %v3686 = vpop.f32.mrb[0].mxu0
      %3687 = vmatprep.mubr.f32.mxu0 0.0
      %3688 = vmatmul.mubr.f32.gmra.mrb[0].mxu0 %v3477
      %v3689 = vpop.f32.mrb[0].mxu0
      %v3690 = vadd.f32 0.0, %v3689
      %v3691 = vpop.f32.mrb[0].mxu0
      %3692 = vmatprep.mubr.f32.mxu0 0.0
      %3693 = vmatmul.mubr.f32.gmra.mrb[0].mxu0 %v3480
      %v3694 = vpop.f32.mrb[0].mxu0
      %v3695 = vadd.f32 0.0, %v3694
      %v3696 = vpop.f32.mrb[0].mxu0
      %3697 = vmatprep.mubr.f32.mxu0 0.0
      %3698 = vmatmul.mubr.f32.gmra.mrb[0].mxu0 %v3483
      %v3699 = vpop.f32.mrb[0].mxu0
      %v3700 = vadd.f32 0.0, %v3699
      %v3701 = vpop.f32.mrb[0].mxu0
      %3702 = vmatprep.mubr.f32.mxu0 0.0
      %3703 = vmatmul.mubr.f32.gmra.mrb[0].mxu0 %v3486
      %v3704 = vpop.f32.mrb[0].mxu0
      %v3705 = vadd.f32 0.0, %v3704
      %v3706 = vpop.f32.mrb[0].mxu0
      %3707 = vmatprep.mubr.f32.mxu0 0.0
      %3708 = vmatmul.mubr.f32.gmra.mrb[0].mxu0 %v3489
      %v3709 = vpop.f32.mrb[0].mxu0
      %v3710 = vadd.f32 0.0, %v3709
      %v3711 = vpop.f32.mrb[0].mxu0
      %3712 = vmatprep.mubr.f32.mxu0 0.0
      %3713 = vmatmul.mubr.f32.gmra.mrb[0].mxu0 %v3492
      %v3714 = vpop.f32.mrb[0].mxu0
      %v3715 = vadd.f32 0.0, %v3714
      %v3716 = vpop.f32.mrb[0].mxu0
      %3717 = vmatprep.mubr.f32.mxu0 0.0
      %3718 = vmatmul.mubr.f32.gmra.mrb[0].mxu0 %v3495
      %v3719 = vpop.f32.mrb[0].mxu0
      %v3720 = vadd.f32 0.0, %v3719
      %v3721 = vpop.f32.mrb[0].mxu0
      %3722 = vmatprep.mubr.f32.mxu0 0.0
      %3723 = vmatmul.mubr.f32.gmra.mrb[0].mxu0 %v3498
      %v3724 = vpop.f32.mrb[0].mxu0
      %v3725 = vadd.f32 0.0, %v3724
      %v3726 = vpop.f32.mrb[0].mxu0
      %3727 = vdwg.mxu0
      %v3728 = vadd.f32 %v3306, %v3570
      %v3729 = vadd.f32 %v3307, %v3575
      %v3730 = vadd.f32 %v3308, %v3580
      %v3731 = vadd.f32 %v3309, %v3585
      %v3732 = vadd.f32 %v3310, %v3590
      %v3733 = vadd.f32 %v3311, %v3595
      %v3734 = vadd.f32 %v3312, %v3600
      %v3735 = vadd.f32 %v3313, %v3605
      %v3736 = vadd.f32 %v3314, %v3610
      %v3737 = vadd.f32 %v3315, %v3615
      %v3738 = vadd.f32 %v3316, %v3620
      %v3739 = vadd.f32 %v3317, %v3625
      %v3740 = vadd.f32 %v3318, %v3630
      %v3741 = vadd.f32 %v3319, %v3635
      %v3742 = vadd.f32 %v3320, %v3640
      %v3743 = vadd.f32 %v3321, %v3645
      %v3744 = vadd.f32 %v3322, %v3650
      %v3745 = vadd.f32 %v3323, %v3655
      %v3746 = vadd.f32 %v3324, %v3660
      %v3747 = vadd.f32 %v3325, %v3665
      %v3748 = vadd.f32 %v3326, %v3670
      %v3749 = vadd.f32 %v3327, %v3675
      %v3750 = vadd.f32 %v3328, %v3680
      %v3751 = vadd.f32 %v3329, %v3685
      %v3752 = vadd.f32 %v3330, %v3690
      %v3753 = vadd.f32 %v3331, %v3695
      %v3754 = vadd.f32 %v3332, %v3700
      %v3755 = vadd.f32 %v3333, %v3705
      %v3756 = vadd.f32 %v3334, %v3710
      %v3757 = vadd.f32 %v3335, %v3715
      %v3758 = vadd.f32 %v3336, %v3720
      %v3759 = vadd.f32 %v3337, %v3725
      %v3760 = vld [vmem:[#allocation2 + $0x28] sm:$0xff]
      %v3761 = vld [vmem:[#allocation2 + $0x30] sm:$0xff]
      %v3762 = vld [vmem:[#allocation2 + $0x38] sm:$0xff]
      %v3763 = vld [vmem:[#allocation2 + $0x40] sm:$0xff]
      %v3764 = vld [vmem:[#allocation2 + $0x48] sm:$0xff]
      %v3765 = vld [vmem:[#allocation2 + $0x50] sm:$0xff]
      %v3766 = vld [vmem:[#allocation2 + $0x58] sm:$0xff]
      %v3767 = vld [vmem:[#allocation2 + $0x60] sm:$0xff]
      %v3768 = vld [vmem:[#allocation2 + $0x68] sm:$0xff]
      %v3769 = vld [vmem:[#allocation2 + $0x70] sm:$0xff]
      %v3770 = vld [vmem:[#allocation2 + $0x78] sm:$0xff]
      %v3771 = vld [vmem:[#allocation2 + $0x80] sm:$0xff]
      %v3772 = vld [vmem:[#allocation2 + $0x88] sm:$0xff]
      %v3773 = vld [vmem:[#allocation2 + $0x90] sm:$0xff]
      %v3774 = vld [vmem:[#allocation2 + $0x98] sm:$0xff]
      %v3775 = vld [vmem:[#allocation2 + $0xa0] sm:$0xff]
      %v3776 = vld [vmem:[#allocation2 + $0xa8] sm:$0xff]
      %v3777 = vld [vmem:[#allocation2 + $0xb0] sm:$0xff]
      %v3778 = vld [vmem:[#allocation2 + $0xb8] sm:$0xff]
      %v3779 = vld [vmem:[#allocation2 + $0xc0] sm:$0xff]
      %v3780 = vld [vmem:[#allocation2 + $0xc8] sm:$0xff]
      %v3781 = vld [vmem:[#allocation2 + $0xd0] sm:$0xff]
      %v3782 = vld [vmem:[#allocation2 + $0xd8] sm:$0xff]
      %v3783 = vld [vmem:[#allocation2 + $0xe0] sm:$0xff]
      %v3784 = vld [vmem:[#allocation2 + $0xe8] sm:$0xff]
      %v3785 = vld [vmem:[#allocation2 + $0xf0] sm:$0xff]
      %v3786 = vld [vmem:[#allocation2 + $0xf8] sm:$0xff]
      %v3787 = vld [vmem:[#allocation2 + $0x100] sm:$0xff]
      %v3788 = vld [vmem:[#allocation2 + $0x108] sm:$0xff]
      %v3789 = vld [vmem:[#allocation2 + $0x110] sm:$0xff]
      %v3790 = vld [vmem:[#allocation2 + $0x118] sm:$0xff]
      %v3791 = vld [vmem:[#allocation2 + $0x120] sm:$0xff]
      %s3792 = scalar_lea.vmem %s210, 28
      %v3793 = vld [vmem:[%s3792] sm:$0x7]
      %v3795 = vsel %vm222, %v3760, 0
      %v3798 = vsel %vm222, %v3761, 0
      %v3801 = vsel %vm222, %v3762, 0
      %v3804 = vsel %vm222, %v3763, 0
      %v3807 = vsel %vm222, %v3764, 0
      %v3810 = vsel %vm222, %v3765, 0
      %v3813 = vsel %vm222, %v3766, 0
      %v3816 = vsel %vm222, %v3767, 0
      %v3819 = vsel %vm222, %v3768, 0
      %v3822 = vsel %vm222, %v3769, 0
      %v3825 = vsel %vm222, %v3770, 0
      %v3828 = vsel %vm222, %v3771, 0
      %v3831 = vsel %vm222, %v3772, 0
      %v3834 = vsel %vm222, %v3773, 0
      %v3837 = vsel %vm222, %v3774, 0
      %v3840 = vsel %vm222, %v3775, 0
      %v3843 = vsel %vm222, %v3776, 0
      %v3846 = vsel %vm222, %v3777, 0
      %v3849 = vsel %vm222, %v3778, 0
      %v3852 = vsel %vm222, %v3779, 0
      %v3855 = vsel %vm222, %v3780, 0
      %v3858 = vsel %vm222, %v3781, 0
      %v3861 = vsel %vm222, %v3782, 0
      %v3864 = vsel %vm222, %v3783, 0
      %v3867 = vsel %vm222, %v3784, 0
      %v3870 = vsel %vm222, %v3785, 0
      %v3873 = vsel %vm222, %v3786, 0
      %v3876 = vsel %vm222, %v3787, 0
      %v3879 = vsel %vm222, %v3788, 0
      %v3882 = vsel %vm222, %v3789, 0
      %v3885 = vsel %vm222, %v3790, 0
      %v3888 = vsel %vm222, %v3791, 0
      %v3891 = vsel %vm1129, %v3793, 0
      %3893 = vmatprep.subr.mxu0 0.0
      %3894 = vmatpush1.msra.mxu0 %v3891
      %3895 = vmatprep.subr.mxu0 0.0
      %3896 = vmatpush1.msra.mxu0 0.0
      %3897 = vmatprep.subr.mxu0 0.0
      %3898 = vmatpush1.msra.mxu0 0.0
      %3899 = vmatprep.subr.mxu0 0.0
      %3900 = vmatpush1.msra.mxu0 0.0
      %3901 = vmatprep.subr.mxu0 0.0
      %3902 = vmatpush1.msra.mxu0 0.0
      %3903 = vmatprep.subr.mxu0 0.0
      %3904 = vmatpush1.msra.mxu0 0.0
      %3905 = vmatprep.subr.mxu0 0.0
      %3906 = vmatpush1.msra.mxu0 0.0
      %3907 = vmatprep.subr.mxu0 0.0
      %3908 = vmatpush1.msra.mxu0 0.0
      %3909 = vmatprep.subr.mxu0 0.0
      %3910 = vmatpush1.msra.mxu0 0.0
      %3911 = vmatprep.subr.mxu0 0.0
      %3912 = vmatpush1.msra.mxu0 0.0
      %3913 = vmatprep.subr.mxu0 0.0
      %3914 = vmatpush1.msra.mxu0 0.0
      %3915 = vmatprep.subr.mxu0 0.0
      %3916 = vmatpush1.msra.mxu0 0.0
      %3917 = vmatprep.subr.mxu0 0.0
      %3918 = vmatpush1.msra.mxu0 0.0
      %3919 = vmatprep.subr.mxu0 0.0
      %3920 = vmatpush1.msra.mxu0 0.0
      %3921 = vmatprep.subr.mxu0 0.0
      %3922 = vmatpush1.msra.mxu0 0.0
      %3923 = vmatprep.subr.mxu0 0.0
      %3924 = vmatpush1.msra.mxu0 0.0
      %3925 = vmatprep.subr.mxu0 0.0
      %3926 = vmatpush1.msra.mxu0 0.0
      %3927 = vmatprep.subr.mxu0 0.0
      %3928 = vmatpush1.msra.mxu0 0.0
      %3929 = vmatprep.subr.mxu0 0.0
      %3930 = vmatpush1.msra.mxu0 0.0
      %3931 = vmatprep.subr.mxu0 0.0
      %3932 = vmatpush1.msra.mxu0 0.0
      %3933 = vmatprep.subr.mxu0 0.0
      %3934 = vmatpush1.msra.mxu0 0.0
      %3935 = vmatprep.subr.mxu0 0.0
      %3936 = vmatpush1.msra.mxu0 0.0
      %3937 = vmatprep.subr.mxu0 0.0
      %3938 = vmatpush1.msra.mxu0 0.0
      %3939 = vmatprep.subr.mxu0 0.0
      %3940 = vmatpush1.msra.mxu0 0.0
      %3941 = vmatprep.subr.mxu0 0.0
      %3942 = vmatpush1.msra.mxu0 0.0
      %3943 = vmatprep.subr.mxu0 0.0
      %3944 = vmatpush1.msra.mxu0 0.0
      %3945 = vmatprep.subr.mxu0 0.0
      %3946 = vmatpush1.msra.mxu0 0.0
      %3947 = vmatprep.subr.mxu0 0.0
      %3948 = vmatpush1.msra.mxu0 0.0
      %3949 = vmatprep.subr.mxu0 0.0
      %3950 = vmatpush1.msra.mxu0 0.0
      %3951 = vmatprep.subr.mxu0 0.0
      %3952 = vmatpush1.msra.mxu0 0.0
      %3953 = vmatprep.subr.mxu0 0.0
      %3954 = vmatpush1.msra.mxu0 0.0
      %3955 = vmatprep.subr.mxu0 0.0
      %3956 = vmatpush1.msra.mxu0 0.0
      %3957 = vmatprep.mubr.f32.mxu0 0.0
      %3958 = vmatmul.mubr.f32.gmra.mrb[0].mxu0 %v3795
      %v3959 = vpop.f32.mrb[0].mxu0
      %v3960 = vadd.f32 0.0, %v3959
      %v3961 = vpop.f32.mrb[0].mxu0
      %3962 = vmatprep.mubr.f32.mxu0 0.0
      %3963 = vmatmul.mubr.f32.gmra.mrb[0].mxu0 %v3798
      %v3964 = vpop.f32.mrb[0].mxu0
      %v3965 = vadd.f32 0.0, %v3964
      %v3966 = vpop.f32.mrb[0].mxu0
      %3967 = vmatprep.mubr.f32.mxu0 0.0
      %3968 = vmatmul.mubr.f32.gmra.mrb[0].mxu0 %v3801
      %v3969 = vpop.f32.mrb[0].mxu0
      %v3970 = vadd.f32 0.0, %v3969
      %v3971 = vpop.f32.mrb[0].mxu0
      %3972 = vmatprep.mubr.f32.mxu0 0.0
      %3973 = vmatmul.mubr.f32.gmra.mrb[0].mxu0 %v3804
      %v3974 = vpop.f32.mrb[0].mxu0
      %v3975 = vadd.f32 0.0, %v3974
      %v3976 = vpop.f32.mrb[0].mxu0
      %3977 = vmatprep.mubr.f32.mxu0 0.0
      %3978 = vmatmul.mubr.f32.gmra.mrb[0].mxu0 %v3807
      %v3979 = vpop.f32.mrb[0].mxu0
      %v3980 = vadd.f32 0.0, %v3979
      %v3981 = vpop.f32.mrb[0].mxu0
      %3982 = vmatprep.mubr.f32.mxu0 0.0
      %3983 = vmatmul.mubr.f32.gmra.mrb[0].mxu0 %v3810
      %v3984 = vpop.f32.mrb[0].mxu0
      %v3985 = vadd.f32 0.0, %v3984
      %v3986 = vpop.f32.mrb[0].mxu0
      %3987 = vmatprep.mubr.f32.mxu0 0.0
      %3988 = vmatmul.mubr.f32.gmra.mrb[0].mxu0 %v3813
      %v3989 = vpop.f32.mrb[0].mxu0
      %v3990 = vadd.f32 0.0, %v3989
      %v3991 = vpop.f32.mrb[0].mxu0
      %3992 = vmatprep.mubr.f32.mxu0 0.0
      %3993 = vmatmul.mubr.f32.gmra.mrb[0].mxu0 %v3816
      %v3994 = vpop.f32.mrb[0].mxu0
      %v3995 = vadd.f32 0.0, %v3994
      %v3996 = vpop.f32.mrb[0].mxu0
      %3997 = vmatprep.mubr.f32.mxu0 0.0
      %3998 = vmatmul.mubr.f32.gmra.mrb[0].mxu0 %v3819
      %v3999 = vpop.f32.mrb[0].mxu0
      %v4000 = vadd.f32 0.0, %v3999
      %v4001 = vpop.f32.mrb[0].mxu0
      %4002 = vmatprep.mubr.f32.mxu0 0.0
      %4003 = vmatmul.mubr.f32.gmra.mrb[0].mxu0 %v3822
      %v4004 = vpop.f32.mrb[0].mxu0
      %v4005 = vadd.f32 0.0, %v4004
      %v4006 = vpop.f32.mrb[0].mxu0
      %4007 = vmatprep.mubr.f32.mxu0 0.0
      %4008 = vmatmul.mubr.f32.gmra.mrb[0].mxu0 %v3825
      %v4009 = vpop.f32.mrb[0].mxu0
      %v4010 = vadd.f32 0.0, %v4009
      %v4011 = vpop.f32.mrb[0].mxu0
      %4012 = vmatprep.mubr.f32.mxu0 0.0
      %4013 = vmatmul.mubr.f32.gmra.mrb[0].mxu0 %v3828
      %v4014 = vpop.f32.mrb[0].mxu0
      %v4015 = vadd.f32 0.0, %v4014
      %v4016 = vpop.f32.mrb[0].mxu0
      %4017 = vmatprep.mubr.f32.mxu0 0.0
      %4018 = vmatmul.mubr.f32.gmra.mrb[0].mxu0 %v3831
      %v4019 = vpop.f32.mrb[0].mxu0
      %v4020 = vadd.f32 0.0, %v4019
      %v4021 = vpop.f32.mrb[0].mxu0
      %4022 = vmatprep.mubr.f32.mxu0 0.0
      %4023 = vmatmul.mubr.f32.gmra.mrb[0].mxu0 %v3834
      %v4024 = vpop.f32.mrb[0].mxu0
      %v4025 = vadd.f32 0.0, %v4024
      %v4026 = vpop.f32.mrb[0].mxu0
      %4027 = vmatprep.mubr.f32.mxu0 0.0
      %4028 = vmatmul.mubr.f32.gmra.mrb[0].mxu0 %v3837
      %v4029 = vpop.f32.mrb[0].mxu0
      %v4030 = vadd.f32 0.0, %v4029
      %v4031 = vpop.f32.mrb[0].mxu0
      %4032 = vmatprep.mubr.f32.mxu0 0.0
      %4033 = vmatmul.mubr.f32.gmra.mrb[0].mxu0 %v3840
      %v4034 = vpop.f32.mrb[0].mxu0
      %v4035 = vadd.f32 0.0, %v4034
      %v4036 = vpop.f32.mrb[0].mxu0
      %4037 = vmatprep.mubr.f32.mxu0 0.0
      %4038 = vmatmul.mubr.f32.gmra.mrb[0].mxu0 %v3843
      %v4039 = vpop.f32.mrb[0].mxu0
      %v4040 = vadd.f32 0.0, %v4039
      %v4041 = vpop.f32.mrb[0].mxu0
      %4042 = vmatprep.mubr.f32.mxu0 0.0
      %4043 = vmatmul.mubr.f32.gmra.mrb[0].mxu0 %v3846
      %v4044 = vpop.f32.mrb[0].mxu0
      %v4045 = vadd.f32 0.0, %v4044
      %v4046 = vpop.f32.mrb[0].mxu0
      %4047 = vmatprep.mubr.f32.mxu0 0.0
      %4048 = vmatmul.mubr.f32.gmra.mrb[0].mxu0 %v3849
      %v4049 = vpop.f32.mrb[0].mxu0
      %v4050 = vadd.f32 0.0, %v4049
      %v4051 = vpop.f32.mrb[0].mxu0
      %4052 = vmatprep.mubr.f32.mxu0 0.0
      %4053 = vmatmul.mubr.f32.gmra.mrb[0].mxu0 %v3852
      %v4054 = vpop.f32.mrb[0].mxu0
      %v4055 = vadd.f32 0.0, %v4054
      %v4056 = vpop.f32.mrb[0].mxu0
      %4057 = vmatprep.mubr.f32.mxu0 0.0
      %4058 = vmatmul.mubr.f32.gmra.mrb[0].mxu0 %v3855
      %v4059 = vpop.f32.mrb[0].mxu0
      %v4060 = vadd.f32 0.0, %v4059
      %v4061 = vpop.f32.mrb[0].mxu0
      %4062 = vmatprep.mubr.f32.mxu0 0.0
      %4063 = vmatmul.mubr.f32.gmra.mrb[0].mxu0 %v3858
      %v4064 = vpop.f32.mrb[0].mxu0
      %v4065 = vadd.f32 0.0, %v4064
      %v4066 = vpop.f32.mrb[0].mxu0
      %4067 = vmatprep.mubr.f32.mxu0 0.0
      %4068 = vmatmul.mubr.f32.gmra.mrb[0].mxu0 %v3861
      %v4069 = vpop.f32.mrb[0].mxu0
      %v4070 = vadd.f32 0.0, %v4069
      %v4071 = vpop.f32.mrb[0].mxu0
      %4072 = vmatprep.mubr.f32.mxu0 0.0
      %4073 = vmatmul.mubr.f32.gmra.mrb[0].mxu0 %v3864
      %v4074 = vpop.f32.mrb[0].mxu0
      %v4075 = vadd.f32 0.0, %v4074
      %v4076 = vpop.f32.mrb[0].mxu0
      %4077 = vmatprep.mubr.f32.mxu0 0.0
      %4078 = vmatmul.mubr.f32.gmra.mrb[0].mxu0 %v3867
      %v4079 = vpop.f32.mrb[0].mxu0
      %v4080 = vadd.f32 0.0, %v4079
      %v4081 = vpop.f32.mrb[0].mxu0
      %4082 = vmatprep.mubr.f32.mxu0 0.0
      %4083 = vmatmul.mubr.f32.gmra.mrb[0].mxu0 %v3870
      %v4084 = vpop.f32.mrb[0].mxu0
      %v4085 = vadd.f32 0.0, %v4084
      %v4086 = vpop.f32.mrb[0].mxu0
      %4087 = vmatprep.mubr.f32.mxu0 0.0
      %4088 = vmatmul.mubr.f32.gmra.mrb[0].mxu0 %v3873
      %v4089 = vpop.f32.mrb[0].mxu0
      %v4090 = vadd.f32 0.0, %v4089
      %v4091 = vpop.f32.mrb[0].mxu0
      %4092 = vmatprep.mubr.f32.mxu0 0.0
      %4093 = vmatmul.mubr.f32.gmra.mrb[0].mxu0 %v3876
      %v4094 = vpop.f32.mrb[0].mxu0
      %v4095 = vadd.f32 0.0, %v4094
      %v4096 = vpop.f32.mrb[0].mxu0
      %4097 = vmatprep.mubr.f32.mxu0 0.0
      %4098 = vmatmul.mubr.f32.gmra.mrb[0].mxu0 %v3879
      %v4099 = vpop.f32.mrb[0].mxu0
      %v4100 = vadd.f32 0.0, %v4099
      %v4101 = vpop.f32.mrb[0].mxu0
      %4102 = vmatprep.mubr.f32.mxu0 0.0
      %4103 = vmatmul.mubr.f32.gmra.mrb[0].mxu0 %v3882
      %v4104 = vpop.f32.mrb[0].mxu0
      %v4105 = vadd.f32 0.0, %v4104
      %v4106 = vpop.f32.mrb[0].mxu0
      %4107 = vmatprep.mubr.f32.mxu0 0.0
      %4108 = vmatmul.mubr.f32.gmra.mrb[0].mxu0 %v3885
      %v4109 = vpop.f32.mrb[0].mxu0
      %v4110 = vadd.f32 0.0, %v4109
      %v4111 = vpop.f32.mrb[0].mxu0
      %4112 = vmatprep.mubr.f32.mxu0 0.0
      %4113 = vmatmul.mubr.f32.gmra.mrb[0].mxu0 %v3888
      %v4114 = vpop.f32.mrb[0].mxu0
      %v4115 = vadd.f32 0.0, %v4114
      %v4116 = vpop.f32.mrb[0].mxu0
      %4117 = vdwg.mxu0
      %v4118 = vadd.f32 %v3728, %v3960
      %v4119 = vadd.f32 %v3729, %v3965
      %v4120 = vadd.f32 %v3730, %v3970
      %v4121 = vadd.f32 %v3731, %v3975
      %v4122 = vadd.f32 %v3732, %v3980
      %v4123 = vadd.f32 %v3733, %v3985
      %v4124 = vadd.f32 %v3734, %v3990
      %v4125 = vadd.f32 %v3735, %v3995
      %v4126 = vadd.f32 %v3736, %v4000
      %v4127 = vadd.f32 %v3737, %v4005
      %v4128 = vadd.f32 %v3738, %v4010
      %v4129 = vadd.f32 %v3739, %v4015
      %v4130 = vadd.f32 %v3740, %v4020
      %v4131 = vadd.f32 %v3741, %v4025
      %v4132 = vadd.f32 %v3742, %v4030
      %v4133 = vadd.f32 %v3743, %v4035
      %v4134 = vadd.f32 %v3744, %v4040
      %v4135 = vadd.f32 %v3745, %v4045
      %v4136 = vadd.f32 %v3746, %v4050
      %v4137 = vadd.f32 %v3747, %v4055
      %v4138 = vadd.f32 %v3748, %v4060
      %v4139 = vadd.f32 %v3749, %v4065
      %v4140 = vadd.f32 %v3750, %v4070
      %v4141 = vadd.f32 %v3751, %v4075
      %v4142 = vadd.f32 %v3752, %v4080
      %v4143 = vadd.f32 %v3753, %v4085
      %v4144 = vadd.f32 %v3754, %v4090
      %v4145 = vadd.f32 %v3755, %v4095
      %v4146 = vadd.f32 %v3756, %v4100
      %v4147 = vadd.f32 %v3757, %v4105
      %v4148 = vadd.f32 %v3758, %v4110
      %v4149 = vadd.f32 %v3759, %v4115
      %v4150 = vld [vmem:[#allocation2 + $0x29] sm:$0xff]
      %v4151 = vld [vmem:[#allocation2 + $0x31] sm:$0xff]
      %v4152 = vld [vmem:[#allocation2 + $0x39] sm:$0xff]
      %v4153 = vld [vmem:[#allocation2 + $0x41] sm:$0xff]
      %v4154 = vld [vmem:[#allocation2 + $0x49] sm:$0xff]
      %v4155 = vld [vmem:[#allocation2 + $0x51] sm:$0xff]
      %v4156 = vld [vmem:[#allocation2 + $0x59] sm:$0xff]
      %v4157 = vld [vmem:[#allocation2 + $0x61] sm:$0xff]
      %v4158 = vld [vmem:[#allocation2 + $0x69] sm:$0xff]
      %v4159 = vld [vmem:[#allocation2 + $0x71] sm:$0xff]
      %v4160 = vld [vmem:[#allocation2 + $0x79] sm:$0xff]
      %v4161 = vld [vmem:[#allocation2 + $0x81] sm:$0xff]
      %v4162 = vld [vmem:[#allocation2 + $0x89] sm:$0xff]
      %v4163 = vld [vmem:[#allocation2 + $0x91] sm:$0xff]
      %v4164 = vld [vmem:[#allocation2 + $0x99] sm:$0xff]
      %v4165 = vld [vmem:[#allocation2 + $0xa1] sm:$0xff]
      %v4166 = vld [vmem:[#allocation2 + $0xa9] sm:$0xff]
      %v4167 = vld [vmem:[#allocation2 + $0xb1] sm:$0xff]
      %v4168 = vld [vmem:[#allocation2 + $0xb9] sm:$0xff]
      %v4169 = vld [vmem:[#allocation2 + $0xc1] sm:$0xff]
      %v4170 = vld [vmem:[#allocation2 + $0xc9] sm:$0xff]
      %v4171 = vld [vmem:[#allocation2 + $0xd1] sm:$0xff]
      %v4172 = vld [vmem:[#allocation2 + $0xd9] sm:$0xff]
      %v4173 = vld [vmem:[#allocation2 + $0xe1] sm:$0xff]
      %v4174 = vld [vmem:[#allocation2 + $0xe9] sm:$0xff]
      %v4175 = vld [vmem:[#allocation2 + $0xf1] sm:$0xff]
      %v4176 = vld [vmem:[#allocation2 + $0xf9] sm:$0xff]
      %v4177 = vld [vmem:[#allocation2 + $0x101] sm:$0xff]
      %v4178 = vld [vmem:[#allocation2 + $0x109] sm:$0xff]
      %v4179 = vld [vmem:[#allocation2 + $0x111] sm:$0xff]
      %v4180 = vld [vmem:[#allocation2 + $0x119] sm:$0xff]
      %v4181 = vld [vmem:[#allocation2 + $0x121] sm:$0xff]
      %v4182 = vmul.f32 %v4150, %v902
      %v4183 = vmul.f32 %v4151, %v903
      %v4184 = vmul.f32 %v4152, %v904
      %v4185 = vmul.f32 %v4153, %v905
      %v4186 = vmul.f32 %v4154, %v906
      %v4187 = vmul.f32 %v4155, %v907
      %v4188 = vmul.f32 %v4156, %v908
      %v4189 = vmul.f32 %v4157, %v909
      %v4190 = vmul.f32 %v4158, %v910
      %v4191 = vmul.f32 %v4159, %v911
      %v4192 = vmul.f32 %v4160, %v912
      %v4193 = vmul.f32 %v4161, %v913
      %v4194 = vmul.f32 %v4162, %v914
      %v4195 = vmul.f32 %v4163, %v915
      %v4196 = vmul.f32 %v4164, %v916
      %v4197 = vmul.f32 %v4165, %v917
      %v4198 = vmul.f32 %v4166, %v918
      %v4199 = vmul.f32 %v4167, %v919
      %v4200 = vmul.f32 %v4168, %v920
      %v4201 = vmul.f32 %v4169, %v921
      %v4202 = vmul.f32 %v4170, %v922
      %v4203 = vmul.f32 %v4171, %v923
      %v4204 = vmul.f32 %v4172, %v924
      %v4205 = vmul.f32 %v4173, %v925
      %v4206 = vmul.f32 %v4174, %v926
      %v4207 = vmul.f32 %v4175, %v927
      %v4208 = vmul.f32 %v4176, %v928
      %v4209 = vmul.f32 %v4177, %v929
      %v4210 = vmul.f32 %v4178, %v930
      %v4211 = vmul.f32 %v4179, %v931
      %v4212 = vmul.f32 %v4180, %v932
      %v4213 = vmul.f32 %v4181, %v933
      %s4214 = scalar_lea.vmem %s210, 32
      %v4215 = vld [vmem:[%s4214] sm:$0x7]
      %v4217 = vsel %vm222, %v4182, 0
      %v4220 = vsel %vm222, %v4183, 0
      %v4223 = vsel %vm222, %v4184, 0
      %v4226 = vsel %vm222, %v4185, 0
      %v4229 = vsel %vm222, %v4186, 0
      %v4232 = vsel %vm222, %v4187, 0
      %v4235 = vsel %vm222, %v4188, 0
      %v4238 = vsel %vm222, %v4189, 0
      %v4241 = vsel %vm222, %v4190, 0
      %v4244 = vsel %vm222, %v4191, 0
      %v4247 = vsel %vm222, %v4192, 0
      %v4250 = vsel %vm222, %v4193, 0
      %v4253 = vsel %vm222, %v4194, 0
      %v4256 = vsel %vm222, %v4195, 0
      %v4259 = vsel %vm222, %v4196, 0
      %v4262 = vsel %vm222, %v4197, 0
      %v4265 = vsel %vm222, %v4198, 0
      %v4268 = vsel %vm222, %v4199, 0
      %v4271 = vsel %vm222, %v4200, 0
      %v4274 = vsel %vm222, %v4201, 0
      %v4277 = vsel %vm222, %v4202, 0
      %v4280 = vsel %vm222, %v4203, 0
      %v4283 = vsel %vm222, %v4204, 0
      %v4286 = vsel %vm222, %v4205, 0
      %v4289 = vsel %vm222, %v4206, 0
      %v4292 = vsel %vm222, %v4207, 0
      %v4295 = vsel %vm222, %v4208, 0
      %v4298 = vsel %vm222, %v4209, 0
      %v4301 = vsel %vm222, %v4210, 0
      %v4304 = vsel %vm222, %v4211, 0
      %v4307 = vsel %vm222, %v4212, 0
      %v4310 = vsel %vm222, %v4213, 0
      %v4313 = vsel %vm1129, %v4215, 0
      %4315 = vmatprep.subr.mxu0 0.0
      %4316 = vmatpush1.msra.mxu0 %v4313
      %4317 = vmatprep.subr.mxu0 0.0
      %4318 = vmatpush1.msra.mxu0 0.0
      %4319 = vmatprep.subr.mxu0 0.0
      %4320 = vmatpush1.msra.mxu0 0.0
      %4321 = vmatprep.subr.mxu0 0.0
      %4322 = vmatpush1.msra.mxu0 0.0
      %4323 = vmatprep.subr.mxu0 0.0
      %4324 = vmatpush1.msra.mxu0 0.0
      %4325 = vmatprep.subr.mxu0 0.0
      %4326 = vmatpush1.msra.mxu0 0.0
      %4327 = vmatprep.subr.mxu0 0.0
      %4328 = vmatpush1.msra.mxu0 0.0
      %4329 = vmatprep.subr.mxu0 0.0
      %4330 = vmatpush1.msra.mxu0 0.0
      %4331 = vmatprep.subr.mxu0 0.0
      %4332 = vmatpush1.msra.mxu0 0.0
      %4333 = vmatprep.subr.mxu0 0.0
      %4334 = vmatpush1.msra.mxu0 0.0
      %4335 = vmatprep.subr.mxu0 0.0
      %4336 = vmatpush1.msra.mxu0 0.0
      %4337 = vmatprep.subr.mxu0 0.0
      %4338 = vmatpush1.msra.mxu0 0.0
      %4339 = vmatprep.subr.mxu0 0.0
      %4340 = vmatpush1.msra.mxu0 0.0
      %4341 = vmatprep.subr.mxu0 0.0
      %4342 = vmatpush1.msra.mxu0 0.0
      %4343 = vmatprep.subr.mxu0 0.0
      %4344 = vmatpush1.msra.mxu0 0.0
      %4345 = vmatprep.subr.mxu0 0.0
      %4346 = vmatpush1.msra.mxu0 0.0
      %4347 = vmatprep.subr.mxu0 0.0
      %4348 = vmatpush1.msra.mxu0 0.0
      %4349 = vmatprep.subr.mxu0 0.0
      %4350 = vmatpush1.msra.mxu0 0.0
      %4351 = vmatprep.subr.mxu0 0.0
      %4352 = vmatpush1.msra.mxu0 0.0
      %4353 = vmatprep.subr.mxu0 0.0
      %4354 = vmatpush1.msra.mxu0 0.0
      %4355 = vmatprep.subr.mxu0 0.0
      %4356 = vmatpush1.msra.mxu0 0.0
      %4357 = vmatprep.subr.mxu0 0.0
      %4358 = vmatpush1.msra.mxu0 0.0
      %4359 = vmatprep.subr.mxu0 0.0
      %4360 = vmatpush1.msra.mxu0 0.0
      %4361 = vmatprep.subr.mxu0 0.0
      %4362 = vmatpush1.msra.mxu0 0.0
      %4363 = vmatprep.subr.mxu0 0.0
      %4364 = vmatpush1.msra.mxu0 0.0
      %4365 = vmatprep.subr.mxu0 0.0
      %4366 = vmatpush1.msra.mxu0 0.0
      %4367 = vmatprep.subr.mxu0 0.0
      %4368 = vmatpush1.msra.mxu0 0.0
      %4369 = vmatprep.subr.mxu0 0.0
      %4370 = vmatpush1.msra.mxu0 0.0
      %4371 = vmatprep.subr.mxu0 0.0
      %4372 = vmatpush1.msra.mxu0 0.0
      %4373 = vmatprep.subr.mxu0 0.0
      %4374 = vmatpush1.msra.mxu0 0.0
      %4375 = vmatprep.subr.mxu0 0.0
      %4376 = vmatpush1.msra.mxu0 0.0
      %4377 = vmatprep.subr.mxu0 0.0
      %4378 = vmatpush1.msra.mxu0 0.0
      %4379 = vmatprep.mubr.f32.mxu0 0.0
      %4380 = vmatmul.mubr.f32.gmra.mrb[0].mxu0 %v4217
      %v4381 = vpop.f32.mrb[0].mxu0
      %v4382 = vadd.f32 0.0, %v4381
      %v4383 = vpop.f32.mrb[0].mxu0
      %4384 = vmatprep.mubr.f32.mxu0 0.0
      %4385 = vmatmul.mubr.f32.gmra.mrb[0].mxu0 %v4220
      %v4386 = vpop.f32.mrb[0].mxu0
      %v4387 = vadd.f32 0.0, %v4386
      %v4388 = vpop.f32.mrb[0].mxu0
      %4389 = vmatprep.mubr.f32.mxu0 0.0
      %4390 = vmatmul.mubr.f32.gmra.mrb[0].mxu0 %v4223
      %v4391 = vpop.f32.mrb[0].mxu0
      %v4392 = vadd.f32 0.0, %v4391
      %v4393 = vpop.f32.mrb[0].mxu0
      %4394 = vmatprep.mubr.f32.mxu0 0.0
      %4395 = vmatmul.mubr.f32.gmra.mrb[0].mxu0 %v4226
      %v4396 = vpop.f32.mrb[0].mxu0
      %v4397 = vadd.f32 0.0, %v4396
      %v4398 = vpop.f32.mrb[0].mxu0
      %4399 = vmatprep.mubr.f32.mxu0 0.0
      %4400 = vmatmul.mubr.f32.gmra.mrb[0].mxu0 %v4229
      %v4401 = vpop.f32.mrb[0].mxu0
      %v4402 = vadd.f32 0.0, %v4401
      %v4403 = vpop.f32.mrb[0].mxu0
      %4404 = vmatprep.mubr.f32.mxu0 0.0
      %4405 = vmatmul.mubr.f32.gmra.mrb[0].mxu0 %v4232
      %v4406 = vpop.f32.mrb[0].mxu0
      %v4407 = vadd.f32 0.0, %v4406
      %v4408 = vpop.f32.mrb[0].mxu0
      %4409 = vmatprep.mubr.f32.mxu0 0.0
      %4410 = vmatmul.mubr.f32.gmra.mrb[0].mxu0 %v4235
      %v4411 = vpop.f32.mrb[0].mxu0
      %v4412 = vadd.f32 0.0, %v4411
      %v4413 = vpop.f32.mrb[0].mxu0
      %4414 = vmatprep.mubr.f32.mxu0 0.0
      %4415 = vmatmul.mubr.f32.gmra.mrb[0].mxu0 %v4238
      %v4416 = vpop.f32.mrb[0].mxu0
      %v4417 = vadd.f32 0.0, %v4416
      %v4418 = vpop.f32.mrb[0].mxu0
      %4419 = vmatprep.mubr.f32.mxu0 0.0
      %4420 = vmatmul.mubr.f32.gmra.mrb[0].mxu0 %v4241
      %v4421 = vpop.f32.mrb[0].mxu0
      %v4422 = vadd.f32 0.0, %v4421
      %v4423 = vpop.f32.mrb[0].mxu0
      %4424 = vmatprep.mubr.f32.mxu0 0.0
      %4425 = vmatmul.mubr.f32.gmra.mrb[0].mxu0 %v4244
      %v4426 = vpop.f32.mrb[0].mxu0
      %v4427 = vadd.f32 0.0, %v4426
      %v4428 = vpop.f32.mrb[0].mxu0
      %4429 = vmatprep.mubr.f32.mxu0 0.0
      %4430 = vmatmul.mubr.f32.gmra.mrb[0].mxu0 %v4247
      %v4431 = vpop.f32.mrb[0].mxu0
      %v4432 = vadd.f32 0.0, %v4431
      %v4433 = vpop.f32.mrb[0].mxu0
      %4434 = vmatprep.mubr.f32.mxu0 0.0
      %4435 = vmatmul.mubr.f32.gmra.mrb[0].mxu0 %v4250
      %v4436 = vpop.f32.mrb[0].mxu0
      %v4437 = vadd.f32 0.0, %v4436
      %v4438 = vpop.f32.mrb[0].mxu0
      %4439 = vmatprep.mubr.f32.mxu0 0.0
      %4440 = vmatmul.mubr.f32.gmra.mrb[0].mxu0 %v4253
      %v4441 = vpop.f32.mrb[0].mxu0
      %v4442 = vadd.f32 0.0, %v4441
      %v4443 = vpop.f32.mrb[0].mxu0
      %4444 = vmatprep.mubr.f32.mxu0 0.0
      %4445 = vmatmul.mubr.f32.gmra.mrb[0].mxu0 %v4256
      %v4446 = vpop.f32.mrb[0].mxu0
      %v4447 = vadd.f32 0.0, %v4446
      %v4448 = vpop.f32.mrb[0].mxu0
      %4449 = vmatprep.mubr.f32.mxu0 0.0
      %4450 = vmatmul.mubr.f32.gmra.mrb[0].mxu0 %v4259
      %v4451 = vpop.f32.mrb[0].mxu0
      %v4452 = vadd.f32 0.0, %v4451
      %v4453 = vpop.f32.mrb[0].mxu0
      %4454 = vmatprep.mubr.f32.mxu0 0.0
      %4455 = vmatmul.mubr.f32.gmra.mrb[0].mxu0 %v4262
      %v4456 = vpop.f32.mrb[0].mxu0
      %v4457 = vadd.f32 0.0, %v4456
      %v4458 = vpop.f32.mrb[0].mxu0
      %4459 = vmatprep.mubr.f32.mxu0 0.0
      %4460 = vmatmul.mubr.f32.gmra.mrb[0].mxu0 %v4265
      %v4461 = vpop.f32.mrb[0].mxu0
      %v4462 = vadd.f32 0.0, %v4461
      %v4463 = vpop.f32.mrb[0].mxu0
      %4464 = vmatprep.mubr.f32.mxu0 0.0
      %4465 = vmatmul.mubr.f32.gmra.mrb[0].mxu0 %v4268
      %v4466 = vpop.f32.mrb[0].mxu0
      %v4467 = vadd.f32 0.0, %v4466
      %v4468 = vpop.f32.mrb[0].mxu0
      %4469 = vmatprep.mubr.f32.mxu0 0.0
      %4470 = vmatmul.mubr.f32.gmra.mrb[0].mxu0 %v4271
      %v4471 = vpop.f32.mrb[0].mxu0
      %v4472 = vadd.f32 0.0, %v4471
      %v4473 = vpop.f32.mrb[0].mxu0
      %4474 = vmatprep.mubr.f32.mxu0 0.0
      %4475 = vmatmul.mubr.f32.gmra.mrb[0].mxu0 %v4274
      %v4476 = vpop.f32.mrb[0].mxu0
      %v4477 = vadd.f32 0.0, %v4476
      %v4478 = vpop.f32.mrb[0].mxu0
      %4479 = vmatprep.mubr.f32.mxu0 0.0
      %4480 = vmatmul.mubr.f32.gmra.mrb[0].mxu0 %v4277
      %v4481 = vpop.f32.mrb[0].mxu0
      %v4482 = vadd.f32 0.0, %v4481
      %v4483 = vpop.f32.mrb[0].mxu0
      %4484 = vmatprep.mubr.f32.mxu0 0.0
      %4485 = vmatmul.mubr.f32.gmra.mrb[0].mxu0 %v4280
      %v4486 = vpop.f32.mrb[0].mxu0
      %v4487 = vadd.f32 0.0, %v4486
      %v4488 = vpop.f32.mrb[0].mxu0
      %4489 = vmatprep.mubr.f32.mxu0 0.0
      %4490 = vmatmul.mubr.f32.gmra.mrb[0].mxu0 %v4283
      %v4491 = vpop.f32.mrb[0].mxu0
      %v4492 = vadd.f32 0.0, %v4491
      %v4493 = vpop.f32.mrb[0].mxu0
      %4494 = vmatprep.mubr.f32.mxu0 0.0
      %4495 = vmatmul.mubr.f32.gmra.mrb[0].mxu0 %v4286
      %v4496 = vpop.f32.mrb[0].mxu0
      %v4497 = vadd.f32 0.0, %v4496
      %v4498 = vpop.f32.mrb[0].mxu0
      %4499 = vmatprep.mubr.f32.mxu0 0.0
      %4500 = vmatmul.mubr.f32.gmra.mrb[0].mxu0 %v4289
      %v4501 = vpop.f32.mrb[0].mxu0
      %v4502 = vadd.f32 0.0, %v4501
      %v4503 = vpop.f32.mrb[0].mxu0
      %4504 = vmatprep.mubr.f32.mxu0 0.0
      %4505 = vmatmul.mubr.f32.gmra.mrb[0].mxu0 %v4292
      %v4506 = vpop.f32.mrb[0].mxu0
      %v4507 = vadd.f32 0.0, %v4506
      %v4508 = vpop.f32.mrb[0].mxu0
      %4509 = vmatprep.mubr.f32.mxu0 0.0
      %4510 = vmatmul.mubr.f32.gmra.mrb[0].mxu0 %v4295
      %v4511 = vpop.f32.mrb[0].mxu0
      %v4512 = vadd.f32 0.0, %v4511
      %v4513 = vpop.f32.mrb[0].mxu0
      %4514 = vmatprep.mubr.f32.mxu0 0.0
      %4515 = vmatmul.mubr.f32.gmra.mrb[0].mxu0 %v4298
      %v4516 = vpop.f32.mrb[0].mxu0
      %v4517 = vadd.f32 0.0, %v4516
      %v4518 = vpop.f32.mrb[0].mxu0
      %4519 = vmatprep.mubr.f32.mxu0 0.0
      %4520 = vmatmul.mubr.f32.gmra.mrb[0].mxu0 %v4301
      %v4521 = vpop.f32.mrb[0].mxu0
      %v4522 = vadd.f32 0.0, %v4521
      %v4523 = vpop.f32.mrb[0].mxu0
      %4524 = vmatprep.mubr.f32.mxu0 0.0
      %4525 = vmatmul.mubr.f32.gmra.mrb[0].mxu0 %v4304
      %v4526 = vpop.f32.mrb[0].mxu0
      %v4527 = vadd.f32 0.0, %v4526
      %v4528 = vpop.f32.mrb[0].mxu0
      %4529 = vmatprep.mubr.f32.mxu0 0.0
      %4530 = vmatmul.mubr.f32.gmra.mrb[0].mxu0 %v4307
      %v4531 = vpop.f32.mrb[0].mxu0
      %v4532 = vadd.f32 0.0, %v4531
      %v4533 = vpop.f32.mrb[0].mxu0
      %4534 = vmatprep.mubr.f32.mxu0 0.0
      %4535 = vmatmul.mubr.f32.gmra.mrb[0].mxu0 %v4310
      %v4536 = vpop.f32.mrb[0].mxu0
      %v4537 = vadd.f32 0.0, %v4536
      %v4538 = vpop.f32.mrb[0].mxu0
      %4539 = vdwg.mxu0
      %v4540 = vadd.f32 %v4118, %v4382
      %v4541 = vadd.f32 %v4119, %v4387
      %v4542 = vadd.f32 %v4120, %v4392
      %v4543 = vadd.f32 %v4121, %v4397
      %v4544 = vadd.f32 %v4122, %v4402
      %v4545 = vadd.f32 %v4123, %v4407
      %v4546 = vadd.f32 %v4124, %v4412
      %v4547 = vadd.f32 %v4125, %v4417
      %v4548 = vadd.f32 %v4126, %v4422
      %v4549 = vadd.f32 %v4127, %v4427
      %v4550 = vadd.f32 %v4128, %v4432
      %v4551 = vadd.f32 %v4129, %v4437
      %v4552 = vadd.f32 %v4130, %v4442
      %v4553 = vadd.f32 %v4131, %v4447
      %v4554 = vadd.f32 %v4132, %v4452
      %v4555 = vadd.f32 %v4133, %v4457
      %v4556 = vadd.f32 %v4134, %v4462
      %v4557 = vadd.f32 %v4135, %v4467
      %v4558 = vadd.f32 %v4136, %v4472
      %v4559 = vadd.f32 %v4137, %v4477
      %v4560 = vadd.f32 %v4138, %v4482
      %v4561 = vadd.f32 %v4139, %v4487
      %v4562 = vadd.f32 %v4140, %v4492
      %v4563 = vadd.f32 %v4141, %v4497
      %v4564 = vadd.f32 %v4142, %v4502
      %v4565 = vadd.f32 %v4143, %v4507
      %v4566 = vadd.f32 %v4144, %v4512
      %v4567 = vadd.f32 %v4145, %v4517
      %v4568 = vadd.f32 %v4146, %v4522
      %v4569 = vadd.f32 %v4147, %v4527
      %v4570 = vadd.f32 %v4148, %v4532
      %v4571 = vadd.f32 %v4149, %v4537
      %v4572 = vld [vmem:[%s213] sm:$0x1]
      %v4574 = vlaneseq
      %v4575 = vshrl.u32 %v4574, 7
      %v4576 = vsub.s32 0, %v4575
      %v4577 = vrot.slane %v4572, %v4576
      %v4579 = vadd.f32 %v4540, %v4577
      %v4580 = vadd.f32 %v4541, %v4577
      %v4581 = vadd.f32 %v4542, %v4577
      %v4582 = vadd.f32 %v4543, %v4577
      %v4583 = vadd.f32 %v4544, %v4577
      %v4584 = vadd.f32 %v4545, %v4577
      %v4585 = vadd.f32 %v4546, %v4577
      %v4586 = vadd.f32 %v4547, %v4577
      %v4587 = vadd.f32 %v4548, %v4577
      %v4588 = vadd.f32 %v4549, %v4577
      %v4589 = vadd.f32 %v4550, %v4577
      %v4590 = vadd.f32 %v4551, %v4577
      %v4591 = vadd.f32 %v4552, %v4577
      %v4592 = vadd.f32 %v4553, %v4577
      %v4593 = vadd.f32 %v4554, %v4577
      %v4594 = vadd.f32 %v4555, %v4577
      %v4595 = vadd.f32 %v4556, %v4577
      %v4596 = vadd.f32 %v4557, %v4577
      %v4597 = vadd.f32 %v4558, %v4577
      %v4598 = vadd.f32 %v4559, %v4577
      %v4599 = vadd.f32 %v4560, %v4577
      %v4600 = vadd.f32 %v4561, %v4577
      %v4601 = vadd.f32 %v4562, %v4577
      %v4602 = vadd.f32 %v4563, %v4577
      %v4603 = vadd.f32 %v4564, %v4577
      %v4604 = vadd.f32 %v4565, %v4577
      %v4605 = vadd.f32 %v4566, %v4577
      %v4606 = vadd.f32 %v4567, %v4577
      %v4607 = vadd.f32 %v4568, %v4577
      %v4608 = vadd.f32 %v4569, %v4577
      %v4609 = vadd.f32 %v4570, %v4577
      %v4610 = vadd.f32 %v4571, %v4577
      %v4611 = vmax.f32 %v4579, 0.0
      %v4612 = vmax.f32 %v4580, 0.0
      %v4613 = vmax.f32 %v4581, 0.0
      %v4614 = vmax.f32 %v4582, 0.0
      %v4615 = vmax.f32 %v4583, 0.0
      %v4616 = vmax.f32 %v4584, 0.0
      %v4617 = vmax.f32 %v4585, 0.0
      %v4618 = vmax.f32 %v4586, 0.0
      %v4619 = vmax.f32 %v4587, 0.0
      %v4620 = vmax.f32 %v4588, 0.0
      %v4621 = vmax.f32 %v4589, 0.0
      %v4622 = vmax.f32 %v4590, 0.0
      %v4623 = vmax.f32 %v4591, 0.0
      %v4624 = vmax.f32 %v4592, 0.0
      %v4625 = vmax.f32 %v4593, 0.0
      %v4626 = vmax.f32 %v4594, 0.0
      %v4627 = vmax.f32 %v4595, 0.0
      %v4628 = vmax.f32 %v4596, 0.0
      %v4629 = vmax.f32 %v4597, 0.0
      %v4630 = vmax.f32 %v4598, 0.0
      %v4631 = vmax.f32 %v4599, 0.0
      %v4632 = vmax.f32 %v4600, 0.0
      %v4633 = vmax.f32 %v4601, 0.0
      %v4634 = vmax.f32 %v4602, 0.0
      %v4635 = vmax.f32 %v4603, 0.0
      %v4636 = vmax.f32 %v4604, 0.0
      %v4637 = vmax.f32 %v4605, 0.0
      %v4638 = vmax.f32 %v4606, 0.0
      %v4639 = vmax.f32 %v4607, 0.0
      %v4640 = vmax.f32 %v4608, 0.0
      %v4641 = vmax.f32 %v4609, 0.0
      %v4642 = vmax.f32 %v4610, 0.0
      %vm4643 = vcmask 523264
      %4644 = vst.msk [vmem:[%s221] sm:$0xff] %vm4643, %v4611
      %4645 = vst.msk [vmem:[%s221 + $0x8] sm:$0xff] %vm4643, %v4612
      %4646 = vst.msk [vmem:[%s221 + $0x10] sm:$0xff] %vm4643, %v4613
      %4647 = vst.msk [vmem:[%s221 + $0x18] sm:$0xff] %vm4643, %v4614
      %4648 = vst.msk [vmem:[%s221 + $0x20] sm:$0xff] %vm4643, %v4615
      %4649 = vst.msk [vmem:[%s221 + $0x28] sm:$0xff] %vm4643, %v4616
      %4650 = vst.msk [vmem:[%s221 + $0x30] sm:$0xff] %vm4643, %v4617
      %4651 = vst.msk [vmem:[%s221 + $0x38] sm:$0xff] %vm4643, %v4618
      %4652 = vst.msk [vmem:[%s221 + $0x40] sm:$0xff] %vm4643, %v4619
      %4653 = vst.msk [vmem:[%s221 + $0x48] sm:$0xff] %vm4643, %v4620
      %4654 = vst.msk [vmem:[%s221 + $0x50] sm:$0xff] %vm4643, %v4621
      %4655 = vst.msk [vmem:[%s221 + $0x58] sm:$0xff] %vm4643, %v4622
      %4656 = vst.msk [vmem:[%s221 + $0x60] sm:$0xff] %vm4643, %v4623
      %4657 = vst.msk [vmem:[%s221 + $0x68] sm:$0xff] %vm4643, %v4624
      %4658 = vst.msk [vmem:[%s221 + $0x70] sm:$0xff] %vm4643, %v4625
      %4659 = vst.msk [vmem:[%s221 + $0x78] sm:$0xff] %vm4643, %v4626
      %4660 = vst.msk [vmem:[%s221 + $0x80] sm:$0xff] %vm4643, %v4627
      %4661 = vst.msk [vmem:[%s221 + $0x88] sm:$0xff] %vm4643, %v4628
      %4662 = vst.msk [vmem:[%s221 + $0x90] sm:$0xff] %vm4643, %v4629
      %4663 = vst.msk [vmem:[%s221 + $0x98] sm:$0xff] %vm4643, %v4630
      %4664 = vst.msk [vmem:[%s221 + $0xa0] sm:$0xff] %vm4643, %v4631
      %4665 = vst.msk [vmem:[%s221 + $0xa8] sm:$0xff] %vm4643, %v4632
      %4666 = vst.msk [vmem:[%s221 + $0xb0] sm:$0xff] %vm4643, %v4633
      %4667 = vst.msk [vmem:[%s221 + $0xb8] sm:$0xff] %vm4643, %v4634
      %4668 = vst.msk [vmem:[%s221 + $0xc0] sm:$0xff] %vm4643, %v4635
      %4669 = vst.msk [vmem:[%s221 + $0xc8] sm:$0xff] %vm4643, %v4636
      %4670 = vst.msk [vmem:[%s221 + $0xd0] sm:$0xff] %vm4643, %v4637
      %4671 = vst.msk [vmem:[%s221 + $0xd8] sm:$0xff] %vm4643, %v4638
      %4672 = vst.msk [vmem:[%s221 + $0xe0] sm:$0xff] %vm4643, %v4639
      %4673 = vst.msk [vmem:[%s221 + $0xe8] sm:$0xff] %vm4643, %v4640
      %4674 = vst.msk [vmem:[%s221 + $0xf0] sm:$0xff] %vm4643, %v4641
      %4675 = vst.msk [vmem:[%s221 + $0xf8] sm:$0xff] %vm4643, %v4642
      %p4676 = scmp.lt.s32.totalorder %s18, 1
      %s4677 = scalar_select %p4676, %s18, 1
      %p4678 = scmp.lt.s32.totalorder %s19, 0
      %s4679 = scalar_select %p4678, %s19, 0
      %s4680 = smul.addr %s4677, 32
      %s4681 = sadd.s32 %s4679, %s4680
      %s4682 = smul.addr %s4681, 8
      %s4683 = scalar_lea.vmem %s3, %s4682
      // Predicated region
      $region33: #{tpu_custom_call.1} parent=31 // pred_check
        %p4684 = pneg %p124
      $region34: #{tpu_custom_call.1} parent=31 // pred_check_branch
        %4686 = sbr.rel (%p4684) target = $region36
      $region35: #{tpu_custom_call.1} parent=31 // pred_region
        _
      $region36: #{tpu_custom_call.1} parent=31 // pred_fallthru
        _
    $region32: #{tpu_custom_call.1} parent=5 // pred_fallthru
      _
    %p4687 = scmp.le.s32.totalorder 2, %s9
    // Predicated region
    $region37: #{tpu_custom_call.1} parent=5 // pred_check
      %p4688 = pneg %p4687
    $region38: #{tpu_custom_call.1} parent=5 // pred_check_branch
      %4690 = sbr.rel (%p4688) target = $region40
    $region39: #{tpu_custom_call.1} parent=5 // pred_region
      %s4691 = ssub.s32 %s9, 2
      // Predicated region
      $region41: #{tpu_custom_call.1} parent=39 // pred_check
        %p4692 = pneg %p130
      $region42: #{tpu_custom_call.1} parent=39 // pred_check_branch
        %4694 = sbr.rel (%p4692) target = $region44
      $region43: #{tpu_custom_call.1} parent=39 // pred_region
        %p4695 = scmp.lt.s32.totalorder %s20, 1
        %s4696 = scalar_select %p4695, %s20, 1
        %p4697 = scmp.lt.s32.totalorder %s21, 0
        %s4698 = scalar_select %p4697, %s21, 0
        %s4699 = smul.addr %s4696, 32
        %s4700 = sadd.s32 %s4698, %s4699
        %s4701 = smul.addr %s4700, 8
        %s4702 = scalar_lea.vmem %s3, %s4701
      $region44: #{tpu_custom_call.1} parent=39 // pred_fallthru
        _
    $region40: #{tpu_custom_call.1} parent=5 // pred_fallthru
      _
  $region6: #{tpu_custom_call.1} parent=0 // loop_footer
    %s13 = sadd.s32 1, %s9
  $region7: #{tpu_custom_call.1} parent=0 // loop_footer_branch
    %8 = sbr.rel target = $region3
  $region8: #{tpu_custom_call.1} parent=0 // loop_exit
    _

</llo_original>
